<compile_context>
chip_gen: v7x
topology: tpu7x:2x2x1
jax: 0.10.0
libtpu: 0.0.40
codegen_flags: <defaults>
</compile_context>

<pallas_src>
import functools

import jax
import jax.numpy as jnp
from jax.experimental import pallas as pl
from jax.experimental.pallas import tpu as pltpu


def _round_up(x, m):
    return (x + m - 1) // m * m


def _pick_tb(batch, cap=8):
    """Largest divisor of `batch` <= cap that still leaves a grid of >= 2 steps."""
    best = 1
    limit = min(cap, max(batch // 2, 1))
    for t in range(1, limit + 1):
        if batch % t == 0:
            best = t
    return best


# ---------------------------------------------------------------------------
# Fixed geometry of the 84x84 ImageOnlyExtractor CNN (forced by the 3136-dim
# Linear baked into the PyTorch module).
# ---------------------------------------------------------------------------
# conv1: k=8 s=4  -> space-to-depth(4): 21x21 x (16*cin); output 20x20x32
HP1 = 21
TAPS1 = (0, 1, 21, 22)           # a*21 + b, a,b in {0,1}
M1_VALID = 20 * 21               # rows m = oy*21 + ox (ox < 20 valid)
M1_PAD = 424
P1 = 448                         # padded input rows (>= 22 + 424)
C1_OUT = 32
# conv2: k=4 s=2 on 20x20x32 -> space-to-depth(2): 10x10x128; output 9x9x64
TAPS2 = (0, 1, 10, 11)
M2 = 96                          # rows m = oy*10 + ox kept (covers conv3 reads)
P2 = 112                         # padded input rows (>= 11 + 96)
C2_OUT = 64
# conv3: k=3 s=1, run directly on conv2's pitch-10 row layout; output 7x7x64
TAPS3 = (0, 1, 2, 10, 11, 12, 20, 21, 22)
M3_PAD = 72                      # rows m = oy*10 + ox (valid oy, ox < 7), padded
C3_OUT = 64
HEAD_K = M3_PAD * C3_OUT         # 4608; junk rows hit zero weight rows
N_OUT = 3
N_OUT_PAD = 128


# ---------------------------------------------------------------------------
# Kernel 1: conv1 (space-to-depth'ed input), single N-stacked GEMM + tap adds
# ---------------------------------------------------------------------------
def _conv1_kernel(x_ref, w_ref, b_ref, o_ref, *, tb):
    # x_ref: (1, tb*P1, 16*cin) bf16   w_ref: (16*cin, 4*C1_OUT) bf16
    # b_ref: (1, C1_OUT) f32           o_ref: (1, tb*M1_PAD, C1_OUT) bf16
    y = jnp.dot(x_ref[0], w_ref[...], preferred_element_type=jnp.float32)
    bias = b_ref[...]
    for b in range(tb):
        base = b * P1
        acc = y[base:base + M1_PAD, 0:C1_OUT]
        for t in range(1, len(TAPS1)):
            off = base + TAPS1[t]
            acc = acc + y[off:off + M1_PAD, t * C1_OUT:(t + 1) * C1_OUT]
        acc = jnp.maximum(acc + bias, 0.0)
        o_ref[0, b * M1_PAD:(b + 1) * M1_PAD, :] = acc.astype(o_ref.dtype)


def conv1_layer(xs, w_stk, b_row, *, tb):
    B, p, cs = xs.shape
    assert p == P1 and B % tb == 0
    g = B // tb
    xs_m = xs.reshape(g, tb * P1, cs)
    out = pl.pallas_call(
        functools.partial(_conv1_kernel, tb=tb),
        out_shape=jax.ShapeDtypeStruct((g, tb * M1_PAD, C1_OUT), jnp.bfloat16),
        grid=(g,),
        in_specs=[
            pl.BlockSpec((1, tb * P1, cs), lambda i: (i, 0, 0)),
            pl.BlockSpec(w_stk.shape, lambda i: (0, 0)),
            pl.BlockSpec(b_row.shape, lambda i: (0, 0)),
        ],
        out_specs=pl.BlockSpec((1, tb * M1_PAD, C1_OUT), lambda i: (i, 0, 0)),
        compiler_params=pltpu.CompilerParams(dimension_semantics=("parallel",)),
    )(xs_m, w_stk, b_row)
    return out.reshape(B, M1_PAD, C1_OUT)


# ---------------------------------------------------------------------------
# Kernel 2: conv2 + conv3 fused (intermediate stays in VMEM / vregs)
# ---------------------------------------------------------------------------
def _conv23_kernel(x_ref, w2_ref, b2_ref, w3_ref, b3_ref, o_ref, *, tb):
    # x_ref: (1, tb*P2, 128) bf16   w2: (128, 4*64) bf16   w3: (64, 9*64) bf16
    # o_ref: (1, tb*M3_PAD, 64) bf16
    y2 = jnp.dot(x_ref[0], w2_ref[...], preferred_element_type=jnp.float32)
    b2 = b2_ref[...]
    b3 = b3_ref[...]
    for b in range(tb):
        base = b * P2
        a2 = y2[base:base + M2, 0:C2_OUT]
        for t in range(1, len(TAPS2)):
            off = base + TAPS2[t]
            a2 = a2 + y2[off:off + M2, t * C2_OUT:(t + 1) * C2_OUT]
        h2 = jnp.maximum(a2 + b2, 0.0).astype(jnp.bfloat16)            # (96, 64)
        y3 = jnp.dot(h2, w3_ref[...], preferred_element_type=jnp.float32)  # (96, 576)
        a3 = y3[0:M3_PAD, 0:C3_OUT]
        for t in range(1, len(TAPS3)):
            off = TAPS3[t]
            a3 = a3 + y3[off:off + M3_PAD, t * C3_OUT:(t + 1) * C3_OUT]
        h3 = jnp.maximum(a3 + b3, 0.0)
        o_ref[0, b * M3_PAD:(b + 1) * M3_PAD, :] = h3.astype(o_ref.dtype)


def conv23_layer(xs, w2_stk, b2_row, w3_stk, b3_row, *, tb):
    B, p, cs = xs.shape
    assert p == P2 and B % tb == 0
    g = B // tb
    xs_m = xs.reshape(g, tb * P2, cs)
    out = pl.pallas_call(
        functools.partial(_conv23_kernel, tb=tb),
        out_shape=jax.ShapeDtypeStruct((g, tb * M3_PAD, C3_OUT), jnp.bfloat16),
        grid=(g,),
        in_specs=[
            pl.BlockSpec((1, tb * P2, cs), lambda i: (i, 0, 0)),
            pl.BlockSpec(w2_stk.shape, lambda i: (0, 0)),
            pl.BlockSpec(b2_row.shape, lambda i: (0, 0)),
            pl.BlockSpec(w3_stk.shape, lambda i: (0, 0)),
            pl.BlockSpec(b3_row.shape, lambda i: (0, 0)),
        ],
        out_specs=pl.BlockSpec((1, tb * M3_PAD, C3_OUT), lambda i: (i, 0, 0)),
        compiler_params=pltpu.CompilerParams(dimension_semantics=("parallel",)),
    )(xs_m, w2_stk, b2_row, w3_stk, b3_row)
    return out.reshape(B, M3_PAD, C3_OUT)


# ---------------------------------------------------------------------------
# Kernel 3: fused MLP head (3136->64 ReLU, 64->64 ReLU, 64->3 Tanh)
# ---------------------------------------------------------------------------
def _head_kernel(f_ref, w1_ref, b1_ref, w2_ref, b2_ref, w3_ref, b3_ref, o_ref):
    h = jnp.dot(f_ref[...], w1_ref[...], preferred_element_type=jnp.float32)
    h = jnp.maximum(h + b1_ref[...], 0.0)
    h = jnp.dot(h.astype(jnp.bfloat16), w2_ref[...], preferred_element_type=jnp.float32)
    h = jnp.maximum(h + b2_ref[...], 0.0)
    h = jnp.dot(h.astype(jnp.bfloat16), w3_ref[...], preferred_element_type=jnp.float32)
    o_ref[...] = jnp.tanh(h + b3_ref[...]).astype(o_ref.dtype)


def mlp_head(feats, w1, b1, w2, b2, w3, b3):
    B, K = feats.shape
    tm = min(256, _round_up(B, 8))          # bound padding waste for any batch
    bp = _round_up(B, tm)
    f = feats if bp == B else jnp.pad(feats, ((0, bp - B), (0, 0)))
    out = pl.pallas_call(
        _head_kernel,
        out_shape=jax.ShapeDtypeStruct((bp, N_OUT_PAD), jnp.float32),
        grid=(bp // tm,),
        in_specs=[
            pl.BlockSpec((tm, K), lambda i: (i, 0)),
            pl.BlockSpec(w1.shape, lambda i: (0, 0)),
            pl.BlockSpec(b1.shape, lambda i: (0, 0)),
            pl.BlockSpec(w2.shape, lambda i: (0, 0)),
            pl.BlockSpec(b2.shape, lambda i: (0, 0)),
            pl.BlockSpec(w3.shape, lambda i: (0, 0)),
            pl.BlockSpec(b3.shape, lambda i: (0, 0)),
        ],
        out_specs=pl.BlockSpec((tm, N_OUT_PAD), lambda i: (i, 0)),
        compiler_params=pltpu.CompilerParams(dimension_semantics=("parallel",)),
    )(f, w1, b1, w2, b2, w3, b3)
    return out[:B, :N_OUT]


# ---------------------------------------------------------------------------
# Parameters: PyTorch layout -> one-time kernel layout prep
# ---------------------------------------------------------------------------
def init_params(key, n_frames=8, features_dim=64):
    """PyTorch-layout parameters (Conv2d OIHW, Linear (out,in)), deterministic."""
    n_flatten = 64 * 7 * 7
    ks = jax.random.split(key, 12)

    def w_init(k, shape, fan_in):
        return jax.random.normal(k, shape, jnp.float32) / jnp.sqrt(fan_in)

    return {
        "c1_w": w_init(ks[0], (32, n_frames, 8, 8), n_frames * 8 * 8),
        "c1_b": w_init(ks[1], (32,), n_frames * 8 * 8),
        "c2_w": w_init(ks[2], (64, 32, 4, 4), 32 * 4 * 4),
        "c2_b": w_init(ks[3], (64,), 32 * 4 * 4),
        "c3_w": w_init(ks[4], (64, 64, 3, 3), 64 * 3 * 3),
        "c3_b": w_init(ks[5], (64,), 64 * 3 * 3),
        "l_w": w_init(ks[6], (features_dim, n_flatten), n_flatten),
        "l_b": w_init(ks[7], (features_dim,), n_flatten),
        "h1_w": w_init(ks[8], (64, features_dim), features_dim),
        "h1_b": w_init(ks[9], (64,), features_dim),
        "h2_w": w_init(ks[10], (3, 64), 64),
        "h2_b": w_init(ks[11], (3,), 64),
    }


def prepare_params(params):
    """One-time reorg of PyTorch-layout params into kernel-friendly layouts."""

    def prep_conv(w_oihw, b, s):
        cout, cin, kh, kw = w_oihw.shape
        ka, kb = kh // s, kw // s
        # OIHW -> (taps = ka*kb, s*s*cin, cout); tap t = a*kb + b, packed channel
        # (p*s + q)*cin + c  (matches the space-to-depth packing of the input)
        w = w_oihw.reshape(cout, cin, ka, s, kb, s)
        w = jnp.transpose(w, (2, 4, 3, 5, 1, 0)).reshape(ka * kb, s * s * cin, cout)
        # stack taps along N: (s*s*cin, ka*kb*cout), column index t*cout + o
        w = jnp.transpose(w, (1, 0, 2)).reshape(s * s * cin, ka * kb * cout)
        return w.astype(jnp.bfloat16), b.reshape(1, cout).astype(jnp.float32)

    c1w, c1b = prep_conv(params["c1_w"], params["c1_b"], 4)
    c2w, c2b = prep_conv(params["c2_w"], params["c2_b"], 2)
    c3w, c3b = prep_conv(params["c3_w"], params["c3_b"], 1)

    # Linear(3136->64): torch consumes the NCHW flatten index c*49 + y*7 + x.
    # The fused conv2+conv3 kernel emits rows m = y*10 + x (pitch 10, 72 rows
    # incl. junk), channel c, i.e. flatten index m*64 + c.  Re-lay the weight
    # once to (72*64, fd) with zero rows at every junk position.
    fd, n_flat = params["l_w"].shape
    assert n_flat == 64 * 7 * 7
    lw = params["l_w"].reshape(fd, 64, 7, 7)            # (f, c, y, x)
    lw = jnp.transpose(lw, (2, 3, 1, 0))                # (y, x, c, f)
    w1 = jnp.zeros((M3_PAD, 64, fd), jnp.float32)
    m_idx = (jnp.arange(7)[:, None] * 10 + jnp.arange(7)[None, :]).reshape(-1)
    w1 = w1.at[m_idx].set(lw.reshape(49, 64, fd))
    w1 = w1.reshape(HEAD_K, fd).astype(jnp.bfloat16)

    # final Linear(64->3): pad N to 128 for lane-dense stores; sliced outside.
    h2w = jnp.zeros((64, N_OUT_PAD), jnp.float32).at[:, :N_OUT].set(
        jnp.transpose(params["h2_w"]))
    h2b = jnp.zeros((1, N_OUT_PAD), jnp.float32).at[:, :N_OUT].set(
        params["h2_b"].reshape(1, -1))

    return {
        "c1_w": c1w, "c1_b": c1b,
        "c2_w": c2w, "c2_b": c2b,
        "c3_w": c3w, "c3_b": c3b,
        "l_w": w1,
        "l_b": params["l_b"].reshape(1, -1).astype(jnp.float32),
        "h1_w": jnp.transpose(params["h1_w"]).astype(jnp.bfloat16),
        "h1_b": params["h1_b"].reshape(1, -1).astype(jnp.float32),
        "h2_w": h2w.astype(jnp.bfloat16),
        "h2_b": h2b,
    }


# ---------------------------------------------------------------------------
# Full forward pass of SupervisedPolicy
# ---------------------------------------------------------------------------
def supervised_policy_forward(prep, x_nchw):
    B, cin = x_nchw.shape[0], x_nchw.shape[1]
    tb = _pick_tb(B)

    # NCHW -> NHWC, space-to-depth(4), flatten spatial, zero-pad rows, bf16.
    x = jnp.transpose(x_nchw.astype(jnp.float32), (0, 2, 3, 1))
    xs = x.reshape(B, HP1, 4, HP1, 4, cin)
    xs = jnp.transpose(xs, (0, 1, 3, 2, 4, 5)).reshape(B, HP1 * HP1, 16 * cin)
    xs = jnp.pad(xs, ((0, 0), (0, P1 - HP1 * HP1), (0, 0))).astype(jnp.bfloat16)

    h1 = conv1_layer(xs, prep["c1_w"], prep["c1_b"], tb=tb)      # (B, 424, 32) bf16

    # conv1 output -> conv2 space-to-depth input (stays bf16, ~27 KB/item).
    # TODO(synk): this small relayout still runs in XLA between the two kernels;
    # folding it into conv1's stores would need in-kernel strided stores.
    g = h1[:, :M1_VALID, :].reshape(B, 20, 21, C1_OUT)[:, :, :20, :]
    g = g.reshape(B, 10, 2, 10, 2, C1_OUT)
    g = jnp.transpose(g, (0, 1, 3, 2, 4, 5)).reshape(B, 100, 4 * C1_OUT)
    g = jnp.pad(g, ((0, 0), (0, P2 - 100), (0, 0)))

    h3 = conv23_layer(g, prep["c2_w"], prep["c2_b"], prep["c3_w"], prep["c3_b"],
                      tb=tb)                                     # (B, 72, 64) bf16

    feats = h3.reshape(B, HEAD_K)   # free contiguous reshape; junk rows are
                                    # matched by zero rows in prep["l_w"]
    return mlp_head(feats, prep["l_w"], prep["l_b"], prep["h1_w"], prep["h1_b"],
                    prep["h2_w"], prep["h2_b"])


# ---------------------------------------------------------------------------
# Plain-JAX/XLA reference (matches the PyTorch module semantics exactly)
# ---------------------------------------------------------------------------
def reference_forward(params, x_nchw):
    x = jnp.transpose(x_nchw.astype(jnp.float32), (0, 2, 3, 1))

    def conv(h, w, b, s):
        y = jax.lax.conv_general_dilated(
            h, jnp.transpose(w, (2, 3, 1, 0)).astype(jnp.float32),
            window_strides=(s, s), padding="VALID",
            dimension_numbers=("NHWC", "HWIO", "NHWC"))
        return jax.nn.relu(y + b)

    h = conv(x, params["c1_w"], params["c1_b"], 4)
    h = conv(h, params["c2_w"], params["c2_b"], 2)
    h = conv(h, params["c3_w"], params["c3_b"], 1)
    feats = jnp.transpose(h, (0, 3, 1, 2)).reshape(h.shape[0], -1)  # torch Flatten
    f = jax.nn.relu(feats @ params["l_w"].T + params["l_b"])
    g = jax.nn.relu(f @ params["h1_w"].T + params["h1_b"])
    return jnp.tanh(g @ params["h2_w"].T + params["h2_b"])


if __name__ == "__main__":
    key = jax.random.PRNGKey(0)
    pkey, xkey = jax.random.split(key)

    params = init_params(pkey, n_frames=8, features_dim=64)
    prep = prepare_params(params)                   # one-time weight reorg
    x = jax.random.normal(xkey, (2, 8, 84, 84), jnp.float32)  # NCHW, like PyTorch

    fwd = jax.jit(supervised_policy_forward)
    out = fwd(prep, x)
    jax.block_until_ready(out)

    assert out.shape == (2, 3)
    assert bool(jnp.all(jnp.isfinite(out)))
    assert bool(jnp.all(jnp.abs(out) <= 1.0))       # tanh output range

    # Correctness check vs. plain-XLA f32 reference (loose tolerance for the
    # bf16 MXU operands / bf16 inter-layer activations).
    ref = reference_forward(params, x)
    max_err = float(jnp.max(jnp.abs(out - ref)))
    assert max_err < 0.15, f"mismatch vs reference: max abs err {max_err}"

    print("KERNEL_OK")
</pallas_src>

<mosaic_0001>
module attributes {stable_mosaic.version = 11 : i64} {
  func.func @_conv1_kernel(%arg0: i32, %arg1: memref<1x448x128xbf16, #tpu.memory_space<vmem>>, %arg2: memref<128x128xbf16, #tpu.memory_space<vmem>>, %arg3: memref<1x32xf32, #tpu.memory_space<vmem>>, %arg4: memref<1x424x32xbf16, #tpu.memory_space<vmem>>) attributes {dimension_semantics = [#tpu.dimension_semantics<parallel>], iteration_bounds = array<i64: 2>, scalar_prefetch = 0 : i64, scratch_operands = 0 : i64, tpu.core_type = #tpu.core_type<tc>, window_params = [{transform_indices = @transform_0, window_bounds = array<i64: 1, 448, 128>}, {pipeline_mode = #tpu.pipeline_mode<synchronous>, transform_indices = @transform_1, window_bounds = array<i64: 128, 128>}, {pipeline_mode = #tpu.pipeline_mode<synchronous>, transform_indices = @transform_2, window_bounds = array<i64: 1, 32>}, {transform_indices = @transform_3, window_bounds = array<i64: 1, 424, 32>}]} {
    %c0 = arith.constant 0 : index
    %c0_0 = arith.constant 0 : index
    %c0_1 = arith.constant 0 : index
    %0 = vector.load %arg1[%c0, %c0_0, %c0_1] : memref<1x448x128xbf16, #tpu.memory_space<vmem>>, vector<1x448x128xbf16>
    %1 = vector.shape_cast %0 : vector<1x448x128xbf16> to vector<448x128xbf16>
    %c0_2 = arith.constant 0 : index
    %c0_3 = arith.constant 0 : index
    %2 = vector.load %arg2[%c0_2, %c0_3] : memref<128x128xbf16, #tpu.memory_space<vmem>>, vector<128x128xbf16>
    %cst = arith.constant dense<0.000000e+00> : vector<448x128xf32>
    %3 = tpu.matmul %1, %2, %cst {dimension_numbers = #tpu.dot_dimension_numbers<[1], [0], [0], [1], [0, 0, 1, 1], [], []>} : vector<448x128xbf16>, vector<128x128xbf16>, vector<448x128xf32> -> vector<448x128xf32>
    %c0_4 = arith.constant 0 : index
    %c0_5 = arith.constant 0 : index
    %4 = vector.load %arg3[%c0_4, %c0_5] : memref<1x32xf32, #tpu.memory_space<vmem>>, vector<1x32xf32>
    %5 = vector.extract_strided_slice %3 {offsets = [0, 0], sizes = [424, 32], strides = [1, 1]} : vector<448x128xf32> to vector<424x32xf32>
    %6 = vector.extract_strided_slice %3 {offsets = [1, 32], sizes = [424, 32], strides = [1, 1]} : vector<448x128xf32> to vector<424x32xf32>
    %7 = arith.addf %5, %6 : vector<424x32xf32>
    %8 = vector.extract_strided_slice %3 {offsets = [21, 64], sizes = [424, 32], strides = [1, 1]} : vector<448x128xf32> to vector<424x32xf32>
    %9 = arith.addf %7, %8 : vector<424x32xf32>
    %10 = vector.extract_strided_slice %3 {offsets = [22, 96], sizes = [424, 32], strides = [1, 1]} : vector<448x128xf32> to vector<424x32xf32>
    %11 = arith.addf %9, %10 : vector<424x32xf32>
    %12 = vector.broadcast %4 : vector<1x32xf32> to vector<424x32xf32>
    %13 = arith.addf %11, %12 : vector<424x32xf32>
    %cst_6 = arith.constant 0.000000e+00 : f32
    %14 = vector.broadcast %cst_6 : f32 to vector<424x32xf32>
    %15 = arith.maximumf %13, %14 : vector<424x32xf32>
    %16 = arith.truncf %15 : vector<424x32xf32> to vector<424x32xbf16>
    %c0_7 = arith.constant 0 : index
    %c0_8 = arith.constant 0 : index
    %c0_9 = arith.constant 0 : index
    %17 = vector.load %arg4[%c0_7, %c0_8, %c0_9] : memref<1x424x32xbf16, #tpu.memory_space<vmem>>, vector<1x424x32xbf16>
    %18 = vector.shape_cast %17 : vector<1x424x32xbf16> to vector<424x32xbf16>
    %19 = vector.shape_cast %16 : vector<424x32xbf16> to vector<1x424x32xbf16>
    tpu.vector_store %arg4[%c0_7, %c0_8, %c0_9], %19 {strides = array<i32>} : memref<1x424x32xbf16, #tpu.memory_space<vmem>>, vector<1x424x32xbf16>,
    return
  }
  func.func @transform_0(%arg0: i32) -> (i32, i32, i32) {
    %c0_i32 = arith.constant 0 : i32
    %c0_i32_0 = arith.constant 0 : i32
    %c0_i32_1 = arith.constant 0 : i32
    return %arg0, %c0_i32, %c0_i32_0 : i32, i32, i32
  }
  func.func @transform_1(%arg0: i32) -> (i32, i32) {
    %c0_i32 = arith.constant 0 : i32
    %c0_i32_0 = arith.constant 0 : i32
    %c0_i32_1 = arith.constant 0 : i32
    return %c0_i32, %c0_i32_0 : i32, i32
  }
  func.func @transform_2(%arg0: i32) -> (i32, i32) {
    %c0_i32 = arith.constant 0 : i32
    %c0_i32_0 = arith.constant 0 : i32
    %c0_i32_1 = arith.constant 0 : i32
    return %c0_i32, %c0_i32_0 : i32, i32
  }
  func.func @transform_3(%arg0: i32) -> (i32, i32, i32) {
    %c0_i32 = arith.constant 0 : i32
    %c0_i32_0 = arith.constant 0 : i32
    %c0_i32_1 = arith.constant 0 : i32
    return %arg0, %c0_i32, %c0_i32_0 : i32, i32, i32
  }
}

module attributes {stable_mosaic.version = 11 : i64} {
  func.func @_conv23_kernel(%arg0: i32, %arg1: memref<1x112x128xbf16, #tpu.memory_space<vmem>>, %arg2: memref<128x256xbf16, #tpu.memory_space<vmem>>, %arg3: memref<1x64xf32, #tpu.memory_space<vmem>>, %arg4: memref<64x576xbf16, #tpu.memory_space<vmem>>, %arg5: memref<1x64xf32, #tpu.memory_space<vmem>>, %arg6: memref<1x72x64xbf16, #tpu.memory_space<vmem>>) attributes {dimension_semantics = [#tpu.dimension_semantics<parallel>], iteration_bounds = array<i64: 2>, scalar_prefetch = 0 : i64, scratch_operands = 0 : i64, tpu.core_type = #tpu.core_type<tc>, window_params = [{transform_indices = @transform_0, window_bounds = array<i64: 1, 112, 128>}, {pipeline_mode = #tpu.pipeline_mode<synchronous>, transform_indices = @transform_1, window_bounds = array<i64: 128, 256>}, {pipeline_mode = #tpu.pipeline_mode<synchronous>, transform_indices = @transform_2, window_bounds = array<i64: 1, 64>}, {pipeline_mode = #tpu.pipeline_mode<synchronous>, transform_indices = @transform_3, window_bounds = array<i64: 64, 576>}, {pipeline_mode = #tpu.pipeline_mode<synchronous>, transform_indices = @transform_4, window_bounds = array<i64: 1, 64>}, {transform_indices = @transform_5, window_bounds = array<i64: 1, 72, 64>}]} {
    %c0 = arith.constant 0 : index
    %c0_0 = arith.constant 0 : index
    %c0_1 = arith.constant 0 : index
    %0 = vector.load %arg1[%c0, %c0_0, %c0_1] : memref<1x112x128xbf16, #tpu.memory_space<vmem>>, vector<1x112x128xbf16>
    %1 = vector.shape_cast %0 : vector<1x112x128xbf16> to vector<112x128xbf16>
    %c0_2 = arith.constant 0 : index
    %c0_3 = arith.constant 0 : index
    %2 = vector.load %arg2[%c0_2, %c0_3] : memref<128x256xbf16, #tpu.memory_space<vmem>>, vector<128x256xbf16>
    %cst = arith.constant dense<0.000000e+00> : vector<112x256xf32>
    %3 = tpu.matmul %1, %2, %cst {dimension_numbers = #tpu.dot_dimension_numbers<[1], [0], [0], [1], [0, 0, 1, 1], [], []>} : vector<112x128xbf16>, vector<128x256xbf16>, vector<112x256xf32> -> vector<112x256xf32>
    %c0_4 = arith.constant 0 : index
    %c0_5 = arith.constant 0 : index
    %4 = vector.load %arg3[%c0_4, %c0_5] : memref<1x64xf32, #tpu.memory_space<vmem>>, vector<1x64xf32>
    %c0_6 = arith.constant 0 : index
    %c0_7 = arith.constant 0 : index
    %5 = vector.load %arg5[%c0_6, %c0_7] : memref<1x64xf32, #tpu.memory_space<vmem>>, vector<1x64xf32>
    %6 = vector.extract_strided_slice %3 {offsets = [0, 0], sizes = [96, 64], strides = [1, 1]} : vector<112x256xf32> to vector<96x64xf32>
    %7 = vector.extract_strided_slice %3 {offsets = [1, 64], sizes = [96, 64], strides = [1, 1]} : vector<112x256xf32> to vector<96x64xf32>
    %8 = arith.addf %6, %7 : vector<96x64xf32>
    %9 = vector.extract_strided_slice %3 {offsets = [10, 128], sizes = [96, 64], strides = [1, 1]} : vector<112x256xf32> to vector<96x64xf32>
    %10 = arith.addf %8, %9 : vector<96x64xf32>
    %11 = vector.extract_strided_slice %3 {offsets = [11, 192], sizes = [96, 64], strides = [1, 1]} : vector<112x256xf32> to vector<96x64xf32>
    %12 = arith.addf %10, %11 : vector<96x64xf32>
    %13 = vector.broadcast %4 : vector<1x64xf32> to vector<96x64xf32>
    %14 = arith.addf %12, %13 : vector<96x64xf32>
    %cst_8 = arith.constant 0.000000e+00 : f32
    %15 = vector.broadcast %cst_8 : f32 to vector<96x64xf32>
    %16 = arith.maximumf %14, %15 : vector<96x64xf32>
    %17 = arith.truncf %16 : vector<96x64xf32> to vector<96x64xbf16>
    %c0_9 = arith.constant 0 : index
    %c0_10 = arith.constant 0 : index
    %18 = vector.load %arg4[%c0_9, %c0_10] : memref<64x576xbf16, #tpu.memory_space<vmem>>, vector<64x576xbf16>
    %cst_11 = arith.constant dense<0.000000e+00> : vector<96x576xf32>
    %19 = tpu.matmul %17, %18, %cst_11 {dimension_numbers = #tpu.dot_dimension_numbers<[1], [0], [0], [1], [0, 0, 1, 1], [], []>} : vector<96x64xbf16>, vector<64x576xbf16>, vector<96x576xf32> -> vector<96x576xf32>
    %20 = vector.extract_strided_slice %19 {offsets = [0, 0], sizes = [72, 64], strides = [1, 1]} : vector<96x576xf32> to vector<72x64xf32>
    %21 = vector.extract_strided_slice %19 {offsets = [1, 64], sizes = [72, 64], strides = [1, 1]} : vector<96x576xf32> to vector<72x64xf32>
    %22 = arith.addf %20, %21 : vector<72x64xf32>
    %23 = vector.extract_strided_slice %19 {offsets = [2, 128], sizes = [72, 64], strides = [1, 1]} : vector<96x576xf32> to vector<72x64xf32>
    %24 = arith.addf %22, %23 : vector<72x64xf32>
    %25 = vector.extract_strided_slice %19 {offsets = [10, 192], sizes = [72, 64], strides = [1, 1]} : vector<96x576xf32> to vector<72x64xf32>
    %26 = arith.addf %24, %25 : vector<72x64xf32>
    %27 = vector.extract_strided_slice %19 {offsets = [11, 256], sizes = [72, 64], strides = [1, 1]} : vector<96x576xf32> to vector<72x64xf32>
    %28 = arith.addf %26, %27 : vector<72x64xf32>
    %29 = vector.extract_strided_slice %19 {offsets = [12, 320], sizes = [72, 64], strides = [1, 1]} : vector<96x576xf32> to vector<72x64xf32>
    %30 = arith.addf %28, %29 : vector<72x64xf32>
    %31 = vector.extract_strided_slice %19 {offsets = [20, 384], sizes = [72, 64], strides = [1, 1]} : vector<96x576xf32> to vector<72x64xf32>
    %32 = arith.addf %30, %31 : vector<72x64xf32>
    %33 = vector.extract_strided_slice %19 {offsets = [21, 448], sizes = [72, 64], strides = [1, 1]} : vector<96x576xf32> to vector<72x64xf32>
    %34 = arith.addf %32, %33 : vector<72x64xf32>
    %35 = vector.extract_strided_slice %19 {offsets = [22, 512], sizes = [72, 64], strides = [1, 1]} : vector<96x576xf32> to vector<72x64xf32>
    %36 = arith.addf %34, %35 : vector<72x64xf32>
    %37 = vector.broadcast %5 : vector<1x64xf32> to vector<72x64xf32>
    %38 = arith.addf %36, %37 : vector<72x64xf32>
    %cst_12 = arith.constant 0.000000e+00 : f32
    %39 = vector.broadcast %cst_12 : f32 to vector<72x64xf32>
    %40 = arith.maximumf %38, %39 : vector<72x64xf32>
    %41 = arith.truncf %40 : vector<72x64xf32> to vector<72x64xbf16>
    %c0_13 = arith.constant 0 : index
    %c0_14 = arith.constant 0 : index
    %c0_15 = arith.constant 0 : index
    %42 = vector.load %arg6[%c0_13, %c0_14, %c0_15] : memref<1x72x64xbf16, #tpu.memory_space<vmem>>, vector<1x72x64xbf16>
    %43 = vector.shape_cast %42 : vector<1x72x64xbf16> to vector<72x64xbf16>
    %44 = vector.shape_cast %41 : vector<72x64xbf16> to vector<1x72x64xbf16>
    tpu.vector_store %arg6[%c0_13, %c0_14, %c0_15], %44 {strides = array<i32>} : memref<1x72x64xbf16, #tpu.memory_space<vmem>>, vector<1x72x64xbf16>,
    return
  }
  func.func @transform_0(%arg0: i32) -> (i32, i32, i32) {
    %c0_i32 = arith.constant 0 : i32
    %c0_i32_0 = arith.constant 0 : i32
    %c0_i32_1 = arith.constant 0 : i32
    return %arg0, %c0_i32, %c0_i32_0 : i32, i32, i32
  }
  func.func @transform_1(%arg0: i32) -> (i32, i32) {
    %c0_i32 = arith.constant 0 : i32
    %c0_i32_0 = arith.constant 0 : i32
    %c0_i32_1 = arith.constant 0 : i32
    return %c0_i32, %c0_i32_0 : i32, i32
  }
  func.func @transform_2(%arg0: i32) -> (i32, i32) {
    %c0_i32 = arith.constant 0 : i32
    %c0_i32_0 = arith.constant 0 : i32
    %c0_i32_1 = arith.constant 0 : i32
    return %c0_i32, %c0_i32_0 : i32, i32
  }
  func.func @transform_3(%arg0: i32) -> (i32, i32) {
    %c0_i32 = arith.constant 0 : i32
    %c0_i32_0 = arith.constant 0 : i32
    %c0_i32_1 = arith.constant 0 : i32
    return %c0_i32, %c0_i32_0 : i32, i32
  }
  func.func @transform_4(%arg0: i32) -> (i32, i32) {
    %c0_i32 = arith.constant 0 : i32
    %c0_i32_0 = arith.constant 0 : i32
    %c0_i32_1 = arith.constant 0 : i32
    return %c0_i32, %c0_i32_0 : i32, i32
  }
  func.func @transform_5(%arg0: i32) -> (i32, i32, i32) {
    %c0_i32 = arith.constant 0 : i32
    %c0_i32_0 = arith.constant 0 : i32
    %c0_i32_1 = arith.constant 0 : i32
    return %arg0, %c0_i32, %c0_i32_0 : i32, i32, i32
  }
}

module attributes {stable_mosaic.version = 11 : i64} {
  func.func @_head_kernel(%arg0: i32, %arg1: memref<8x4608xbf16, #tpu.memory_space<vmem>>, %arg2: memref<4608x64xbf16, #tpu.memory_space<vmem>>, %arg3: memref<1x64xf32, #tpu.memory_space<vmem>>, %arg4: memref<64x64xbf16, #tpu.memory_space<vmem>>, %arg5: memref<1x64xf32, #tpu.memory_space<vmem>>, %arg6: memref<64x128xbf16, #tpu.memory_space<vmem>>, %arg7: memref<1x128xf32, #tpu.memory_space<vmem>>, %arg8: memref<8x128xf32, #tpu.memory_space<vmem>>) attributes {dimension_semantics = [#tpu.dimension_semantics<parallel>], iteration_bounds = array<i64: 1>, scalar_prefetch = 0 : i64, scratch_operands = 0 : i64, tpu.core_type = #tpu.core_type<tc>, window_params = [{transform_indices = @transform_0, window_bounds = array<i64: 8, 4608>}, {pipeline_mode = #tpu.pipeline_mode<synchronous>, transform_indices = @transform_1, window_bounds = array<i64: 4608, 64>}, {pipeline_mode = #tpu.pipeline_mode<synchronous>, transform_indices = @transform_2, window_bounds = array<i64: 1, 64>}, {pipeline_mode = #tpu.pipeline_mode<synchronous>, transform_indices = @transform_3, window_bounds = array<i64: 64, 64>}, {pipeline_mode = #tpu.pipeline_mode<synchronous>, transform_indices = @transform_4, window_bounds = array<i64: 1, 64>}, {pipeline_mode = #tpu.pipeline_mode<synchronous>, transform_indices = @transform_5, window_bounds = array<i64: 64, 128>}, {pipeline_mode = #tpu.pipeline_mode<synchronous>, transform_indices = @transform_6, window_bounds = array<i64: 1, 128>}, {transform_indices = @transform_7, window_bounds = array<i64: 8, 128>}]} {
    %c0 = arith.constant 0 : index
    %c0_0 = arith.constant 0 : index
    %0 = vector.load %arg1[%c0, %c0_0] : memref<8x4608xbf16, #tpu.memory_space<vmem>>, vector<8x4608xbf16>
    %c0_1 = arith.constant 0 : index
    %c0_2 = arith.constant 0 : index
    %1 = vector.load %arg2[%c0_1, %c0_2] : memref<4608x64xbf16, #tpu.memory_space<vmem>>, vector<4608x64xbf16>
    %cst = arith.constant dense<0.000000e+00> : vector<8x64xf32>
    %2 = tpu.matmul %0, %1, %cst {dimension_numbers = #tpu.dot_dimension_numbers<[1], [0], [0], [1], [0, 0, 1, 1], [], []>} : vector<8x4608xbf16>, vector<4608x64xbf16>, vector<8x64xf32> -> vector<8x64xf32>
    %c0_3 = arith.constant 0 : index
    %c0_4 = arith.constant 0 : index
    %3 = vector.load %arg3[%c0_3, %c0_4] : memref<1x64xf32, #tpu.memory_space<vmem>>, vector<1x64xf32>
    %4 = vector.broadcast %3 : vector<1x64xf32> to vector<8x64xf32>
    %5 = arith.addf %2, %4 : vector<8x64xf32>
    %cst_5 = arith.constant 0.000000e+00 : f32
    %6 = vector.broadcast %cst_5 : f32 to vector<8x64xf32>
    %7 = arith.maximumf %5, %6 : vector<8x64xf32>
    %8 = arith.truncf %7 : vector<8x64xf32> to vector<8x64xbf16>
    %c0_6 = arith.constant 0 : index
    %c0_7 = arith.constant 0 : index
    %9 = vector.load %arg4[%c0_6, %c0_7] : memref<64x64xbf16, #tpu.memory_space<vmem>>, vector<64x64xbf16>
    %cst_8 = arith.constant dense<0.000000e+00> : vector<8x64xf32>
    %10 = tpu.matmul %8, %9, %cst_8 {dimension_numbers = #tpu.dot_dimension_numbers<[1], [0], [0], [1], [0, 0, 1, 1], [], []>} : vector<8x64xbf16>, vector<64x64xbf16>, vector<8x64xf32> -> vector<8x64xf32>
    %c0_9 = arith.constant 0 : index
    %c0_10 = arith.constant 0 : index
    %11 = vector.load %arg5[%c0_9, %c0_10] : memref<1x64xf32, #tpu.memory_space<vmem>>, vector<1x64xf32>
    %12 = vector.broadcast %11 : vector<1x64xf32> to vector<8x64xf32>
    %13 = arith.addf %10, %12 : vector<8x64xf32>
    %cst_11 = arith.constant 0.000000e+00 : f32
    %14 = vector.broadcast %cst_11 : f32 to vector<8x64xf32>
    %15 = arith.maximumf %13, %14 : vector<8x64xf32>
    %16 = arith.truncf %15 : vector<8x64xf32> to vector<8x64xbf16>
    %c0_12 = arith.constant 0 : index
    %c0_13 = arith.constant 0 : index
    %17 = vector.load %arg6[%c0_12, %c0_13] : memref<64x128xbf16, #tpu.memory_space<vmem>>, vector<64x128xbf16>
    %cst_14 = arith.constant dense<0.000000e+00> : vector<8x128xf32>
    %18 = tpu.matmul %16, %17, %cst_14 {dimension_numbers = #tpu.dot_dimension_numbers<[1], [0], [0], [1], [0, 0, 1, 1], [], []>} : vector<8x64xbf16>, vector<64x128xbf16>, vector<8x128xf32> -> vector<8x128xf32>
    %c0_15 = arith.constant 0 : index
    %c0_16 = arith.constant 0 : index
    %19 = vector.load %arg7[%c0_15, %c0_16] : memref<1x128xf32, #tpu.memory_space<vmem>>, vector<1x128xf32>
    %20 = vector.broadcast %19 : vector<1x128xf32> to vector<8x128xf32>
    %21 = arith.addf %18, %20 : vector<8x128xf32>
    %22 = math.tanh %21 : vector<8x128xf32>
    %c0_17 = arith.constant 0 : index
    %c0_18 = arith.constant 0 : index
    %23 = vector.load %arg8[%c0_17, %c0_18] : memref<8x128xf32, #tpu.memory_space<vmem>>, vector<8x128xf32>
    tpu.vector_store %arg8[%c0_17, %c0_18], %22 {strides = array<i32>} : memref<8x128xf32, #tpu.memory_space<vmem>>, vector<8x128xf32>,
    return
  }
  func.func @transform_0(%arg0: i32) -> (i32, i32) {
    %c0_i32 = arith.constant 0 : i32
    %c0_i32_0 = arith.constant 0 : i32
    return %arg0, %c0_i32 : i32, i32
  }
  func.func @transform_1(%arg0: i32) -> (i32, i32) {
    %c0_i32 = arith.constant 0 : i32
    %c0_i32_0 = arith.constant 0 : i32
    %c0_i32_1 = arith.constant 0 : i32
    return %c0_i32, %c0_i32_0 : i32, i32
  }
  func.func @transform_2(%arg0: i32) -> (i32, i32) {
    %c0_i32 = arith.constant 0 : i32
    %c0_i32_0 = arith.constant 0 : i32
    %c0_i32_1 = arith.constant 0 : i32
    return %c0_i32, %c0_i32_0 : i32, i32
  }
  func.func @transform_3(%arg0: i32) -> (i32, i32) {
    %c0_i32 = arith.constant 0 : i32
    %c0_i32_0 = arith.constant 0 : i32
    %c0_i32_1 = arith.constant 0 : i32
    return %c0_i32, %c0_i32_0 : i32, i32
  }
  func.func @transform_4(%arg0: i32) -> (i32, i32) {
    %c0_i32 = arith.constant 0 : i32
    %c0_i32_0 = arith.constant 0 : i32
    %c0_i32_1 = arith.constant 0 : i32
    return %c0_i32, %c0_i32_0 : i32, i32
  }
  func.func @transform_5(%arg0: i32) -> (i32, i32) {
    %c0_i32 = arith.constant 0 : i32
    %c0_i32_0 = arith.constant 0 : i32
    %c0_i32_1 = arith.constant 0 : i32
    return %c0_i32, %c0_i32_0 : i32, i32
  }
  func.func @transform_6(%arg0: i32) -> (i32, i32) {
    %c0_i32 = arith.constant 0 : i32
    %c0_i32_0 = arith.constant 0 : i32
    %c0_i32_1 = arith.constant 0 : i32
    return %c0_i32, %c0_i32_0 : i32, i32
  }
  func.func @transform_7(%arg0: i32) -> (i32, i32) {
    %c0_i32 = arith.constant 0 : i32
    %c0_i32_0 = arith.constant 0 : i32
    return %arg0, %c0_i32 : i32, i32
  }
}

</mosaic_0001>

<llo_original>
// kernel: supervised_policy_forward.3
$region0: #{supervised_policy_forward.3}
  #allocation0 [shape = 'u32[]', space=smem, size = 0x4, offset = 0x4, fixed_abs, tag = 'smem constant byte address 0x4 - core index']
  #allocation1 [shape = 'u32[144,128]{1,0:T(1,128)}', space=vmem, size = 0x12000, scoped, tag = 'internal scratch']
  %s0 = inlined_call_operand.vmem [shape: bf16[2,448,128], index: 0, kind: input, shape index: {}]
  %s1 = inlined_call_operand.vmem [shape: bf16[128,128], index: 1, kind: input, shape index: {}]
  %s2 = inlined_call_operand.vmem [shape: f32[1,32], index: 2, kind: input, shape index: {}]
  %s3 = inlined_call_operand.vmem [shape: bf16[2,424,32], index: 3, kind: output, shape index: {}]
  %s4 = sld [smem:[#allocation0]]
  $region45: #{supervised_policy_forward.3} parent=0
    _
  %s6 = ssub.s32 1, %s4
  %s7 = scalar_select 0, %s6, %s4
  loop: start=0, step=1, limit=4
  $region2: #{supervised_policy_forward.3} parent=0 // loop_pre_header
    _
  $region3: #{supervised_policy_forward.3} parent=0 // loop_header
    %s9 = sphi 0, %s13
    %p10 = scmp.ge.s32.totalorder %s9, 4
    %s19 = sphi 0, %s21
    %s22 = sphi 0, %s19
    %s23 = sphi 0, %s22
    %s39 = sphi 0, %s23
    %s43 = sphi 0, %s43
    %s45 = sphi 0, %s43
    %s46 = sphi 0, %s45
    %s60 = sphi 0, %s46
    %s64 = sphi 0, %s64
    %s66 = sphi 0, %s64
    %s67 = sphi 0, %s66
    %s81 = sphi 0, %s67
    %s87 = sphi 0, %s89
    %s90 = sphi 0, %s87
    %s91 = sphi 0, %s90
    %s107 = sphi 0, %s91
  $region4: #{supervised_policy_forward.3} parent=0 // loop_header_branch
    %12 = sbr.rel (%p10) target = $region8
  $region5: #{supervised_policy_forward.3} parent=0 // loop_body
    %s14 = ssub.s32 %s9, 1
    %s15 = ssub.s32 %s9, 2
    %s16 = sadd.s32 %s9, 1
    %s17 = ssub.s32 %s9, %s16
    %p18 = scmp.eq.s32.totalorder %s17, 0
    %s20 = sadd.s32 %s19, 1
    %s21 = scalar_select %p18, %s19, %s20
    %p24 = pneg %p18
    %p25 = scmp.eq.s32.totalorder %s9, 1
    %p26 = por %p24, %p25
    %p27 = scmp.ne.s32.totalorder %s19, %s22
    %p28 = scmp.eq.s32.totalorder %s9, 0
    %p29 = por %p27, %p28
    %p30 = scmp.ne.s32.totalorder %s19, %s22
    %p31 = scmp.eq.s32.totalorder %s14, 1
    %p32 = por %p30, %p31
    %p33 = scmp.ne.s32.totalorder %s22, %s23
    %p34 = scmp.eq.s32.totalorder %s14, 0
    %p35 = por %p33, %p34
    %p36 = scmp.ne.s32.totalorder %s22, %s23
    %p37 = scmp.eq.s32.totalorder %s15, 1
    %p38 = por %p36, %p37
    %p40 = scmp.ne.s32.totalorder %s23, %s39
    %p41 = scmp.eq.s32.totalorder %s15, 0
    %p42 = por %p40, %p41
    %s44 = sadd.s32 %s43, 1
    %p47 = scmp.eq.s32.totalorder %s9, 1
    %p48 = scmp.ne.s32.totalorder %s43, %s45
    %p49 = scmp.eq.s32.totalorder %s9, 0
    %p50 = por %p48, %p49
    %p51 = scmp.ne.s32.totalorder %s43, %s45
    %p52 = scmp.eq.s32.totalorder %s14, 1
    %p53 = por %p51, %p52
    %p54 = scmp.ne.s32.totalorder %s45, %s46
    %p55 = scmp.eq.s32.totalorder %s14, 0
    %p56 = por %p54, %p55
    %p57 = scmp.ne.s32.totalorder %s45, %s46
    %p58 = scmp.eq.s32.totalorder %s15, 1
    %p59 = por %p57, %p58
    %p61 = scmp.ne.s32.totalorder %s46, %s60
    %p62 = scmp.eq.s32.totalorder %s15, 0
    %p63 = por %p61, %p62
    %s65 = sadd.s32 %s64, 1
    %p68 = scmp.eq.s32.totalorder %s9, 1
    %p69 = scmp.ne.s32.totalorder %s64, %s66
    %p70 = scmp.eq.s32.totalorder %s9, 0
    %p71 = por %p69, %p70
    %p72 = scmp.ne.s32.totalorder %s64, %s66
    %p73 = scmp.eq.s32.totalorder %s14, 1
    %p74 = por %p72, %p73
    %p75 = scmp.ne.s32.totalorder %s66, %s67
    %p76 = scmp.eq.s32.totalorder %s14, 0
    %p77 = por %p75, %p76
    %p78 = scmp.ne.s32.totalorder %s66, %s67
    %p79 = scmp.eq.s32.totalorder %s15, 1
    %p80 = por %p78, %p79
    %p82 = scmp.ne.s32.totalorder %s67, %s81
    %p83 = scmp.eq.s32.totalorder %s15, 0
    %p84 = por %p82, %p83
    %s85 = ssub.s32 %s9, %s16
    %p86 = scmp.eq.s32.totalorder %s85, 0
    %s88 = sadd.s32 %s87, 1
    %s89 = scalar_select %p86, %s87, %s88
    %p92 = pneg %p86
    %p93 = scmp.eq.s32.totalorder %s9, 1
    %p94 = por %p92, %p93
    %p95 = scmp.ne.s32.totalorder %s87, %s90
    %p96 = scmp.eq.s32.totalorder %s9, 0
    %p97 = por %p95, %p96
    %p98 = scmp.ne.s32.totalorder %s87, %s90
    %p99 = scmp.eq.s32.totalorder %s14, 1
    %p100 = por %p98, %p99
    %p101 = scmp.ne.s32.totalorder %s90, %s91
    %p102 = scmp.eq.s32.totalorder %s14, 0
    %p103 = por %p101, %p102
    %p104 = scmp.ne.s32.totalorder %s90, %s91
    %p105 = scmp.eq.s32.totalorder %s15, 1
    %p106 = por %p104, %p105
    %p108 = scmp.ne.s32.totalorder %s91, %s107
    %p109 = scmp.eq.s32.totalorder %s15, 0
    %p110 = por %p108, %p109
    %p111 = scmp.le.s32.totalorder 1, %s9
    %p112 = scmp.lt.s32.totalorder %s9, 3
    %p113 = pnand %p111, %p112
    %p114 = pneg %p113
    // Predicated region
    $region9: #{supervised_policy_forward.3} parent=5 // pred_check
      _
    $region10: #{supervised_policy_forward.3} parent=5 // pred_check_branch
      %116 = sbr.rel (%p113) target = $region12
    $region11: #{supervised_policy_forward.3} parent=5 // pred_region
      %s117 = ssub.s32 %s9, 1
      // Predicated region
      $region13: #{supervised_policy_forward.3} parent=11 // pred_check
        %p118 = pneg %p56
      $region14: #{supervised_policy_forward.3} parent=11 // pred_check_branch
        %120 = sbr.rel (%p118) target = $region16
      $region15: #{supervised_policy_forward.3} parent=11 // pred_region
        _
      $region16: #{supervised_policy_forward.3} parent=11 // pred_fallthru
        _
      // Predicated region
      $region17: #{supervised_policy_forward.3} parent=11 // pred_check
        %p121 = pneg %p77
      $region18: #{supervised_policy_forward.3} parent=11 // pred_check_branch
        %123 = sbr.rel (%p121) target = $region20
      $region19: #{supervised_policy_forward.3} parent=11 // pred_region
        _
      $region20: #{supervised_policy_forward.3} parent=11 // pred_fallthru
        _
    $region12: #{supervised_policy_forward.3} parent=5 // pred_fallthru
      _
    %p124 = scmp.lt.s32.totalorder %s9, 2
    // Predicated region
    $region21: #{supervised_policy_forward.3} parent=5 // pred_check
      %p125 = pneg %p124
    $region22: #{supervised_policy_forward.3} parent=5 // pred_check_branch
      %127 = sbr.rel (%p125) target = $region24
    $region23: #{supervised_policy_forward.3} parent=5 // pred_region
      // Predicated region
      $region25: #{supervised_policy_forward.3} parent=23 // pred_check
        %p128 = pneg %p29
      $region26: #{supervised_policy_forward.3} parent=23 // pred_check_branch
        %130 = sbr.rel (%p128) target = $region28
      $region27: #{supervised_policy_forward.3} parent=23 // pred_region
        %p131 = scmp.lt.s32.totalorder %s9, 1
        %s132 = scalar_select %p131, %s9, 1
        %s133 = smul.addr %s132, 56
        %s134 = smul.addr %s133, 4
        %s135 = scalar_lea.vmem %s0, %s134
      $region28: #{supervised_policy_forward.3} parent=23 // pred_fallthru
        _
    $region24: #{supervised_policy_forward.3} parent=5 // pred_fallthru
      _
    %p136 = scmp.le.s32.totalorder 1, %s9
    %p137 = scmp.lt.s32.totalorder %s9, 3
    %p138 = pnand %p136, %p137
    %p139 = pneg %p138
    // Predicated region
    $region29: #{supervised_policy_forward.3} parent=5 // pred_check
      _
    $region30: #{supervised_policy_forward.3} parent=5 // pred_check_branch
      %141 = sbr.rel (%p138) target = $region32
    $region31: #{supervised_policy_forward.3} parent=5 // pred_region
      %s142 = ssub.s32 %s9, 1
      %p143 = scmp.lt.s32.totalorder %s14, 1
      %s144 = scalar_select %p143, %s14, 1
      %s145 = smul.addr %s144, 56
      %s146 = smul.addr %s145, 4
      %s147 = scalar_lea.vmem %s0, %s146
      %p148 = pneg %p35
      %p149 = pneg %p32
      %p150 = pneg %p56
      %p151 = pneg %p53
      %p152 = pneg %p77
      %p153 = pneg %p74
      %p154 = pneg %p103
      %p155 = pneg %p100
      %p156 = scmp.lt.s32.totalorder %s14, 1
      %s157 = scalar_select %p156, %s14, 1
      %s158 = smul.addr %s157, 53
      %s159 = smul.addr %s158, 4
      %s160 = scalar_lea.vmem %s3, %s159
      %p161 = scmp.lt.s32.totalorder %s14, 1
      %s162 = scalar_select %p161, %s14, 1
      %s163 = smul.addr %s162, 56
      %s164 = smul.addr %s163, 4
      %s165 = scalar_lea.vmem %s0, %s164
      %p166 = scmp.lt.s32.totalorder %s14, 1
      %s167 = scalar_select %p166, %s14, 1
      %s168 = smul.addr %s167, 53
      %s169 = smul.addr %s168, 4
      %s170 = scalar_lea.vmem %s3, %s169
      %v172 = vld [vmem:[%s165] sm:$0xf]
      %v173 = vld [vmem:[%s165 + $0x4] sm:$0xf]
      %v174 = vld [vmem:[%s165 + $0x8] sm:$0xf]
      %v175 = vld [vmem:[%s165 + $0xc] sm:$0xf]
      %v176 = vld [vmem:[%s165 + $0x10] sm:$0xf]
      %v177 = vld [vmem:[%s165 + $0x14] sm:$0xf]
      %v178 = vld [vmem:[%s165 + $0x18] sm:$0xf]
      %v179 = vld [vmem:[%s165 + $0x1c] sm:$0xf]
      %v180 = vld [vmem:[%s165 + $0x20] sm:$0xf]
      %v181 = vld [vmem:[%s165 + $0x24] sm:$0xf]
      %v182 = vld [vmem:[%s165 + $0x28] sm:$0xf]
      %v183 = vld [vmem:[%s165 + $0x2c] sm:$0xf]
      %v184 = vld [vmem:[%s165 + $0x30] sm:$0xf]
      %v185 = vld [vmem:[%s165 + $0x34] sm:$0xf]
      %v186 = vld [vmem:[%s165 + $0x38] sm:$0xf]
      %v187 = vld [vmem:[%s165 + $0x3c] sm:$0xf]
      %v188 = vld [vmem:[%s165 + $0x40] sm:$0xf]
      %v189 = vld [vmem:[%s165 + $0x44] sm:$0xf]
      %v190 = vld [vmem:[%s165 + $0x48] sm:$0xf]
      %v191 = vld [vmem:[%s165 + $0x4c] sm:$0xf]
      %v192 = vld [vmem:[%s165 + $0x50] sm:$0xf]
      %v193 = vld [vmem:[%s165 + $0x54] sm:$0xf]
      %v194 = vld [vmem:[%s165 + $0x58] sm:$0xf]
      %v195 = vld [vmem:[%s165 + $0x5c] sm:$0xf]
      %v196 = vld [vmem:[%s165 + $0x60] sm:$0xf]
      %v197 = vld [vmem:[%s165 + $0x64] sm:$0xf]
      %v198 = vld [vmem:[%s165 + $0x68] sm:$0xf]
      %v199 = vld [vmem:[%s165 + $0x6c] sm:$0xf]
      %v200 = vld [vmem:[%s165 + $0x70] sm:$0xf]
      %v201 = vld [vmem:[%s165 + $0x74] sm:$0xf]
      %v202 = vld [vmem:[%s165 + $0x78] sm:$0xf]
      %v203 = vld [vmem:[%s165 + $0x7c] sm:$0xf]
      %v204 = vld [vmem:[%s165 + $0x80] sm:$0xf]
      %v205 = vld [vmem:[%s165 + $0x84] sm:$0xf]
      %v206 = vld [vmem:[%s165 + $0x88] sm:$0xf]
      %v207 = vld [vmem:[%s165 + $0x8c] sm:$0xf]
      %v208 = vld [vmem:[%s165 + $0x90] sm:$0xf]
      %v209 = vld [vmem:[%s165 + $0x94] sm:$0xf]
      %v210 = vld [vmem:[%s165 + $0x98] sm:$0xf]
      %v211 = vld [vmem:[%s165 + $0x9c] sm:$0xf]
      %v212 = vld [vmem:[%s165 + $0xa0] sm:$0xf]
      %v213 = vld [vmem:[%s165 + $0xa4] sm:$0xf]
      %v214 = vld [vmem:[%s165 + $0xa8] sm:$0xf]
      %v215 = vld [vmem:[%s165 + $0xac] sm:$0xf]
      %v216 = vld [vmem:[%s165 + $0xb0] sm:$0xf]
      %v217 = vld [vmem:[%s165 + $0xb4] sm:$0xf]
      %v218 = vld [vmem:[%s165 + $0xb8] sm:$0xf]
      %v219 = vld [vmem:[%s165 + $0xbc] sm:$0xf]
      %v220 = vld [vmem:[%s165 + $0xc0] sm:$0xf]
      %v221 = vld [vmem:[%s165 + $0xc4] sm:$0xf]
      %v222 = vld [vmem:[%s165 + $0xc8] sm:$0xf]
      %v223 = vld [vmem:[%s165 + $0xcc] sm:$0xf]
      %v224 = vld [vmem:[%s165 + $0xd0] sm:$0xf]
      %v225 = vld [vmem:[%s165 + $0xd4] sm:$0xf]
      %v226 = vld [vmem:[%s165 + $0xd8] sm:$0xf]
      %v227 = vld [vmem:[%s165 + $0xdc] sm:$0xf]
      %v228 = vld [vmem:[%s1] sm:$0xf]
      %v229 = vld [vmem:[%s1 + $0x4] sm:$0xf]
      %v230 = vld [vmem:[%s1 + $0x8] sm:$0xf]
      %v231 = vld [vmem:[%s1 + $0xc] sm:$0xf]
      %v232 = vld [vmem:[%s1 + $0x10] sm:$0xf]
      %v233 = vld [vmem:[%s1 + $0x14] sm:$0xf]
      %v234 = vld [vmem:[%s1 + $0x18] sm:$0xf]
      %v235 = vld [vmem:[%s1 + $0x1c] sm:$0xf]
      %v236 = vld [vmem:[%s1 + $0x20] sm:$0xf]
      %v237 = vld [vmem:[%s1 + $0x24] sm:$0xf]
      %v238 = vld [vmem:[%s1 + $0x28] sm:$0xf]
      %v239 = vld [vmem:[%s1 + $0x2c] sm:$0xf]
      %v240 = vld [vmem:[%s1 + $0x30] sm:$0xf]
      %v241 = vld [vmem:[%s1 + $0x34] sm:$0xf]
      %v242 = vld [vmem:[%s1 + $0x38] sm:$0xf]
      %v243 = vld [vmem:[%s1 + $0x3c] sm:$0xf]
      %v300 = vunpack.c.l.b16 %v172
      %v301 = vunpack.c.l.b16 %v173
      %v302 = vunpack.c.l.b16 %v174
      %v303 = vunpack.c.l.b16 %v175
      %v304 = vunpack.c.l.b16 %v176
      %v305 = vunpack.c.l.b16 %v177
      %v306 = vunpack.c.l.b16 %v178
      %v307 = vunpack.c.l.b16 %v179
      %v308 = vunpack.c.l.b16 %v180
      %v309 = vunpack.c.l.b16 %v181
      %v310 = vunpack.c.l.b16 %v182
      %v311 = vunpack.c.l.b16 %v183
      %v312 = vunpack.c.l.b16 %v184
      %v313 = vunpack.c.l.b16 %v185
      %v314 = vunpack.c.l.b16 %v186
      %v315 = vunpack.c.l.b16 %v187
      %v316 = vunpack.c.l.b16 %v188
      %v317 = vunpack.c.l.b16 %v189
      %v318 = vunpack.c.l.b16 %v190
      %v319 = vunpack.c.l.b16 %v191
      %v320 = vunpack.c.l.b16 %v192
      %v321 = vunpack.c.l.b16 %v193
      %v322 = vunpack.c.l.b16 %v194
      %v323 = vunpack.c.l.b16 %v195
      %v324 = vunpack.c.l.b16 %v196
      %v325 = vunpack.c.l.b16 %v197
      %v326 = vunpack.c.l.b16 %v198
      %v327 = vunpack.c.l.b16 %v199
      %v328 = vunpack.c.l.b16 %v200
      %v329 = vunpack.c.l.b16 %v201
      %v330 = vunpack.c.l.b16 %v202
      %v331 = vunpack.c.l.b16 %v203
      %v332 = vunpack.c.l.b16 %v204
      %v333 = vunpack.c.l.b16 %v205
      %v334 = vunpack.c.l.b16 %v206
      %v335 = vunpack.c.l.b16 %v207
      %v336 = vunpack.c.l.b16 %v208
      %v337 = vunpack.c.l.b16 %v209
      %v338 = vunpack.c.l.b16 %v210
      %v339 = vunpack.c.l.b16 %v211
      %v340 = vunpack.c.l.b16 %v212
      %v341 = vunpack.c.l.b16 %v213
      %v342 = vunpack.c.l.b16 %v214
      %v343 = vunpack.c.l.b16 %v215
      %v344 = vunpack.c.l.b16 %v216
      %v345 = vunpack.c.l.b16 %v217
      %v346 = vunpack.c.l.b16 %v218
      %v347 = vunpack.c.l.b16 %v219
      %v348 = vunpack.c.l.b16 %v220
      %v349 = vunpack.c.l.b16 %v221
      %v350 = vunpack.c.l.b16 %v222
      %v351 = vunpack.c.l.b16 %v223
      %v352 = vunpack.c.l.b16 %v224
      %v353 = vunpack.c.l.b16 %v225
      %v354 = vunpack.c.l.b16 %v226
      %v355 = vunpack.c.l.b16 %v227
      %v356 = vpack.c.b16 %v301, %v300
      %v357 = vpack.c.b16 %v303, %v302
      %v358 = vpack.c.b16 %v305, %v304
      %v359 = vpack.c.b16 %v307, %v306
      %v360 = vpack.c.b16 %v309, %v308
      %v361 = vpack.c.b16 %v311, %v310
      %v362 = vpack.c.b16 %v313, %v312
      %v363 = vpack.c.b16 %v315, %v314
      %v364 = vpack.c.b16 %v317, %v316
      %v365 = vpack.c.b16 %v319, %v318
      %v366 = vpack.c.b16 %v321, %v320
      %v367 = vpack.c.b16 %v323, %v322
      %v368 = vpack.c.b16 %v325, %v324
      %v369 = vpack.c.b16 %v327, %v326
      %v370 = vpack.c.b16 %v329, %v328
      %v371 = vpack.c.b16 %v331, %v330
      %v372 = vpack.c.b16 %v333, %v332
      %v373 = vpack.c.b16 %v335, %v334
      %v374 = vpack.c.b16 %v337, %v336
      %v375 = vpack.c.b16 %v339, %v338
      %v376 = vpack.c.b16 %v341, %v340
      %v377 = vpack.c.b16 %v343, %v342
      %v378 = vpack.c.b16 %v345, %v344
      %v379 = vpack.c.b16 %v347, %v346
      %v380 = vpack.c.b16 %v349, %v348
      %v381 = vpack.c.b16 %v351, %v350
      %v382 = vpack.c.b16 %v353, %v352
      %v383 = vpack.c.b16 %v355, %v354
      %v428 = vunpack.c.l.b16 %v228
      %v429 = vunpack.c.l.b16 %v229
      %v430 = vunpack.c.l.b16 %v230
      %v431 = vunpack.c.l.b16 %v231
      %v432 = vunpack.c.l.b16 %v232
      %v433 = vunpack.c.l.b16 %v233
      %v434 = vunpack.c.l.b16 %v234
      %v435 = vunpack.c.l.b16 %v235
      %v436 = vunpack.c.l.b16 %v236
      %v437 = vunpack.c.l.b16 %v237
      %v438 = vunpack.c.l.b16 %v238
      %v439 = vunpack.c.l.b16 %v239
      %v440 = vunpack.c.l.b16 %v240
      %v441 = vunpack.c.l.b16 %v241
      %v442 = vunpack.c.l.b16 %v242
      %v443 = vunpack.c.l.b16 %v243
      %v444 = vpack.c.b16 %v429, %v428
      %v445 = vpack.c.b16 %v431, %v430
      %v446 = vpack.c.b16 %v433, %v432
      %v447 = vpack.c.b16 %v435, %v434
      %v448 = vpack.c.b16 %v437, %v436
      %v449 = vpack.c.b16 %v439, %v438
      %v450 = vpack.c.b16 %v441, %v440
      %v451 = vpack.c.b16 %v443, %v442
      %460 = vmatprep.subr.bf16.mxu0 0
      %461 = vmatpush1.bf16.msra.mxu0 %v444
      %462 = vmatprep.subr.bf16.mxu0 0
      %463 = vmatpush1.bf16.msra.mxu0 %v445
      %464 = vmatprep.subr.bf16.mxu0 0
      %465 = vmatpush1.bf16.msra.mxu0 %v446
      %466 = vmatprep.subr.bf16.mxu0 0
      %467 = vmatpush1.bf16.msra.mxu0 %v447
      %468 = vmatprep.subr.bf16.mxu0 0
      %469 = vmatpush1.bf16.msra.mxu0 %v448
      %470 = vmatprep.subr.bf16.mxu0 0
      %471 = vmatpush1.bf16.msra.mxu0 %v449
      %472 = vmatprep.subr.bf16.mxu0 0
      %473 = vmatpush1.bf16.msra.mxu0 %v450
      %474 = vmatprep.subr.bf16.mxu0 0
      %475 = vmatpush1.bf16.msra.mxu0 %v451
      %476 = vmatprep.subr.bf16.mxu0 0
      %477 = vmatpush1.bf16.msra.mxu0 0
      %478 = vmatprep.subr.bf16.mxu0 0
      %479 = vmatpush1.bf16.msra.mxu0 0
      %480 = vmatprep.subr.bf16.mxu0 0
      %481 = vmatpush1.bf16.msra.mxu0 0
      %482 = vmatprep.subr.bf16.mxu0 0
      %483 = vmatpush1.bf16.msra.mxu0 0
      %484 = vmatprep.subr.bf16.mxu0 0
      %485 = vmatpush1.bf16.msra.mxu0 0
      %486 = vmatprep.subr.bf16.mxu0 0
      %487 = vmatpush1.bf16.msra.mxu0 0
      %488 = vmatprep.subr.bf16.mxu0 0
      %489 = vmatpush1.bf16.msra.mxu0 0
      %490 = vmatprep.subr.bf16.mxu0 0
      %491 = vmatpush1.bf16.msra.mxu0 0
      %492 = vmatprep.mubr.bf16.mxu0 0
      %493 = vmatmul.mubr.bf16.gmra.mrb[0].mxu0 %v356
      %v494 = vpop.f32.mrb[0].mxu0
      %v495 = vadd.f32 0.0, %v494
      %v496 = vpop.f32.mrb[0].mxu0
      %v497 = vpop.f32.mrb[0].mxu0
      %v498 = vadd.f32 0.0, %v497
      %v499 = vpop.f32.mrb[0].mxu0
      %500 = vmatprep.mubr.bf16.mxu0 0
      %501 = vmatmul.mubr.bf16.gmra.mrb[0].mxu0 %v357
      %v502 = vpop.f32.mrb[0].mxu0
      %v503 = vadd.f32 0.0, %v502
      %v504 = vpop.f32.mrb[0].mxu0
      %v505 = vpop.f32.mrb[0].mxu0
      %v506 = vadd.f32 0.0, %v505
      %v507 = vpop.f32.mrb[0].mxu0
      %508 = vmatprep.mubr.bf16.mxu0 0
      %509 = vmatmul.mubr.bf16.gmra.mrb[0].mxu0 %v358
      %v510 = vpop.f32.mrb[0].mxu0
      %v511 = vadd.f32 0.0, %v510
      %v512 = vpop.f32.mrb[0].mxu0
      %v513 = vpop.f32.mrb[0].mxu0
      %v514 = vadd.f32 0.0, %v513
      %v515 = vpop.f32.mrb[0].mxu0
      %516 = vmatprep.mubr.bf16.mxu0 0
      %517 = vmatmul.mubr.bf16.gmra.mrb[0].mxu0 %v359
      %v518 = vpop.f32.mrb[0].mxu0
      %v519 = vadd.f32 0.0, %v518
      %v520 = vpop.f32.mrb[0].mxu0
      %v521 = vpop.f32.mrb[0].mxu0
      %v522 = vadd.f32 0.0, %v521
      %v523 = vpop.f32.mrb[0].mxu0
      %524 = vmatprep.mubr.bf16.mxu0 0
      %525 = vmatmul.mubr.bf16.gmra.mrb[0].mxu0 %v360
      %v526 = vpop.f32.mrb[0].mxu0
      %v527 = vadd.f32 0.0, %v526
      %v528 = vpop.f32.mrb[0].mxu0
      %v529 = vpop.f32.mrb[0].mxu0
      %v530 = vadd.f32 0.0, %v529
      %v531 = vpop.f32.mrb[0].mxu0
      %532 = vmatprep.mubr.bf16.mxu0 0
      %533 = vmatmul.mubr.bf16.gmra.mrb[0].mxu0 %v361
      %v534 = vpop.f32.mrb[0].mxu0
      %v535 = vadd.f32 0.0, %v534
      %v536 = vpop.f32.mrb[0].mxu0
      %v537 = vpop.f32.mrb[0].mxu0
      %v538 = vadd.f32 0.0, %v537
      %v539 = vpop.f32.mrb[0].mxu0
      %540 = vmatprep.mubr.bf16.mxu0 0
      %541 = vmatmul.mubr.bf16.gmra.mrb[0].mxu0 %v362
      %v542 = vpop.f32.mrb[0].mxu0
      %v543 = vadd.f32 0.0, %v542
      %v544 = vpop.f32.mrb[0].mxu0
      %v545 = vpop.f32.mrb[0].mxu0
      %v546 = vadd.f32 0.0, %v545
      %v547 = vpop.f32.mrb[0].mxu0
      %548 = vmatprep.mubr.bf16.mxu0 0
      %549 = vmatmul.mubr.bf16.gmra.mrb[0].mxu0 %v363
      %v550 = vpop.f32.mrb[0].mxu0
      %v551 = vadd.f32 0.0, %v550
      %v552 = vpop.f32.mrb[0].mxu0
      %v553 = vpop.f32.mrb[0].mxu0
      %v554 = vadd.f32 0.0, %v553
      %v555 = vpop.f32.mrb[0].mxu0
      %556 = vmatprep.mubr.bf16.mxu0 0
      %557 = vmatmul.mubr.bf16.gmra.mrb[0].mxu0 %v364
      %v558 = vpop.f32.mrb[0].mxu0
      %v559 = vadd.f32 0.0, %v558
      %v560 = vpop.f32.mrb[0].mxu0
      %v561 = vpop.f32.mrb[0].mxu0
      %v562 = vadd.f32 0.0, %v561
      %v563 = vpop.f32.mrb[0].mxu0
      %564 = vmatprep.mubr.bf16.mxu0 0
      %565 = vmatmul.mubr.bf16.gmra.mrb[0].mxu0 %v365
      %v566 = vpop.f32.mrb[0].mxu0
      %v567 = vadd.f32 0.0, %v566
      %v568 = vpop.f32.mrb[0].mxu0
      %v569 = vpop.f32.mrb[0].mxu0
      %v570 = vadd.f32 0.0, %v569
      %v571 = vpop.f32.mrb[0].mxu0
      %572 = vmatprep.mubr.bf16.mxu0 0
      %573 = vmatmul.mubr.bf16.gmra.mrb[0].mxu0 %v366
      %v574 = vpop.f32.mrb[0].mxu0
      %v575 = vadd.f32 0.0, %v574
      %v576 = vpop.f32.mrb[0].mxu0
      %v577 = vpop.f32.mrb[0].mxu0
      %v578 = vadd.f32 0.0, %v577
      %v579 = vpop.f32.mrb[0].mxu0
      %580 = vmatprep.mubr.bf16.mxu0 0
      %581 = vmatmul.mubr.bf16.gmra.mrb[0].mxu0 %v367
      %v582 = vpop.f32.mrb[0].mxu0
      %v583 = vadd.f32 0.0, %v582
      %v584 = vpop.f32.mrb[0].mxu0
      %v585 = vpop.f32.mrb[0].mxu0
      %v586 = vadd.f32 0.0, %v585
      %v587 = vpop.f32.mrb[0].mxu0
      %588 = vmatprep.mubr.bf16.mxu0 0
      %589 = vmatmul.mubr.bf16.gmra.mrb[0].mxu0 %v368
      %v590 = vpop.f32.mrb[0].mxu0
      %v591 = vadd.f32 0.0, %v590
      %v592 = vpop.f32.mrb[0].mxu0
      %v593 = vpop.f32.mrb[0].mxu0
      %v594 = vadd.f32 0.0, %v593
      %v595 = vpop.f32.mrb[0].mxu0
      %596 = vmatprep.mubr.bf16.mxu0 0
      %597 = vmatmul.mubr.bf16.gmra.mrb[0].mxu0 %v369
      %v598 = vpop.f32.mrb[0].mxu0
      %v599 = vadd.f32 0.0, %v598
      %v600 = vpop.f32.mrb[0].mxu0
      %v601 = vpop.f32.mrb[0].mxu0
      %v602 = vadd.f32 0.0, %v601
      %v603 = vpop.f32.mrb[0].mxu0
      %604 = vmatprep.mubr.bf16.mxu0 0
      %605 = vmatmul.mubr.bf16.gmra.mrb[0].mxu0 %v370
      %v606 = vpop.f32.mrb[0].mxu0
      %v607 = vadd.f32 0.0, %v606
      %v608 = vpop.f32.mrb[0].mxu0
      %v609 = vpop.f32.mrb[0].mxu0
      %v610 = vadd.f32 0.0, %v609
      %v611 = vpop.f32.mrb[0].mxu0
      %612 = vmatprep.mubr.bf16.mxu0 0
      %613 = vmatmul.mubr.bf16.gmra.mrb[0].mxu0 %v371
      %v614 = vpop.f32.mrb[0].mxu0
      %v615 = vadd.f32 0.0, %v614
      %v616 = vpop.f32.mrb[0].mxu0
      %v617 = vpop.f32.mrb[0].mxu0
      %v618 = vadd.f32 0.0, %v617
      %v619 = vpop.f32.mrb[0].mxu0
      %620 = vmatprep.mubr.bf16.mxu0 0
      %621 = vmatmul.mubr.bf16.gmra.mrb[0].mxu0 %v372
      %v622 = vpop.f32.mrb[0].mxu0
      %v623 = vadd.f32 0.0, %v622
      %v624 = vpop.f32.mrb[0].mxu0
      %v625 = vpop.f32.mrb[0].mxu0
      %v626 = vadd.f32 0.0, %v625
      %v627 = vpop.f32.mrb[0].mxu0
      %628 = vmatprep.mubr.bf16.mxu0 0
      %629 = vmatmul.mubr.bf16.gmra.mrb[0].mxu0 %v373
      %v630 = vpop.f32.mrb[0].mxu0
      %v631 = vadd.f32 0.0, %v630
      %v632 = vpop.f32.mrb[0].mxu0
      %v633 = vpop.f32.mrb[0].mxu0
      %v634 = vadd.f32 0.0, %v633
      %v635 = vpop.f32.mrb[0].mxu0
      %636 = vmatprep.mubr.bf16.mxu0 0
      %637 = vmatmul.mubr.bf16.gmra.mrb[0].mxu0 %v374
      %v638 = vpop.f32.mrb[0].mxu0
      %v639 = vadd.f32 0.0, %v638
      %v640 = vpop.f32.mrb[0].mxu0
      %v641 = vpop.f32.mrb[0].mxu0
      %v642 = vadd.f32 0.0, %v641
      %v643 = vpop.f32.mrb[0].mxu0
      %644 = vmatprep.mubr.bf16.mxu0 0
      %645 = vmatmul.mubr.bf16.gmra.mrb[0].mxu0 %v375
      %v646 = vpop.f32.mrb[0].mxu0
      %v647 = vadd.f32 0.0, %v646
      %v648 = vpop.f32.mrb[0].mxu0
      %v649 = vpop.f32.mrb[0].mxu0
      %v650 = vadd.f32 0.0, %v649
      %v651 = vpop.f32.mrb[0].mxu0
      %652 = vmatprep.mubr.bf16.mxu0 0
      %653 = vmatmul.mubr.bf16.gmra.mrb[0].mxu0 %v376
      %v654 = vpop.f32.mrb[0].mxu0
      %v655 = vadd.f32 0.0, %v654
      %v656 = vpop.f32.mrb[0].mxu0
      %v657 = vpop.f32.mrb[0].mxu0
      %v658 = vadd.f32 0.0, %v657
      %v659 = vpop.f32.mrb[0].mxu0
      %660 = vmatprep.mubr.bf16.mxu0 0
      %661 = vmatmul.mubr.bf16.gmra.mrb[0].mxu0 %v377
      %v662 = vpop.f32.mrb[0].mxu0
      %v663 = vadd.f32 0.0, %v662
      %v664 = vpop.f32.mrb[0].mxu0
      %v665 = vpop.f32.mrb[0].mxu0
      %v666 = vadd.f32 0.0, %v665
      %v667 = vpop.f32.mrb[0].mxu0
      %668 = vmatprep.mubr.bf16.mxu0 0
      %669 = vmatmul.mubr.bf16.gmra.mrb[0].mxu0 %v378
      %v670 = vpop.f32.mrb[0].mxu0
      %v671 = vadd.f32 0.0, %v670
      %v672 = vpop.f32.mrb[0].mxu0
      %v673 = vpop.f32.mrb[0].mxu0
      %v674 = vadd.f32 0.0, %v673
      %v675 = vpop.f32.mrb[0].mxu0
      %676 = vmatprep.mubr.bf16.mxu0 0
      %677 = vmatmul.mubr.bf16.gmra.mrb[0].mxu0 %v379
      %v678 = vpop.f32.mrb[0].mxu0
      %v679 = vadd.f32 0.0, %v678
      %v680 = vpop.f32.mrb[0].mxu0
      %v681 = vpop.f32.mrb[0].mxu0
      %v682 = vadd.f32 0.0, %v681
      %v683 = vpop.f32.mrb[0].mxu0
      %684 = vmatprep.mubr.bf16.mxu0 0
      %685 = vmatmul.mubr.bf16.gmra.mrb[0].mxu0 %v380
      %v686 = vpop.f32.mrb[0].mxu0
      %v687 = vadd.f32 0.0, %v686
      %v688 = vpop.f32.mrb[0].mxu0
      %v689 = vpop.f32.mrb[0].mxu0
      %v690 = vadd.f32 0.0, %v689
      %v691 = vpop.f32.mrb[0].mxu0
      %692 = vmatprep.mubr.bf16.mxu0 0
      %693 = vmatmul.mubr.bf16.gmra.mrb[0].mxu0 %v381
      %v694 = vpop.f32.mrb[0].mxu0
      %v695 = vadd.f32 0.0, %v694
      %v696 = vpop.f32.mrb[0].mxu0
      %v697 = vpop.f32.mrb[0].mxu0
      %v698 = vadd.f32 0.0, %v697
      %v699 = vpop.f32.mrb[0].mxu0
      %700 = vmatprep.mubr.bf16.mxu0 0
      %701 = vmatmul.mubr.bf16.gmra.mrb[0].mxu0 %v382
      %v702 = vpop.f32.mrb[0].mxu0
      %v703 = vadd.f32 0.0, %v702
      %v704 = vpop.f32.mrb[0].mxu0
      %v705 = vpop.f32.mrb[0].mxu0
      %v706 = vadd.f32 0.0, %v705
      %v707 = vpop.f32.mrb[0].mxu0
      %708 = vmatprep.mubr.bf16.mxu0 0
      %709 = vmatmul.mubr.bf16.gmra.mrb[0].mxu0 %v383
      %v710 = vpop.f32.mrb[0].mxu0
      %v711 = vadd.f32 0.0, %v710
      %v712 = vpop.f32.mrb[0].mxu0
      %v713 = vpop.f32.mrb[0].mxu0
      %v714 = vadd.f32 0.0, %v713
      %v715 = vpop.f32.mrb[0].mxu0
      %716 = vdwg.mxu0
      %v717 = vld [vmem:[%s2] sm:$0x1]
      %vm772 = vcmask 1046528
      %v773 = vrot.slane %v495, 1
      %v774 = vrot.slane %v498, 1
      %v775 = vsel %vm772, %v773, %v774
      %v776 = vrot.slane %v503, 1
      %v777 = vsel %vm772, %v774, %v776
      %v778 = vrot.slane %v506, 1
      %v779 = vsel %vm772, %v776, %v778
      %v780 = vrot.slane %v511, 1
      %v781 = vsel %vm772, %v778, %v780
      %v782 = vrot.slane %v514, 1
      %v783 = vsel %vm772, %v780, %v782
      %v784 = vrot.slane %v519, 1
      %v785 = vsel %vm772, %v782, %v784
      %v786 = vrot.slane %v522, 1
      %v787 = vsel %vm772, %v784, %v786
      %v788 = vrot.slane %v527, 1
      %v789 = vsel %vm772, %v786, %v788
      %v790 = vrot.slane %v530, 1
      %v791 = vsel %vm772, %v788, %v790
      %v792 = vrot.slane %v535, 1
      %v793 = vsel %vm772, %v790, %v792
      %v794 = vrot.slane %v538, 1
      %v795 = vsel %vm772, %v792, %v794
      %v796 = vrot.slane %v543, 1
      %v797 = vsel %vm772, %v794, %v796
      %v798 = vrot.slane %v546, 1
      %v799 = vsel %vm772, %v796, %v798
      %v800 = vrot.slane %v551, 1
      %v801 = vsel %vm772, %v798, %v800
      %v802 = vrot.slane %v554, 1
      %v803 = vsel %vm772, %v800, %v802
      %v804 = vrot.slane %v559, 1
      %v805 = vsel %vm772, %v802, %v804
      %v806 = vrot.slane %v562, 1
      %v807 = vsel %vm772, %v804, %v806
      %v808 = vrot.slane %v567, 1
      %v809 = vsel %vm772, %v806, %v808
      %v810 = vrot.slane %v570, 1
      %v811 = vsel %vm772, %v808, %v810
      %v812 = vrot.slane %v575, 1
      %v813 = vsel %vm772, %v810, %v812
      %v814 = vrot.slane %v578, 1
      %v815 = vsel %vm772, %v812, %v814
      %v816 = vrot.slane %v583, 1
      %v817 = vsel %vm772, %v814, %v816
      %v818 = vrot.slane %v586, 1
      %v819 = vsel %vm772, %v816, %v818
      %v820 = vrot.slane %v591, 1
      %v821 = vsel %vm772, %v818, %v820
      %v822 = vrot.slane %v594, 1
      %v823 = vsel %vm772, %v820, %v822
      %v824 = vrot.slane %v599, 1
      %v825 = vsel %vm772, %v822, %v824
      %v826 = vrot.slane %v602, 1
      %v827 = vsel %vm772, %v824, %v826
      %v828 = vrot.slane %v607, 1
      %v829 = vsel %vm772, %v826, %v828
      %v830 = vrot.slane %v610, 1
      %v831 = vsel %vm772, %v828, %v830
      %v832 = vrot.slane %v615, 1
      %v833 = vsel %vm772, %v830, %v832
      %v834 = vrot.slane %v618, 1
      %v835 = vsel %vm772, %v832, %v834
      %v836 = vrot.slane %v623, 1
      %v837 = vsel %vm772, %v834, %v836
      %v838 = vrot.slane %v626, 1
      %v839 = vsel %vm772, %v836, %v838
      %v840 = vrot.slane %v631, 1
      %v841 = vsel %vm772, %v838, %v840
      %v842 = vrot.slane %v634, 1
      %v843 = vsel %vm772, %v840, %v842
      %v844 = vrot.slane %v639, 1
      %v845 = vsel %vm772, %v842, %v844
      %v846 = vrot.slane %v642, 1
      %v847 = vsel %vm772, %v844, %v846
      %v848 = vrot.slane %v647, 1
      %v849 = vsel %vm772, %v846, %v848
      %v850 = vrot.slane %v650, 1
      %v851 = vsel %vm772, %v848, %v850
      %v852 = vrot.slane %v655, 1
      %v853 = vsel %vm772, %v850, %v852
      %v854 = vrot.slane %v658, 1
      %v855 = vsel %vm772, %v852, %v854
      %v856 = vrot.slane %v663, 1
      %v857 = vsel %vm772, %v854, %v856
      %v858 = vrot.slane %v666, 1
      %v859 = vsel %vm772, %v856, %v858
      %v860 = vrot.slane %v671, 1
      %v861 = vsel %vm772, %v858, %v860
      %v862 = vrot.slane %v674, 1
      %v863 = vsel %vm772, %v860, %v862
      %v864 = vrot.slane %v679, 1
      %v865 = vsel %vm772, %v862, %v864
      %v866 = vrot.slane %v682, 1
      %v867 = vsel %vm772, %v864, %v866
      %v868 = vrot.slane %v687, 1
      %v869 = vsel %vm772, %v866, %v868
      %v870 = vrot.slane %v690, 1
      %v871 = vsel %vm772, %v868, %v870
      %v872 = vrot.slane %v695, 1
      %v873 = vsel %vm772, %v870, %v872
      %v874 = vrot.slane %v698, 1
      %v875 = vsel %vm772, %v872, %v874
      %v876 = vrot.slane %v703, 1
      %v877 = vsel %vm772, %v874, %v876
      %v878 = vrot.slane %v706, 1
      %v879 = vsel %vm772, %v876, %v878
      %880 = vrot.lane.b32.xlu0 %v775, 96
      %v881 = vpop.permute.xlu0 %880
      %882 = vrot.lane.b32.xlu0 %v777, 96
      %v883 = vpop.permute.xlu0 %882
      %884 = vrot.lane.b32.xlu0 %v779, 96
      %v885 = vpop.permute.xlu0 %884
      %886 = vrot.lane.b32.xlu0 %v781, 96
      %v887 = vpop.permute.xlu0 %886
      %888 = vrot.lane.b32.xlu0 %v783, 96
      %v889 = vpop.permute.xlu0 %888
      %890 = vrot.lane.b32.xlu0 %v785, 96
      %v891 = vpop.permute.xlu0 %890
      %892 = vrot.lane.b32.xlu0 %v787, 96
      %v893 = vpop.permute.xlu0 %892
      %894 = vrot.lane.b32.xlu0 %v789, 96
      %v895 = vpop.permute.xlu0 %894
      %896 = vrot.lane.b32.xlu0 %v791, 96
      %v897 = vpop.permute.xlu0 %896
      %898 = vrot.lane.b32.xlu0 %v793, 96
      %v899 = vpop.permute.xlu0 %898
      %900 = vrot.lane.b32.xlu0 %v795, 96
      %v901 = vpop.permute.xlu0 %900
      %902 = vrot.lane.b32.xlu0 %v797, 96
      %v903 = vpop.permute.xlu0 %902
      %904 = vrot.lane.b32.xlu0 %v799, 96
      %v905 = vpop.permute.xlu0 %904
      %906 = vrot.lane.b32.xlu0 %v801, 96
      %v907 = vpop.permute.xlu0 %906
      %908 = vrot.lane.b32.xlu0 %v803, 96
      %v909 = vpop.permute.xlu0 %908
      %910 = vrot.lane.b32.xlu0 %v805, 96
      %v911 = vpop.permute.xlu0 %910
      %912 = vrot.lane.b32.xlu0 %v807, 96
      %v913 = vpop.permute.xlu0 %912
      %914 = vrot.lane.b32.xlu0 %v809, 96
      %v915 = vpop.permute.xlu0 %914
      %916 = vrot.lane.b32.xlu0 %v811, 96
      %v917 = vpop.permute.xlu0 %916
      %918 = vrot.lane.b32.xlu0 %v813, 96
      %v919 = vpop.permute.xlu0 %918
      %920 = vrot.lane.b32.xlu0 %v815, 96
      %v921 = vpop.permute.xlu0 %920
      %922 = vrot.lane.b32.xlu0 %v817, 96
      %v923 = vpop.permute.xlu0 %922
      %924 = vrot.lane.b32.xlu0 %v819, 96
      %v925 = vpop.permute.xlu0 %924
      %926 = vrot.lane.b32.xlu0 %v821, 96
      %v927 = vpop.permute.xlu0 %926
      %928 = vrot.lane.b32.xlu0 %v823, 96
      %v929 = vpop.permute.xlu0 %928
      %930 = vrot.lane.b32.xlu0 %v825, 96
      %v931 = vpop.permute.xlu0 %930
      %932 = vrot.lane.b32.xlu0 %v827, 96
      %v933 = vpop.permute.xlu0 %932
      %934 = vrot.lane.b32.xlu0 %v829, 96
      %v935 = vpop.permute.xlu0 %934
      %936 = vrot.lane.b32.xlu0 %v831, 96
      %v937 = vpop.permute.xlu0 %936
      %938 = vrot.lane.b32.xlu0 %v833, 96
      %v939 = vpop.permute.xlu0 %938
      %940 = vrot.lane.b32.xlu0 %v835, 96
      %v941 = vpop.permute.xlu0 %940
      %942 = vrot.lane.b32.xlu0 %v837, 96
      %v943 = vpop.permute.xlu0 %942
      %944 = vrot.lane.b32.xlu0 %v839, 96
      %v945 = vpop.permute.xlu0 %944
      %946 = vrot.lane.b32.xlu0 %v841, 96
      %v947 = vpop.permute.xlu0 %946
      %948 = vrot.lane.b32.xlu0 %v843, 96
      %v949 = vpop.permute.xlu0 %948
      %950 = vrot.lane.b32.xlu0 %v845, 96
      %v951 = vpop.permute.xlu0 %950
      %952 = vrot.lane.b32.xlu0 %v847, 96
      %v953 = vpop.permute.xlu0 %952
      %954 = vrot.lane.b32.xlu0 %v849, 96
      %v955 = vpop.permute.xlu0 %954
      %956 = vrot.lane.b32.xlu0 %v851, 96
      %v957 = vpop.permute.xlu0 %956
      %958 = vrot.lane.b32.xlu0 %v853, 96
      %v959 = vpop.permute.xlu0 %958
      %960 = vrot.lane.b32.xlu0 %v855, 96
      %v961 = vpop.permute.xlu0 %960
      %962 = vrot.lane.b32.xlu0 %v857, 96
      %v963 = vpop.permute.xlu0 %962
      %964 = vrot.lane.b32.xlu0 %v859, 96
      %v965 = vpop.permute.xlu0 %964
      %966 = vrot.lane.b32.xlu0 %v861, 96
      %v967 = vpop.permute.xlu0 %966
      %968 = vrot.lane.b32.xlu0 %v863, 96
      %v969 = vpop.permute.xlu0 %968
      %970 = vrot.lane.b32.xlu0 %v865, 96
      %v971 = vpop.permute.xlu0 %970
      %972 = vrot.lane.b32.xlu0 %v867, 96
      %v973 = vpop.permute.xlu0 %972
      %974 = vrot.lane.b32.xlu0 %v869, 96
      %v975 = vpop.permute.xlu0 %974
      %976 = vrot.lane.b32.xlu0 %v871, 96
      %v977 = vpop.permute.xlu0 %976
      %978 = vrot.lane.b32.xlu0 %v873, 96
      %v979 = vpop.permute.xlu0 %978
      %980 = vrot.lane.b32.xlu0 %v875, 96
      %v981 = vpop.permute.xlu0 %980
      %982 = vrot.lane.b32.xlu0 %v877, 96
      %v983 = vpop.permute.xlu0 %982
      %984 = vrot.lane.b32.xlu0 %v879, 96
      %v985 = vpop.permute.xlu0 %984
      %v1039 = vadd.f32 %v495, %v881
      %v1040 = vadd.f32 %v498, %v883
      %v1041 = vadd.f32 %v503, %v885
      %v1042 = vadd.f32 %v506, %v887
      %v1043 = vadd.f32 %v511, %v889
      %v1044 = vadd.f32 %v514, %v891
      %v1045 = vadd.f32 %v519, %v893
      %v1046 = vadd.f32 %v522, %v895
      %v1047 = vadd.f32 %v527, %v897
      %v1048 = vadd.f32 %v530, %v899
      %v1049 = vadd.f32 %v535, %v901
      %v1050 = vadd.f32 %v538, %v903
      %v1051 = vadd.f32 %v543, %v905
      %v1052 = vadd.f32 %v546, %v907
      %v1053 = vadd.f32 %v551, %v909
      %v1054 = vadd.f32 %v554, %v911
      %v1055 = vadd.f32 %v559, %v913
      %v1056 = vadd.f32 %v562, %v915
      %v1057 = vadd.f32 %v567, %v917
      %v1058 = vadd.f32 %v570, %v919
      %v1059 = vadd.f32 %v575, %v921
      %v1060 = vadd.f32 %v578, %v923
      %v1061 = vadd.f32 %v583, %v925
      %v1062 = vadd.f32 %v586, %v927
      %v1063 = vadd.f32 %v591, %v929
      %v1064 = vadd.f32 %v594, %v931
      %v1065 = vadd.f32 %v599, %v933
      %v1066 = vadd.f32 %v602, %v935
      %v1067 = vadd.f32 %v607, %v937
      %v1068 = vadd.f32 %v610, %v939
      %v1069 = vadd.f32 %v615, %v941
      %v1070 = vadd.f32 %v618, %v943
      %v1071 = vadd.f32 %v623, %v945
      %v1072 = vadd.f32 %v626, %v947
      %v1073 = vadd.f32 %v631, %v949
      %v1074 = vadd.f32 %v634, %v951
      %v1075 = vadd.f32 %v639, %v953
      %v1076 = vadd.f32 %v642, %v955
      %v1077 = vadd.f32 %v647, %v957
      %v1078 = vadd.f32 %v650, %v959
      %v1079 = vadd.f32 %v655, %v961
      %v1080 = vadd.f32 %v658, %v963
      %v1081 = vadd.f32 %v663, %v965
      %v1082 = vadd.f32 %v666, %v967
      %v1083 = vadd.f32 %v671, %v969
      %v1084 = vadd.f32 %v674, %v971
      %v1085 = vadd.f32 %v679, %v973
      %v1086 = vadd.f32 %v682, %v975
      %v1087 = vadd.f32 %v687, %v977
      %v1088 = vadd.f32 %v690, %v979
      %v1089 = vadd.f32 %v695, %v981
      %v1090 = vadd.f32 %v698, %v983
      %v1091 = vadd.f32 %v703, %v985
      %vm1094 = vcmask 1042432
      %v1095 = vrot.slane %v503, 5
      %v1096 = vrot.slane %v506, 5
      %v1097 = vsel %vm1094, %v1095, %v1096
      %v1098 = vrot.slane %v511, 5
      %v1099 = vsel %vm1094, %v1096, %v1098
      %v1100 = vrot.slane %v514, 5
      %v1101 = vsel %vm1094, %v1098, %v1100
      %v1102 = vrot.slane %v519, 5
      %v1103 = vsel %vm1094, %v1100, %v1102
      %v1104 = vrot.slane %v522, 5
      %v1105 = vsel %vm1094, %v1102, %v1104
      %v1106 = vrot.slane %v527, 5
      %v1107 = vsel %vm1094, %v1104, %v1106
      %v1108 = vrot.slane %v530, 5
      %v1109 = vsel %vm1094, %v1106, %v1108
      %v1110 = vrot.slane %v535, 5
      %v1111 = vsel %vm1094, %v1108, %v1110
      %v1112 = vrot.slane %v538, 5
      %v1113 = vsel %vm1094, %v1110, %v1112
      %v1114 = vrot.slane %v543, 5
      %v1115 = vsel %vm1094, %v1112, %v1114
      %v1116 = vrot.slane %v546, 5
      %v1117 = vsel %vm1094, %v1114, %v1116
      %v1118 = vrot.slane %v551, 5
      %v1119 = vsel %vm1094, %v1116, %v1118
      %v1120 = vrot.slane %v554, 5
      %v1121 = vsel %vm1094, %v1118, %v1120
      %v1122 = vrot.slane %v559, 5
      %v1123 = vsel %vm1094, %v1120, %v1122
      %v1124 = vrot.slane %v562, 5
      %v1125 = vsel %vm1094, %v1122, %v1124
      %v1126 = vrot.slane %v567, 5
      %v1127 = vsel %vm1094, %v1124, %v1126
      %v1128 = vrot.slane %v570, 5
      %v1129 = vsel %vm1094, %v1126, %v1128
      %v1130 = vrot.slane %v575, 5
      %v1131 = vsel %vm1094, %v1128, %v1130
      %v1132 = vrot.slane %v578, 5
      %v1133 = vsel %vm1094, %v1130, %v1132
      %v1134 = vrot.slane %v583, 5
      %v1135 = vsel %vm1094, %v1132, %v1134
      %v1136 = vrot.slane %v586, 5
      %v1137 = vsel %vm1094, %v1134, %v1136
      %v1138 = vrot.slane %v591, 5
      %v1139 = vsel %vm1094, %v1136, %v1138
      %v1140 = vrot.slane %v594, 5
      %v1141 = vsel %vm1094, %v1138, %v1140
      %v1142 = vrot.slane %v599, 5
      %v1143 = vsel %vm1094, %v1140, %v1142
      %v1144 = vrot.slane %v602, 5
      %v1145 = vsel %vm1094, %v1142, %v1144
      %v1146 = vrot.slane %v607, 5
      %v1147 = vsel %vm1094, %v1144, %v1146
      %v1148 = vrot.slane %v610, 5
      %v1149 = vsel %vm1094, %v1146, %v1148
      %v1150 = vrot.slane %v615, 5
      %v1151 = vsel %vm1094, %v1148, %v1150
      %v1152 = vrot.slane %v618, 5
      %v1153 = vsel %vm1094, %v1150, %v1152
      %v1154 = vrot.slane %v623, 5
      %v1155 = vsel %vm1094, %v1152, %v1154
      %v1156 = vrot.slane %v626, 5
      %v1157 = vsel %vm1094, %v1154, %v1156
      %v1158 = vrot.slane %v631, 5
      %v1159 = vsel %vm1094, %v1156, %v1158
      %v1160 = vrot.slane %v634, 5
      %v1161 = vsel %vm1094, %v1158, %v1160
      %v1162 = vrot.slane %v639, 5
      %v1163 = vsel %vm1094, %v1160, %v1162
      %v1164 = vrot.slane %v642, 5
      %v1165 = vsel %vm1094, %v1162, %v1164
      %v1166 = vrot.slane %v647, 5
      %v1167 = vsel %vm1094, %v1164, %v1166
      %v1168 = vrot.slane %v650, 5
      %v1169 = vsel %vm1094, %v1166, %v1168
      %v1170 = vrot.slane %v655, 5
      %v1171 = vsel %vm1094, %v1168, %v1170
      %v1172 = vrot.slane %v658, 5
      %v1173 = vsel %vm1094, %v1170, %v1172
      %v1174 = vrot.slane %v663, 5
      %v1175 = vsel %vm1094, %v1172, %v1174
      %v1176 = vrot.slane %v666, 5
      %v1177 = vsel %vm1094, %v1174, %v1176
      %v1178 = vrot.slane %v671, 5
      %v1179 = vsel %vm1094, %v1176, %v1178
      %v1180 = vrot.slane %v674, 5
      %v1181 = vsel %vm1094, %v1178, %v1180
      %v1182 = vrot.slane %v679, 5
      %v1183 = vsel %vm1094, %v1180, %v1182
      %v1184 = vrot.slane %v682, 5
      %v1185 = vsel %vm1094, %v1182, %v1184
      %v1186 = vrot.slane %v687, 5
      %v1187 = vsel %vm1094, %v1184, %v1186
      %v1188 = vrot.slane %v690, 5
      %v1189 = vsel %vm1094, %v1186, %v1188
      %v1190 = vrot.slane %v695, 5
      %v1191 = vsel %vm1094, %v1188, %v1190
      %v1192 = vrot.slane %v698, 5
      %v1193 = vsel %vm1094, %v1190, %v1192
      %v1194 = vrot.slane %v703, 5
      %v1195 = vsel %vm1094, %v1192, %v1194
      %v1196 = vrot.slane %v706, 5
      %v1197 = vsel %vm1094, %v1194, %v1196
      %v1198 = vrot.slane %v711, 5
      %v1199 = vsel %vm1094, %v1196, %v1198
      %v1200 = vrot.slane %v714, 5
      %v1201 = vsel %vm1094, %v1198, %v1200
      %1202 = vrot.lane.b32.xlu0 %v1097, 64
      %v1203 = vpop.permute.xlu0 %1202
      %1204 = vrot.lane.b32.xlu0 %v1099, 64
      %v1205 = vpop.permute.xlu0 %1204
      %1206 = vrot.lane.b32.xlu0 %v1101, 64
      %v1207 = vpop.permute.xlu0 %1206
      %1208 = vrot.lane.b32.xlu0 %v1103, 64
      %v1209 = vpop.permute.xlu0 %1208
      %1210 = vrot.lane.b32.xlu0 %v1105, 64
      %v1211 = vpop.permute.xlu0 %1210
      %1212 = vrot.lane.b32.xlu0 %v1107, 64
      %v1213 = vpop.permute.xlu0 %1212
      %1214 = vrot.lane.b32.xlu0 %v1109, 64
      %v1215 = vpop.permute.xlu0 %1214
      %1216 = vrot.lane.b32.xlu0 %v1111, 64
      %v1217 = vpop.permute.xlu0 %1216
      %1218 = vrot.lane.b32.xlu0 %v1113, 64
      %v1219 = vpop.permute.xlu0 %1218
      %1220 = vrot.lane.b32.xlu0 %v1115, 64
      %v1221 = vpop.permute.xlu0 %1220
      %1222 = vrot.lane.b32.xlu0 %v1117, 64
      %v1223 = vpop.permute.xlu0 %1222
      %1224 = vrot.lane.b32.xlu0 %v1119, 64
      %v1225 = vpop.permute.xlu0 %1224
      %1226 = vrot.lane.b32.xlu0 %v1121, 64
      %v1227 = vpop.permute.xlu0 %1226
      %1228 = vrot.lane.b32.xlu0 %v1123, 64
      %v1229 = vpop.permute.xlu0 %1228
      %1230 = vrot.lane.b32.xlu0 %v1125, 64
      %v1231 = vpop.permute.xlu0 %1230
      %1232 = vrot.lane.b32.xlu0 %v1127, 64
      %v1233 = vpop.permute.xlu0 %1232
      %1234 = vrot.lane.b32.xlu0 %v1129, 64
      %v1235 = vpop.permute.xlu0 %1234
      %1236 = vrot.lane.b32.xlu0 %v1131, 64
      %v1237 = vpop.permute.xlu0 %1236
      %1238 = vrot.lane.b32.xlu0 %v1133, 64
      %v1239 = vpop.permute.xlu0 %1238
      %1240 = vrot.lane.b32.xlu0 %v1135, 64
      %v1241 = vpop.permute.xlu0 %1240
      %1242 = vrot.lane.b32.xlu0 %v1137, 64
      %v1243 = vpop.permute.xlu0 %1242
      %1244 = vrot.lane.b32.xlu0 %v1139, 64
      %v1245 = vpop.permute.xlu0 %1244
      %1246 = vrot.lane.b32.xlu0 %v1141, 64
      %v1247 = vpop.permute.xlu0 %1246
      %1248 = vrot.lane.b32.xlu0 %v1143, 64
      %v1249 = vpop.permute.xlu0 %1248
      %1250 = vrot.lane.b32.xlu0 %v1145, 64
      %v1251 = vpop.permute.xlu0 %1250
      %1252 = vrot.lane.b32.xlu0 %v1147, 64
      %v1253 = vpop.permute.xlu0 %1252
      %1254 = vrot.lane.b32.xlu0 %v1149, 64
      %v1255 = vpop.permute.xlu0 %1254
      %1256 = vrot.lane.b32.xlu0 %v1151, 64
      %v1257 = vpop.permute.xlu0 %1256
      %1258 = vrot.lane.b32.xlu0 %v1153, 64
      %v1259 = vpop.permute.xlu0 %1258
      %1260 = vrot.lane.b32.xlu0 %v1155, 64
      %v1261 = vpop.permute.xlu0 %1260
      %1262 = vrot.lane.b32.xlu0 %v1157, 64
      %v1263 = vpop.permute.xlu0 %1262
      %1264 = vrot.lane.b32.xlu0 %v1159, 64
      %v1265 = vpop.permute.xlu0 %1264
      %1266 = vrot.lane.b32.xlu0 %v1161, 64
      %v1267 = vpop.permute.xlu0 %1266
      %1268 = vrot.lane.b32.xlu0 %v1163, 64
      %v1269 = vpop.permute.xlu0 %1268
      %1270 = vrot.lane.b32.xlu0 %v1165, 64
      %v1271 = vpop.permute.xlu0 %1270
      %1272 = vrot.lane.b32.xlu0 %v1167, 64
      %v1273 = vpop.permute.xlu0 %1272
      %1274 = vrot.lane.b32.xlu0 %v1169, 64
      %v1275 = vpop.permute.xlu0 %1274
      %1276 = vrot.lane.b32.xlu0 %v1171, 64
      %v1277 = vpop.permute.xlu0 %1276
      %1278 = vrot.lane.b32.xlu0 %v1173, 64
      %v1279 = vpop.permute.xlu0 %1278
      %1280 = vrot.lane.b32.xlu0 %v1175, 64
      %v1281 = vpop.permute.xlu0 %1280
      %1282 = vrot.lane.b32.xlu0 %v1177, 64
      %v1283 = vpop.permute.xlu0 %1282
      %1284 = vrot.lane.b32.xlu0 %v1179, 64
      %v1285 = vpop.permute.xlu0 %1284
      %1286 = vrot.lane.b32.xlu0 %v1181, 64
      %v1287 = vpop.permute.xlu0 %1286
      %1288 = vrot.lane.b32.xlu0 %v1183, 64
      %v1289 = vpop.permute.xlu0 %1288
      %1290 = vrot.lane.b32.xlu0 %v1185, 64
      %v1291 = vpop.permute.xlu0 %1290
      %1292 = vrot.lane.b32.xlu0 %v1187, 64
      %v1293 = vpop.permute.xlu0 %1292
      %1294 = vrot.lane.b32.xlu0 %v1189, 64
      %v1295 = vpop.permute.xlu0 %1294
      %1296 = vrot.lane.b32.xlu0 %v1191, 64
      %v1297 = vpop.permute.xlu0 %1296
      %1298 = vrot.lane.b32.xlu0 %v1193, 64
      %v1299 = vpop.permute.xlu0 %1298
      %1300 = vrot.lane.b32.xlu0 %v1195, 64
      %v1301 = vpop.permute.xlu0 %1300
      %1302 = vrot.lane.b32.xlu0 %v1197, 64
      %v1303 = vpop.permute.xlu0 %1302
      %1304 = vrot.lane.b32.xlu0 %v1199, 64
      %v1305 = vpop.permute.xlu0 %1304
      %1306 = vrot.lane.b32.xlu0 %v1201, 64
      %v1307 = vpop.permute.xlu0 %1306
      %v1361 = vadd.f32 %v1039, %v1203
      %v1362 = vadd.f32 %v1040, %v1205
      %v1363 = vadd.f32 %v1041, %v1207
      %v1364 = vadd.f32 %v1042, %v1209
      %v1365 = vadd.f32 %v1043, %v1211
      %v1366 = vadd.f32 %v1044, %v1213
      %v1367 = vadd.f32 %v1045, %v1215
      %v1368 = vadd.f32 %v1046, %v1217
      %v1369 = vadd.f32 %v1047, %v1219
      %v1370 = vadd.f32 %v1048, %v1221
      %v1371 = vadd.f32 %v1049, %v1223
      %v1372 = vadd.f32 %v1050, %v1225
      %v1373 = vadd.f32 %v1051, %v1227
      %v1374 = vadd.f32 %v1052, %v1229
      %v1375 = vadd.f32 %v1053, %v1231
      %v1376 = vadd.f32 %v1054, %v1233
      %v1377 = vadd.f32 %v1055, %v1235
      %v1378 = vadd.f32 %v1056, %v1237
      %v1379 = vadd.f32 %v1057, %v1239
      %v1380 = vadd.f32 %v1058, %v1241
      %v1381 = vadd.f32 %v1059, %v1243
      %v1382 = vadd.f32 %v1060, %v1245
      %v1383 = vadd.f32 %v1061, %v1247
      %v1384 = vadd.f32 %v1062, %v1249
      %v1385 = vadd.f32 %v1063, %v1251
      %v1386 = vadd.f32 %v1064, %v1253
      %v1387 = vadd.f32 %v1065, %v1255
      %v1388 = vadd.f32 %v1066, %v1257
      %v1389 = vadd.f32 %v1067, %v1259
      %v1390 = vadd.f32 %v1068, %v1261
      %v1391 = vadd.f32 %v1069, %v1263
      %v1392 = vadd.f32 %v1070, %v1265
      %v1393 = vadd.f32 %v1071, %v1267
      %v1394 = vadd.f32 %v1072, %v1269
      %v1395 = vadd.f32 %v1073, %v1271
      %v1396 = vadd.f32 %v1074, %v1273
      %v1397 = vadd.f32 %v1075, %v1275
      %v1398 = vadd.f32 %v1076, %v1277
      %v1399 = vadd.f32 %v1077, %v1279
      %v1400 = vadd.f32 %v1078, %v1281
      %v1401 = vadd.f32 %v1079, %v1283
      %v1402 = vadd.f32 %v1080, %v1285
      %v1403 = vadd.f32 %v1081, %v1287
      %v1404 = vadd.f32 %v1082, %v1289
      %v1405 = vadd.f32 %v1083, %v1291
      %v1406 = vadd.f32 %v1084, %v1293
      %v1407 = vadd.f32 %v1085, %v1295
      %v1408 = vadd.f32 %v1086, %v1297
      %v1409 = vadd.f32 %v1087, %v1299
      %v1410 = vadd.f32 %v1088, %v1301
      %v1411 = vadd.f32 %v1089, %v1303
      %v1412 = vadd.f32 %v1090, %v1305
      %v1413 = vadd.f32 %v1091, %v1307
      %vm1414 = vcmask 1041408
      %v1415 = vrot.slane %v503, 6
      %v1416 = vrot.slane %v506, 6
      %v1417 = vsel %vm1414, %v1415, %v1416
      %v1418 = vrot.slane %v511, 6
      %v1419 = vsel %vm1414, %v1416, %v1418
      %v1420 = vrot.slane %v514, 6
      %v1421 = vsel %vm1414, %v1418, %v1420
      %v1422 = vrot.slane %v519, 6
      %v1423 = vsel %vm1414, %v1420, %v1422
      %v1424 = vrot.slane %v522, 6
      %v1425 = vsel %vm1414, %v1422, %v1424
      %v1426 = vrot.slane %v527, 6
      %v1427 = vsel %vm1414, %v1424, %v1426
      %v1428 = vrot.slane %v530, 6
      %v1429 = vsel %vm1414, %v1426, %v1428
      %v1430 = vrot.slane %v535, 6
      %v1431 = vsel %vm1414, %v1428, %v1430
      %v1432 = vrot.slane %v538, 6
      %v1433 = vsel %vm1414, %v1430, %v1432
      %v1434 = vrot.slane %v543, 6
      %v1435 = vsel %vm1414, %v1432, %v1434
      %v1436 = vrot.slane %v546, 6
      %v1437 = vsel %vm1414, %v1434, %v1436
      %v1438 = vrot.slane %v551, 6
      %v1439 = vsel %vm1414, %v1436, %v1438
      %v1440 = vrot.slane %v554, 6
      %v1441 = vsel %vm1414, %v1438, %v1440
      %v1442 = vrot.slane %v559, 6
      %v1443 = vsel %vm1414, %v1440, %v1442
      %v1444 = vrot.slane %v562, 6
      %v1445 = vsel %vm1414, %v1442, %v1444
      %v1446 = vrot.slane %v567, 6
      %v1447 = vsel %vm1414, %v1444, %v1446
      %v1448 = vrot.slane %v570, 6
      %v1449 = vsel %vm1414, %v1446, %v1448
      %v1450 = vrot.slane %v575, 6
      %v1451 = vsel %vm1414, %v1448, %v1450
      %v1452 = vrot.slane %v578, 6
      %v1453 = vsel %vm1414, %v1450, %v1452
      %v1454 = vrot.slane %v583, 6
      %v1455 = vsel %vm1414, %v1452, %v1454
      %v1456 = vrot.slane %v586, 6
      %v1457 = vsel %vm1414, %v1454, %v1456
      %v1458 = vrot.slane %v591, 6
      %v1459 = vsel %vm1414, %v1456, %v1458
      %v1460 = vrot.slane %v594, 6
      %v1461 = vsel %vm1414, %v1458, %v1460
      %v1462 = vrot.slane %v599, 6
      %v1463 = vsel %vm1414, %v1460, %v1462
      %v1464 = vrot.slane %v602, 6
      %v1465 = vsel %vm1414, %v1462, %v1464
      %v1466 = vrot.slane %v607, 6
      %v1467 = vsel %vm1414, %v1464, %v1466
      %v1468 = vrot.slane %v610, 6
      %v1469 = vsel %vm1414, %v1466, %v1468
      %v1470 = vrot.slane %v615, 6
      %v1471 = vsel %vm1414, %v1468, %v1470
      %v1472 = vrot.slane %v618, 6
      %v1473 = vsel %vm1414, %v1470, %v1472
      %v1474 = vrot.slane %v623, 6
      %v1475 = vsel %vm1414, %v1472, %v1474
      %v1476 = vrot.slane %v626, 6
      %v1477 = vsel %vm1414, %v1474, %v1476
      %v1478 = vrot.slane %v631, 6
      %v1479 = vsel %vm1414, %v1476, %v1478
      %v1480 = vrot.slane %v634, 6
      %v1481 = vsel %vm1414, %v1478, %v1480
      %v1482 = vrot.slane %v639, 6
      %v1483 = vsel %vm1414, %v1480, %v1482
      %v1484 = vrot.slane %v642, 6
      %v1485 = vsel %vm1414, %v1482, %v1484
      %v1486 = vrot.slane %v647, 6
      %v1487 = vsel %vm1414, %v1484, %v1486
      %v1488 = vrot.slane %v650, 6
      %v1489 = vsel %vm1414, %v1486, %v1488
      %v1490 = vrot.slane %v655, 6
      %v1491 = vsel %vm1414, %v1488, %v1490
      %v1492 = vrot.slane %v658, 6
      %v1493 = vsel %vm1414, %v1490, %v1492
      %v1494 = vrot.slane %v663, 6
      %v1495 = vsel %vm1414, %v1492, %v1494
      %v1496 = vrot.slane %v666, 6
      %v1497 = vsel %vm1414, %v1494, %v1496
      %v1498 = vrot.slane %v671, 6
      %v1499 = vsel %vm1414, %v1496, %v1498
      %v1500 = vrot.slane %v674, 6
      %v1501 = vsel %vm1414, %v1498, %v1500
      %v1502 = vrot.slane %v679, 6
      %v1503 = vsel %vm1414, %v1500, %v1502
      %v1504 = vrot.slane %v682, 6
      %v1505 = vsel %vm1414, %v1502, %v1504
      %v1506 = vrot.slane %v687, 6
      %v1507 = vsel %vm1414, %v1504, %v1506
      %v1508 = vrot.slane %v690, 6
      %v1509 = vsel %vm1414, %v1506, %v1508
      %v1510 = vrot.slane %v695, 6
      %v1511 = vsel %vm1414, %v1508, %v1510
      %v1512 = vrot.slane %v698, 6
      %v1513 = vsel %vm1414, %v1510, %v1512
      %v1514 = vrot.slane %v703, 6
      %v1515 = vsel %vm1414, %v1512, %v1514
      %v1516 = vrot.slane %v706, 6
      %v1517 = vsel %vm1414, %v1514, %v1516
      %v1518 = vrot.slane %v711, 6
      %v1519 = vsel %vm1414, %v1516, %v1518
      %v1520 = vrot.slane %v714, 6
      %v1521 = vsel %vm1414, %v1518, %v1520
      %1522 = vrot.lane.b32.xlu0 %v1417, 32
      %v1523 = vpop.permute.xlu0 %1522
      %1524 = vrot.lane.b32.xlu0 %v1419, 32
      %v1525 = vpop.permute.xlu0 %1524
      %1526 = vrot.lane.b32.xlu0 %v1421, 32
      %v1527 = vpop.permute.xlu0 %1526
      %1528 = vrot.lane.b32.xlu0 %v1423, 32
      %v1529 = vpop.permute.xlu0 %1528
      %1530 = vrot.lane.b32.xlu0 %v1425, 32
      %v1531 = vpop.permute.xlu0 %1530
      %1532 = vrot.lane.b32.xlu0 %v1427, 32
      %v1533 = vpop.permute.xlu0 %1532
      %1534 = vrot.lane.b32.xlu0 %v1429, 32
      %v1535 = vpop.permute.xlu0 %1534
      %1536 = vrot.lane.b32.xlu0 %v1431, 32
      %v1537 = vpop.permute.xlu0 %1536
      %1538 = vrot.lane.b32.xlu0 %v1433, 32
      %v1539 = vpop.permute.xlu0 %1538
      %1540 = vrot.lane.b32.xlu0 %v1435, 32
      %v1541 = vpop.permute.xlu0 %1540
      %1542 = vrot.lane.b32.xlu0 %v1437, 32
      %v1543 = vpop.permute.xlu0 %1542
      %1544 = vrot.lane.b32.xlu0 %v1439, 32
      %v1545 = vpop.permute.xlu0 %1544
      %1546 = vrot.lane.b32.xlu0 %v1441, 32
      %v1547 = vpop.permute.xlu0 %1546
      %1548 = vrot.lane.b32.xlu0 %v1443, 32
      %v1549 = vpop.permute.xlu0 %1548
      %1550 = vrot.lane.b32.xlu0 %v1445, 32
      %v1551 = vpop.permute.xlu0 %1550
      %1552 = vrot.lane.b32.xlu0 %v1447, 32
      %v1553 = vpop.permute.xlu0 %1552
      %1554 = vrot.lane.b32.xlu0 %v1449, 32
      %v1555 = vpop.permute.xlu0 %1554
      %1556 = vrot.lane.b32.xlu0 %v1451, 32
      %v1557 = vpop.permute.xlu0 %1556
      %1558 = vrot.lane.b32.xlu0 %v1453, 32
      %v1559 = vpop.permute.xlu0 %1558
      %1560 = vrot.lane.b32.xlu0 %v1455, 32
      %v1561 = vpop.permute.xlu0 %1560
      %1562 = vrot.lane.b32.xlu0 %v1457, 32
      %v1563 = vpop.permute.xlu0 %1562
      %1564 = vrot.lane.b32.xlu0 %v1459, 32
      %v1565 = vpop.permute.xlu0 %1564
      %1566 = vrot.lane.b32.xlu0 %v1461, 32
      %v1567 = vpop.permute.xlu0 %1566
      %1568 = vrot.lane.b32.xlu0 %v1463, 32
      %v1569 = vpop.permute.xlu0 %1568
      %1570 = vrot.lane.b32.xlu0 %v1465, 32
      %v1571 = vpop.permute.xlu0 %1570
      %1572 = vrot.lane.b32.xlu0 %v1467, 32
      %v1573 = vpop.permute.xlu0 %1572
      %1574 = vrot.lane.b32.xlu0 %v1469, 32
      %v1575 = vpop.permute.xlu0 %1574
      %1576 = vrot.lane.b32.xlu0 %v1471, 32
      %v1577 = vpop.permute.xlu0 %1576
      %1578 = vrot.lane.b32.xlu0 %v1473, 32
      %v1579 = vpop.permute.xlu0 %1578
      %1580 = vrot.lane.b32.xlu0 %v1475, 32
      %v1581 = vpop.permute.xlu0 %1580
      %1582 = vrot.lane.b32.xlu0 %v1477, 32
      %v1583 = vpop.permute.xlu0 %1582
      %1584 = vrot.lane.b32.xlu0 %v1479, 32
      %v1585 = vpop.permute.xlu0 %1584
      %1586 = vrot.lane.b32.xlu0 %v1481, 32
      %v1587 = vpop.permute.xlu0 %1586
      %1588 = vrot.lane.b32.xlu0 %v1483, 32
      %v1589 = vpop.permute.xlu0 %1588
      %1590 = vrot.lane.b32.xlu0 %v1485, 32
      %v1591 = vpop.permute.xlu0 %1590
      %1592 = vrot.lane.b32.xlu0 %v1487, 32
      %v1593 = vpop.permute.xlu0 %1592
      %1594 = vrot.lane.b32.xlu0 %v1489, 32
      %v1595 = vpop.permute.xlu0 %1594
      %1596 = vrot.lane.b32.xlu0 %v1491, 32
      %v1597 = vpop.permute.xlu0 %1596
      %1598 = vrot.lane.b32.xlu0 %v1493, 32
      %v1599 = vpop.permute.xlu0 %1598
      %1600 = vrot.lane.b32.xlu0 %v1495, 32
      %v1601 = vpop.permute.xlu0 %1600
      %1602 = vrot.lane.b32.xlu0 %v1497, 32
      %v1603 = vpop.permute.xlu0 %1602
      %1604 = vrot.lane.b32.xlu0 %v1499, 32
      %v1605 = vpop.permute.xlu0 %1604
      %1606 = vrot.lane.b32.xlu0 %v1501, 32
      %v1607 = vpop.permute.xlu0 %1606
      %1608 = vrot.lane.b32.xlu0 %v1503, 32
      %v1609 = vpop.permute.xlu0 %1608
      %1610 = vrot.lane.b32.xlu0 %v1505, 32
      %v1611 = vpop.permute.xlu0 %1610
      %1612 = vrot.lane.b32.xlu0 %v1507, 32
      %v1613 = vpop.permute.xlu0 %1612
      %1614 = vrot.lane.b32.xlu0 %v1509, 32
      %v1615 = vpop.permute.xlu0 %1614
      %1616 = vrot.lane.b32.xlu0 %v1511, 32
      %v1617 = vpop.permute.xlu0 %1616
      %1618 = vrot.lane.b32.xlu0 %v1513, 32
      %v1619 = vpop.permute.xlu0 %1618
      %1620 = vrot.lane.b32.xlu0 %v1515, 32
      %v1621 = vpop.permute.xlu0 %1620
      %1622 = vrot.lane.b32.xlu0 %v1517, 32
      %v1623 = vpop.permute.xlu0 %1622
      %1624 = vrot.lane.b32.xlu0 %v1519, 32
      %v1625 = vpop.permute.xlu0 %1624
      %1626 = vrot.lane.b32.xlu0 %v1521, 32
      %v1627 = vpop.permute.xlu0 %1626
      %v1681 = vadd.f32 %v1361, %v1523
      %v1682 = vadd.f32 %v1362, %v1525
      %v1683 = vadd.f32 %v1363, %v1527
      %v1684 = vadd.f32 %v1364, %v1529
      %v1685 = vadd.f32 %v1365, %v1531
      %v1686 = vadd.f32 %v1366, %v1533
      %v1687 = vadd.f32 %v1367, %v1535
      %v1688 = vadd.f32 %v1368, %v1537
      %v1689 = vadd.f32 %v1369, %v1539
      %v1690 = vadd.f32 %v1370, %v1541
      %v1691 = vadd.f32 %v1371, %v1543
      %v1692 = vadd.f32 %v1372, %v1545
      %v1693 = vadd.f32 %v1373, %v1547
      %v1694 = vadd.f32 %v1374, %v1549
      %v1695 = vadd.f32 %v1375, %v1551
      %v1696 = vadd.f32 %v1376, %v1553
      %v1697 = vadd.f32 %v1377, %v1555
      %v1698 = vadd.f32 %v1378, %v1557
      %v1699 = vadd.f32 %v1379, %v1559
      %v1700 = vadd.f32 %v1380, %v1561
      %v1701 = vadd.f32 %v1381, %v1563
      %v1702 = vadd.f32 %v1382, %v1565
      %v1703 = vadd.f32 %v1383, %v1567
      %v1704 = vadd.f32 %v1384, %v1569
      %v1705 = vadd.f32 %v1385, %v1571
      %v1706 = vadd.f32 %v1386, %v1573
      %v1707 = vadd.f32 %v1387, %v1575
      %v1708 = vadd.f32 %v1388, %v1577
      %v1709 = vadd.f32 %v1389, %v1579
      %v1710 = vadd.f32 %v1390, %v1581
      %v1711 = vadd.f32 %v1391, %v1583
      %v1712 = vadd.f32 %v1392, %v1585
      %v1713 = vadd.f32 %v1393, %v1587
      %v1714 = vadd.f32 %v1394, %v1589
      %v1715 = vadd.f32 %v1395, %v1591
      %v1716 = vadd.f32 %v1396, %v1593
      %v1717 = vadd.f32 %v1397, %v1595
      %v1718 = vadd.f32 %v1398, %v1597
      %v1719 = vadd.f32 %v1399, %v1599
      %v1720 = vadd.f32 %v1400, %v1601
      %v1721 = vadd.f32 %v1401, %v1603
      %v1722 = vadd.f32 %v1402, %v1605
      %v1723 = vadd.f32 %v1403, %v1607
      %v1724 = vadd.f32 %v1404, %v1609
      %v1725 = vadd.f32 %v1405, %v1611
      %v1726 = vadd.f32 %v1406, %v1613
      %v1727 = vadd.f32 %v1407, %v1615
      %v1728 = vadd.f32 %v1408, %v1617
      %v1729 = vadd.f32 %v1409, %v1619
      %v1730 = vadd.f32 %v1410, %v1621
      %v1731 = vadd.f32 %v1411, %v1623
      %v1732 = vadd.f32 %v1412, %v1625
      %v1733 = vadd.f32 %v1413, %v1627
      %v1735 = vlaneseq
      %v1736 = vshrl.u32 %v1735, 7
      %v1737 = vsub.s32 0, %v1736
      %v1738 = vrot.slane %v717, %v1737
      %v1740 = vadd.f32 %v1681, %v1738
      %v1741 = vadd.f32 %v1682, %v1738
      %v1742 = vadd.f32 %v1683, %v1738
      %v1743 = vadd.f32 %v1684, %v1738
      %v1744 = vadd.f32 %v1685, %v1738
      %v1745 = vadd.f32 %v1686, %v1738
      %v1746 = vadd.f32 %v1687, %v1738
      %v1747 = vadd.f32 %v1688, %v1738
      %v1748 = vadd.f32 %v1689, %v1738
      %v1749 = vadd.f32 %v1690, %v1738
      %v1750 = vadd.f32 %v1691, %v1738
      %v1751 = vadd.f32 %v1692, %v1738
      %v1752 = vadd.f32 %v1693, %v1738
      %v1753 = vadd.f32 %v1694, %v1738
      %v1754 = vadd.f32 %v1695, %v1738
      %v1755 = vadd.f32 %v1696, %v1738
      %v1756 = vadd.f32 %v1697, %v1738
      %v1757 = vadd.f32 %v1698, %v1738
      %v1758 = vadd.f32 %v1699, %v1738
      %v1759 = vadd.f32 %v1700, %v1738
      %v1760 = vadd.f32 %v1701, %v1738
      %v1761 = vadd.f32 %v1702, %v1738
      %v1762 = vadd.f32 %v1703, %v1738
      %v1763 = vadd.f32 %v1704, %v1738
      %v1764 = vadd.f32 %v1705, %v1738
      %v1765 = vadd.f32 %v1706, %v1738
      %v1766 = vadd.f32 %v1707, %v1738
      %v1767 = vadd.f32 %v1708, %v1738
      %v1768 = vadd.f32 %v1709, %v1738
      %v1769 = vadd.f32 %v1710, %v1738
      %v1770 = vadd.f32 %v1711, %v1738
      %v1771 = vadd.f32 %v1712, %v1738
      %v1772 = vadd.f32 %v1713, %v1738
      %v1773 = vadd.f32 %v1714, %v1738
      %v1774 = vadd.f32 %v1715, %v1738
      %v1775 = vadd.f32 %v1716, %v1738
      %v1776 = vadd.f32 %v1717, %v1738
      %v1777 = vadd.f32 %v1718, %v1738
      %v1778 = vadd.f32 %v1719, %v1738
      %v1779 = vadd.f32 %v1720, %v1738
      %v1780 = vadd.f32 %v1721, %v1738
      %v1781 = vadd.f32 %v1722, %v1738
      %v1782 = vadd.f32 %v1723, %v1738
      %v1783 = vadd.f32 %v1724, %v1738
      %v1784 = vadd.f32 %v1725, %v1738
      %v1785 = vadd.f32 %v1726, %v1738
      %v1786 = vadd.f32 %v1727, %v1738
      %v1787 = vadd.f32 %v1728, %v1738
      %v1788 = vadd.f32 %v1729, %v1738
      %v1789 = vadd.f32 %v1730, %v1738
      %v1790 = vadd.f32 %v1731, %v1738
      %v1791 = vadd.f32 %v1732, %v1738
      %v1792 = vadd.f32 %v1733, %v1738
      %v1793 = vmax.f32 %v1740, 0.0
      %v1794 = vmax.f32 %v1741, 0.0
      %v1795 = vmax.f32 %v1742, 0.0
      %v1796 = vmax.f32 %v1743, 0.0
      %v1797 = vmax.f32 %v1744, 0.0
      %v1798 = vmax.f32 %v1745, 0.0
      %v1799 = vmax.f32 %v1746, 0.0
      %v1800 = vmax.f32 %v1747, 0.0
      %v1801 = vmax.f32 %v1748, 0.0
      %v1802 = vmax.f32 %v1749, 0.0
      %v1803 = vmax.f32 %v1750, 0.0
      %v1804 = vmax.f32 %v1751, 0.0
      %v1805 = vmax.f32 %v1752, 0.0
      %v1806 = vmax.f32 %v1753, 0.0
      %v1807 = vmax.f32 %v1754, 0.0
      %v1808 = vmax.f32 %v1755, 0.0
      %v1809 = vmax.f32 %v1756, 0.0
      %v1810 = vmax.f32 %v1757, 0.0
      %v1811 = vmax.f32 %v1758, 0.0
      %v1812 = vmax.f32 %v1759, 0.0
      %v1813 = vmax.f32 %v1760, 0.0
      %v1814 = vmax.f32 %v1761, 0.0
      %v1815 = vmax.f32 %v1762, 0.0
      %v1816 = vmax.f32 %v1763, 0.0
      %v1817 = vmax.f32 %v1764, 0.0
      %v1818 = vmax.f32 %v1765, 0.0
      %v1819 = vmax.f32 %v1766, 0.0
      %v1820 = vmax.f32 %v1767, 0.0
      %v1821 = vmax.f32 %v1768, 0.0
      %v1822 = vmax.f32 %v1769, 0.0
      %v1823 = vmax.f32 %v1770, 0.0
      %v1824 = vmax.f32 %v1771, 0.0
      %v1825 = vmax.f32 %v1772, 0.0
      %v1826 = vmax.f32 %v1773, 0.0
      %v1827 = vmax.f32 %v1774, 0.0
      %v1828 = vmax.f32 %v1775, 0.0
      %v1829 = vmax.f32 %v1776, 0.0
      %v1830 = vmax.f32 %v1777, 0.0
      %v1831 = vmax.f32 %v1778, 0.0
      %v1832 = vmax.f32 %v1779, 0.0
      %v1833 = vmax.f32 %v1780, 0.0
      %v1834 = vmax.f32 %v1781, 0.0
      %v1835 = vmax.f32 %v1782, 0.0
      %v1836 = vmax.f32 %v1783, 0.0
      %v1837 = vmax.f32 %v1784, 0.0
      %v1838 = vmax.f32 %v1785, 0.0
      %v1839 = vmax.f32 %v1786, 0.0
      %v1840 = vmax.f32 %v1787, 0.0
      %v1841 = vmax.f32 %v1788, 0.0
      %v1842 = vmax.f32 %v1789, 0.0
      %v1843 = vmax.f32 %v1790, 0.0
      %v1844 = vmax.f32 %v1791, 0.0
      %v1845 = vmax.f32 %v1792, 0.0
      %v1846 = vpack.c.bf16 %v1794, %v1793
      %v1847 = vpack.c.bf16 %v1796, %v1795
      %v1848 = vpack.c.bf16 %v1798, %v1797
      %v1849 = vpack.c.bf16 %v1800, %v1799
      %v1850 = vpack.c.bf16 %v1802, %v1801
      %v1851 = vpack.c.bf16 %v1804, %v1803
      %v1852 = vpack.c.bf16 %v1806, %v1805
      %v1853 = vpack.c.bf16 %v1808, %v1807
      %v1854 = vpack.c.bf16 %v1810, %v1809
      %v1855 = vpack.c.bf16 %v1812, %v1811
      %v1856 = vpack.c.bf16 %v1814, %v1813
      %v1857 = vpack.c.bf16 %v1816, %v1815
      %v1858 = vpack.c.bf16 %v1818, %v1817
      %v1859 = vpack.c.bf16 %v1820, %v1819
      %v1860 = vpack.c.bf16 %v1822, %v1821
      %v1861 = vpack.c.bf16 %v1824, %v1823
      %v1862 = vpack.c.bf16 %v1826, %v1825
      %v1863 = vpack.c.bf16 %v1828, %v1827
      %v1864 = vpack.c.bf16 %v1830, %v1829
      %v1865 = vpack.c.bf16 %v1832, %v1831
      %v1866 = vpack.c.bf16 %v1834, %v1833
      %v1867 = vpack.c.bf16 %v1836, %v1835
      %v1868 = vpack.c.bf16 %v1838, %v1837
      %v1869 = vpack.c.bf16 %v1840, %v1839
      %v1870 = vpack.c.bf16 %v1842, %v1841
      %v1871 = vpack.c.bf16 %v1844, %v1843
      %v1872 = vpack.c.bf16 %v1845, %v1845
      %v1900 = vunpack.c.l.b16 %v1846
      %v1901 = vunpack.c.h.b16 %v1846
      %v1902 = vunpack.c.l.b16 %v1847
      %v1903 = vunpack.c.h.b16 %v1847
      %v1904 = vunpack.c.l.b16 %v1848
      %v1905 = vunpack.c.h.b16 %v1848
      %v1906 = vunpack.c.l.b16 %v1849
      %v1907 = vunpack.c.h.b16 %v1849
      %v1908 = vunpack.c.l.b16 %v1850
      %v1909 = vunpack.c.h.b16 %v1850
      %v1910 = vunpack.c.l.b16 %v1851
      %v1911 = vunpack.c.h.b16 %v1851
      %v1912 = vunpack.c.l.b16 %v1852
      %v1913 = vunpack.c.h.b16 %v1852
      %v1914 = vunpack.c.l.b16 %v1853
      %v1915 = vunpack.c.h.b16 %v1853
      %v1916 = vunpack.c.l.b16 %v1854
      %v1917 = vunpack.c.h.b16 %v1854
      %v1918 = vunpack.c.l.b16 %v1855
      %v1919 = vunpack.c.h.b16 %v1855
      %v1920 = vunpack.c.l.b16 %v1856
      %v1921 = vunpack.c.h.b16 %v1856
      %v1922 = vunpack.c.l.b16 %v1857
      %v1923 = vunpack.c.h.b16 %v1857
      %v1924 = vunpack.c.l.b16 %v1858
      %v1925 = vunpack.c.h.b16 %v1858
      %v1926 = vunpack.c.l.b16 %v1859
      %v1927 = vunpack.c.h.b16 %v1859
      %v1928 = vunpack.c.l.b16 %v1860
      %v1929 = vunpack.c.h.b16 %v1860
      %v1930 = vunpack.c.l.b16 %v1861
      %v1931 = vunpack.c.h.b16 %v1861
      %v1932 = vunpack.c.l.b16 %v1862
      %v1933 = vunpack.c.h.b16 %v1862
      %v1934 = vunpack.c.l.b16 %v1863
      %v1935 = vunpack.c.h.b16 %v1863
      %v1936 = vunpack.c.l.b16 %v1864
      %v1937 = vunpack.c.h.b16 %v1864
      %v1938 = vunpack.c.l.b16 %v1865
      %v1939 = vunpack.c.h.b16 %v1865
      %v1940 = vunpack.c.l.b16 %v1866
      %v1941 = vunpack.c.h.b16 %v1866
      %v1942 = vunpack.c.l.b16 %v1867
      %v1943 = vunpack.c.h.b16 %v1867
      %v1944 = vunpack.c.l.b16 %v1868
      %v1945 = vunpack.c.h.b16 %v1868
      %v1946 = vunpack.c.l.b16 %v1869
      %v1947 = vunpack.c.h.b16 %v1869
      %v1948 = vunpack.c.l.b16 %v1870
      %v1949 = vunpack.c.h.b16 %v1870
      %v1950 = vunpack.c.l.b16 %v1871
      %v1951 = vunpack.c.h.b16 %v1871
      %v1952 = vunpack.c.l.b16 %v1872
      %v1953 = vpack.c.b16 %v1900, %v1900
      %v1954 = vpack.c.b16 %v1901, %v1901
      %v1955 = vpack.c.b16 %v1902, %v1902
      %v1956 = vpack.c.b16 %v1903, %v1903
      %v1957 = vpack.c.b16 %v1904, %v1904
      %v1958 = vpack.c.b16 %v1905, %v1905
      %v1959 = vpack.c.b16 %v1906, %v1906
      %v1960 = vpack.c.b16 %v1907, %v1907
      %v1961 = vpack.c.b16 %v1908, %v1908
      %v1962 = vpack.c.b16 %v1909, %v1909
      %v1963 = vpack.c.b16 %v1910, %v1910
      %v1964 = vpack.c.b16 %v1911, %v1911
      %v1965 = vpack.c.b16 %v1912, %v1912
      %v1966 = vpack.c.b16 %v1913, %v1913
      %v1967 = vpack.c.b16 %v1914, %v1914
      %v1968 = vpack.c.b16 %v1915, %v1915
      %v1969 = vpack.c.b16 %v1916, %v1916
      %v1970 = vpack.c.b16 %v1917, %v1917
      %v1971 = vpack.c.b16 %v1918, %v1918
      %v1972 = vpack.c.b16 %v1919, %v1919
      %v1973 = vpack.c.b16 %v1920, %v1920
      %v1974 = vpack.c.b16 %v1921, %v1921
      %v1975 = vpack.c.b16 %v1922, %v1922
      %v1976 = vpack.c.b16 %v1923, %v1923
      %v1977 = vpack.c.b16 %v1924, %v1924
      %v1978 = vpack.c.b16 %v1925, %v1925
      %v1979 = vpack.c.b16 %v1926, %v1926
      %v1980 = vpack.c.b16 %v1927, %v1927
      %v1981 = vpack.c.b16 %v1928, %v1928
      %v1982 = vpack.c.b16 %v1929, %v1929
      %v1983 = vpack.c.b16 %v1930, %v1930
      %v1984 = vpack.c.b16 %v1931, %v1931
      %v1985 = vpack.c.b16 %v1932, %v1932
      %v1986 = vpack.c.b16 %v1933, %v1933
      %v1987 = vpack.c.b16 %v1934, %v1934
      %v1988 = vpack.c.b16 %v1935, %v1935
      %v1989 = vpack.c.b16 %v1936, %v1936
      %v1990 = vpack.c.b16 %v1937, %v1937
      %v1991 = vpack.c.b16 %v1938, %v1938
      %v1992 = vpack.c.b16 %v1939, %v1939
      %v1993 = vpack.c.b16 %v1940, %v1940
      %v1994 = vpack.c.b16 %v1941, %v1941
      %v1995 = vpack.c.b16 %v1942, %v1942
      %v1996 = vpack.c.b16 %v1943, %v1943
      %v1997 = vpack.c.b16 %v1944, %v1944
      %v1998 = vpack.c.b16 %v1945, %v1945
      %v1999 = vpack.c.b16 %v1946, %v1946
      %v2000 = vpack.c.b16 %v1947, %v1947
      %v2001 = vpack.c.b16 %v1948, %v1948
      %v2002 = vpack.c.b16 %v1949, %v1949
      %v2003 = vpack.c.b16 %v1950, %v1950
      %v2004 = vpack.c.b16 %v1951, %v1951
      %v2005 = vpack.c.b16 %v1952, %v1952
      %vm2059 = vcmask 257024
      %2060 = vst.msk [vmem:[%s170] sm:$0xf] %vm2059, %v1953
      %2061 = vst.msk [vmem:[%s170 + $0x4] sm:$0xf] %vm2059, %v1954
      %2062 = vst.msk [vmem:[%s170 + $0x8] sm:$0xf] %vm2059, %v1955
      %2063 = vst.msk [vmem:[%s170 + $0xc] sm:$0xf] %vm2059, %v1956
      %2064 = vst.msk [vmem:[%s170 + $0x10] sm:$0xf] %vm2059, %v1957
      %2065 = vst.msk [vmem:[%s170 + $0x14] sm:$0xf] %vm2059, %v1958
      %2066 = vst.msk [vmem:[%s170 + $0x18] sm:$0xf] %vm2059, %v1959
      %2067 = vst.msk [vmem:[%s170 + $0x1c] sm:$0xf] %vm2059, %v1960
      %2068 = vst.msk [vmem:[%s170 + $0x20] sm:$0xf] %vm2059, %v1961
      %2069 = vst.msk [vmem:[%s170 + $0x24] sm:$0xf] %vm2059, %v1962
      %2070 = vst.msk [vmem:[%s170 + $0x28] sm:$0xf] %vm2059, %v1963
      %2071 = vst.msk [vmem:[%s170 + $0x2c] sm:$0xf] %vm2059, %v1964
      %2072 = vst.msk [vmem:[%s170 + $0x30] sm:$0xf] %vm2059, %v1965
      %2073 = vst.msk [vmem:[%s170 + $0x34] sm:$0xf] %vm2059, %v1966
      %2074 = vst.msk [vmem:[%s170 + $0x38] sm:$0xf] %vm2059, %v1967
      %2075 = vst.msk [vmem:[%s170 + $0x3c] sm:$0xf] %vm2059, %v1968
      %2076 = vst.msk [vmem:[%s170 + $0x40] sm:$0xf] %vm2059, %v1969
      %2077 = vst.msk [vmem:[%s170 + $0x44] sm:$0xf] %vm2059, %v1970
      %2078 = vst.msk [vmem:[%s170 + $0x48] sm:$0xf] %vm2059, %v1971
      %2079 = vst.msk [vmem:[%s170 + $0x4c] sm:$0xf] %vm2059, %v1972
      %2080 = vst.msk [vmem:[%s170 + $0x50] sm:$0xf] %vm2059, %v1973
      %2081 = vst.msk [vmem:[%s170 + $0x54] sm:$0xf] %vm2059, %v1974
      %2082 = vst.msk [vmem:[%s170 + $0x58] sm:$0xf] %vm2059, %v1975
      %2083 = vst.msk [vmem:[%s170 + $0x5c] sm:$0xf] %vm2059, %v1976
      %2084 = vst.msk [vmem:[%s170 + $0x60] sm:$0xf] %vm2059, %v1977
      %2085 = vst.msk [vmem:[%s170 + $0x64] sm:$0xf] %vm2059, %v1978
      %2086 = vst.msk [vmem:[%s170 + $0x68] sm:$0xf] %vm2059, %v1979
      %2087 = vst.msk [vmem:[%s170 + $0x6c] sm:$0xf] %vm2059, %v1980
      %2088 = vst.msk [vmem:[%s170 + $0x70] sm:$0xf] %vm2059, %v1981
      %2089 = vst.msk [vmem:[%s170 + $0x74] sm:$0xf] %vm2059, %v1982
      %2090 = vst.msk [vmem:[%s170 + $0x78] sm:$0xf] %vm2059, %v1983
      %2091 = vst.msk [vmem:[%s170 + $0x7c] sm:$0xf] %vm2059, %v1984
      %2092 = vst.msk [vmem:[%s170 + $0x80] sm:$0xf] %vm2059, %v1985
      %2093 = vst.msk [vmem:[%s170 + $0x84] sm:$0xf] %vm2059, %v1986
      %2094 = vst.msk [vmem:[%s170 + $0x88] sm:$0xf] %vm2059, %v1987
      %2095 = vst.msk [vmem:[%s170 + $0x8c] sm:$0xf] %vm2059, %v1988
      %2096 = vst.msk [vmem:[%s170 + $0x90] sm:$0xf] %vm2059, %v1989
      %2097 = vst.msk [vmem:[%s170 + $0x94] sm:$0xf] %vm2059, %v1990
      %2098 = vst.msk [vmem:[%s170 + $0x98] sm:$0xf] %vm2059, %v1991
      %2099 = vst.msk [vmem:[%s170 + $0x9c] sm:$0xf] %vm2059, %v1992
      %2100 = vst.msk [vmem:[%s170 + $0xa0] sm:$0xf] %vm2059, %v1993
      %2101 = vst.msk [vmem:[%s170 + $0xa4] sm:$0xf] %vm2059, %v1994
      %2102 = vst.msk [vmem:[%s170 + $0xa8] sm:$0xf] %vm2059, %v1995
      %2103 = vst.msk [vmem:[%s170 + $0xac] sm:$0xf] %vm2059, %v1996
      %2104 = vst.msk [vmem:[%s170 + $0xb0] sm:$0xf] %vm2059, %v1997
      %2105 = vst.msk [vmem:[%s170 + $0xb4] sm:$0xf] %vm2059, %v1998
      %2106 = vst.msk [vmem:[%s170 + $0xb8] sm:$0xf] %vm2059, %v1999
      %2107 = vst.msk [vmem:[%s170 + $0xbc] sm:$0xf] %vm2059, %v2000
      %2108 = vst.msk [vmem:[%s170 + $0xc0] sm:$0xf] %vm2059, %v2001
      %2109 = vst.msk [vmem:[%s170 + $0xc4] sm:$0xf] %vm2059, %v2002
      %2110 = vst.msk [vmem:[%s170 + $0xc8] sm:$0xf] %vm2059, %v2003
      %2111 = vst.msk [vmem:[%s170 + $0xcc] sm:$0xf] %vm2059, %v2004
      %2112 = vst.msk [vmem:[%s170 + $0xd0] sm:$0xf] %vm2059, %v2005
      %p2113 = scmp.lt.s32.totalorder %s14, 1
      %s2114 = scalar_select %p2113, %s14, 1
      %s2115 = smul.addr %s2114, 53
      %s2116 = smul.addr %s2115, 4
      %s2117 = scalar_lea.vmem %s3, %s2116
      // Predicated region
      $region33: #{supervised_policy_forward.3} parent=31 // pred_check
        %p2118 = pneg %p100
      $region34: #{supervised_policy_forward.3} parent=31 // pred_check_branch
        %2120 = sbr.rel (%p2118) target = $region36
      $region35: #{supervised_policy_forward.3} parent=31 // pred_region
        _
      $region36: #{supervised_policy_forward.3} parent=31 // pred_fallthru
        _
    $region32: #{supervised_policy_forward.3} parent=5 // pred_fallthru
      _
    %p2121 = scmp.le.s32.totalorder 2, %s9
    // Predicated region
    $region37: #{supervised_policy_forward.3} parent=5 // pred_check
      %p2122 = pneg %p2121
    $region38: #{supervised_policy_forward.3} parent=5 // pred_check_branch
      %2124 = sbr.rel (%p2122) target = $region40
    $region39: #{supervised_policy_forward.3} parent=5 // pred_region
      %s2125 = ssub.s32 %s9, 2
      // Predicated region
      $region41: #{supervised_policy_forward.3} parent=39 // pred_check
        %p2126 = pneg %p106
      $region42: #{supervised_policy_forward.3} parent=39 // pred_check_branch
        %2128 = sbr.rel (%p2126) target = $region44
      $region43: #{supervised_policy_forward.3} parent=39 // pred_region
        %p2129 = scmp.lt.s32.totalorder %s15, 1
        %s2130 = scalar_select %p2129, %s15, 1
        %s2131 = smul.addr %s2130, 53
        %s2132 = smul.addr %s2131, 4
        %s2133 = scalar_lea.vmem %s3, %s2132
      $region44: #{supervised_policy_forward.3} parent=39 // pred_fallthru
        _
    $region40: #{supervised_policy_forward.3} parent=5 // pred_fallthru
      _
  $region6: #{supervised_policy_forward.3} parent=0 // loop_footer
    %s13 = sadd.s32 1, %s9
  $region7: #{supervised_policy_forward.3} parent=0 // loop_footer_branch
    %8 = sbr.rel target = $region3
  $region8: #{supervised_policy_forward.3} parent=0 // loop_exit
    _

// kernel: supervised_policy_forward.4
$region0: #{supervised_policy_forward.4}
  #allocation0 [shape = 'u32[]', space=smem, size = 0x4, offset = 0x4, fixed_abs, tag = 'smem constant byte address 0x4 - core index']
  #allocation1 [shape = 'u32[144,128]{1,0:T(1,128)}', space=vmem, size = 0x12000, scoped, tag = 'internal scratch']
  %s0 = inlined_call_operand.vmem [shape: bf16[2,112,128], index: 0, kind: input, shape index: {}]
  %s1 = inlined_call_operand.vmem [shape: bf16[128,256], index: 1, kind: input, shape index: {}]
  %s2 = inlined_call_operand.vmem [shape: f32[1,64], index: 2, kind: input, shape index: {}]
  %s3 = inlined_call_operand.vmem [shape: bf16[64,576], index: 3, kind: input, shape index: {}]
  %s4 = inlined_call_operand.vmem [shape: f32[1,64], index: 4, kind: input, shape index: {}]
  %s5 = inlined_call_operand.vmem [shape: bf16[2,72,64], index: 5, kind: output, shape index: {}]
  %s6 = sld [smem:[#allocation0]]
  $region53: #{supervised_policy_forward.4} parent=0
    _
  %s8 = ssub.s32 1, %s6
  %s9 = scalar_select 0, %s8, %s6
  loop: start=0, step=1, limit=4
  $region2: #{supervised_policy_forward.4} parent=0 // loop_pre_header
    _
  $region3: #{supervised_policy_forward.4} parent=0 // loop_header
    %s11 = sphi 0, %s15
    %p12 = scmp.ge.s32.totalorder %s11, 4
    %s21 = sphi 0, %s23
    %s24 = sphi 0, %s21
    %s25 = sphi 0, %s24
    %s41 = sphi 0, %s25
    %s45 = sphi 0, %s45
    %s47 = sphi 0, %s45
    %s48 = sphi 0, %s47
    %s62 = sphi 0, %s48
    %s66 = sphi 0, %s66
    %s68 = sphi 0, %s66
    %s69 = sphi 0, %s68
    %s83 = sphi 0, %s69
    %s87 = sphi 0, %s87
    %s89 = sphi 0, %s87
    %s90 = sphi 0, %s89
    %s104 = sphi 0, %s90
    %s108 = sphi 0, %s108
    %s110 = sphi 0, %s108
    %s111 = sphi 0, %s110
    %s125 = sphi 0, %s111
    %s131 = sphi 0, %s133
    %s134 = sphi 0, %s131
    %s135 = sphi 0, %s134
    %s151 = sphi 0, %s135
  $region4: #{supervised_policy_forward.4} parent=0 // loop_header_branch
    %14 = sbr.rel (%p12) target = $region8
  $region5: #{supervised_policy_forward.4} parent=0 // loop_body
    %s16 = ssub.s32 %s11, 1
    %s17 = ssub.s32 %s11, 2
    %s18 = sadd.s32 %s11, 1
    %s19 = ssub.s32 %s11, %s18
    %p20 = scmp.eq.s32.totalorder %s19, 0
    %s22 = sadd.s32 %s21, 1
    %s23 = scalar_select %p20, %s21, %s22
    %p26 = pneg %p20
    %p27 = scmp.eq.s32.totalorder %s11, 1
    %p28 = por %p26, %p27
    %p29 = scmp.ne.s32.totalorder %s21, %s24
    %p30 = scmp.eq.s32.totalorder %s11, 0
    %p31 = por %p29, %p30
    %p32 = scmp.ne.s32.totalorder %s21, %s24
    %p33 = scmp.eq.s32.totalorder %s16, 1
    %p34 = por %p32, %p33
    %p35 = scmp.ne.s32.totalorder %s24, %s25
    %p36 = scmp.eq.s32.totalorder %s16, 0
    %p37 = por %p35, %p36
    %p38 = scmp.ne.s32.totalorder %s24, %s25
    %p39 = scmp.eq.s32.totalorder %s17, 1
    %p40 = por %p38, %p39
    %p42 = scmp.ne.s32.totalorder %s25, %s41
    %p43 = scmp.eq.s32.totalorder %s17, 0
    %p44 = por %p42, %p43
    %s46 = sadd.s32 %s45, 1
    %p49 = scmp.eq.s32.totalorder %s11, 1
    %p50 = scmp.ne.s32.totalorder %s45, %s47
    %p51 = scmp.eq.s32.totalorder %s11, 0
    %p52 = por %p50, %p51
    %p53 = scmp.ne.s32.totalorder %s45, %s47
    %p54 = scmp.eq.s32.totalorder %s16, 1
    %p55 = por %p53, %p54
    %p56 = scmp.ne.s32.totalorder %s47, %s48
    %p57 = scmp.eq.s32.totalorder %s16, 0
    %p58 = por %p56, %p57
    %p59 = scmp.ne.s32.totalorder %s47, %s48
    %p60 = scmp.eq.s32.totalorder %s17, 1
    %p61 = por %p59, %p60
    %p63 = scmp.ne.s32.totalorder %s48, %s62
    %p64 = scmp.eq.s32.totalorder %s17, 0
    %p65 = por %p63, %p64
    %s67 = sadd.s32 %s66, 1
    %p70 = scmp.eq.s32.totalorder %s11, 1
    %p71 = scmp.ne.s32.totalorder %s66, %s68
    %p72 = scmp.eq.s32.totalorder %s11, 0
    %p73 = por %p71, %p72
    %p74 = scmp.ne.s32.totalorder %s66, %s68
    %p75 = scmp.eq.s32.totalorder %s16, 1
    %p76 = por %p74, %p75
    %p77 = scmp.ne.s32.totalorder %s68, %s69
    %p78 = scmp.eq.s32.totalorder %s16, 0
    %p79 = por %p77, %p78
    %p80 = scmp.ne.s32.totalorder %s68, %s69
    %p81 = scmp.eq.s32.totalorder %s17, 1
    %p82 = por %p80, %p81
    %p84 = scmp.ne.s32.totalorder %s69, %s83
    %p85 = scmp.eq.s32.totalorder %s17, 0
    %p86 = por %p84, %p85
    %s88 = sadd.s32 %s87, 1
    %p91 = scmp.eq.s32.totalorder %s11, 1
    %p92 = scmp.ne.s32.totalorder %s87, %s89
    %p93 = scmp.eq.s32.totalorder %s11, 0
    %p94 = por %p92, %p93
    %p95 = scmp.ne.s32.totalorder %s87, %s89
    %p96 = scmp.eq.s32.totalorder %s16, 1
    %p97 = por %p95, %p96
    %p98 = scmp.ne.s32.totalorder %s89, %s90
    %p99 = scmp.eq.s32.totalorder %s16, 0
    %p100 = por %p98, %p99
    %p101 = scmp.ne.s32.totalorder %s89, %s90
    %p102 = scmp.eq.s32.totalorder %s17, 1
    %p103 = por %p101, %p102
    %p105 = scmp.ne.s32.totalorder %s90, %s104
    %p106 = scmp.eq.s32.totalorder %s17, 0
    %p107 = por %p105, %p106
    %s109 = sadd.s32 %s108, 1
    %p112 = scmp.eq.s32.totalorder %s11, 1
    %p113 = scmp.ne.s32.totalorder %s108, %s110
    %p114 = scmp.eq.s32.totalorder %s11, 0
    %p115 = por %p113, %p114
    %p116 = scmp.ne.s32.totalorder %s108, %s110
    %p117 = scmp.eq.s32.totalorder %s16, 1
    %p118 = por %p116, %p117
    %p119 = scmp.ne.s32.totalorder %s110, %s111
    %p120 = scmp.eq.s32.totalorder %s16, 0
    %p121 = por %p119, %p120
    %p122 = scmp.ne.s32.totalorder %s110, %s111
    %p123 = scmp.eq.s32.totalorder %s17, 1
    %p124 = por %p122, %p123
    %p126 = scmp.ne.s32.totalorder %s111, %s125
    %p127 = scmp.eq.s32.totalorder %s17, 0
    %p128 = por %p126, %p127
    %s129 = ssub.s32 %s11, %s18
    %p130 = scmp.eq.s32.totalorder %s129, 0
    %s132 = sadd.s32 %s131, 1
    %s133 = scalar_select %p130, %s131, %s132
    %p136 = pneg %p130
    %p137 = scmp.eq.s32.totalorder %s11, 1
    %p138 = por %p136, %p137
    %p139 = scmp.ne.s32.totalorder %s131, %s134
    %p140 = scmp.eq.s32.totalorder %s11, 0
    %p141 = por %p139, %p140
    %p142 = scmp.ne.s32.totalorder %s131, %s134
    %p143 = scmp.eq.s32.totalorder %s16, 1
    %p144 = por %p142, %p143
    %p145 = scmp.ne.s32.totalorder %s134, %s135
    %p146 = scmp.eq.s32.totalorder %s16, 0
    %p147 = por %p145, %p146
    %p148 = scmp.ne.s32.totalorder %s134, %s135
    %p149 = scmp.eq.s32.totalorder %s17, 1
    %p150 = por %p148, %p149
    %p152 = scmp.ne.s32.totalorder %s135, %s151
    %p153 = scmp.eq.s32.totalorder %s17, 0
    %p154 = por %p152, %p153
    %p155 = scmp.le.s32.totalorder 1, %s11
    %p156 = scmp.lt.s32.totalorder %s11, 3
    %p157 = pnand %p155, %p156
    %p158 = pneg %p157
    // Predicated region
    $region9: #{supervised_policy_forward.4} parent=5 // pred_check
      _
    $region10: #{supervised_policy_forward.4} parent=5 // pred_check_branch
      %160 = sbr.rel (%p157) target = $region12
    $region11: #{supervised_policy_forward.4} parent=5 // pred_region
      %s161 = ssub.s32 %s11, 1
      // Predicated region
      $region13: #{supervised_policy_forward.4} parent=11 // pred_check
        %p162 = pneg %p58
      $region14: #{supervised_policy_forward.4} parent=11 // pred_check_branch
        %164 = sbr.rel (%p162) target = $region16
      $region15: #{supervised_policy_forward.4} parent=11 // pred_region
        _
      $region16: #{supervised_policy_forward.4} parent=11 // pred_fallthru
        _
      // Predicated region
      $region17: #{supervised_policy_forward.4} parent=11 // pred_check
        %p165 = pneg %p79
      $region18: #{supervised_policy_forward.4} parent=11 // pred_check_branch
        %167 = sbr.rel (%p165) target = $region20
      $region19: #{supervised_policy_forward.4} parent=11 // pred_region
        _
      $region20: #{supervised_policy_forward.4} parent=11 // pred_fallthru
        _
      // Predicated region
      $region21: #{supervised_policy_forward.4} parent=11 // pred_check
        %p168 = pneg %p100
      $region22: #{supervised_policy_forward.4} parent=11 // pred_check_branch
        %170 = sbr.rel (%p168) target = $region24
      $region23: #{supervised_policy_forward.4} parent=11 // pred_region
        _
      $region24: #{supervised_policy_forward.4} parent=11 // pred_fallthru
        _
      // Predicated region
      $region25: #{supervised_policy_forward.4} parent=11 // pred_check
        %p171 = pneg %p121
      $region26: #{supervised_policy_forward.4} parent=11 // pred_check_branch
        %173 = sbr.rel (%p171) target = $region28
      $region27: #{supervised_policy_forward.4} parent=11 // pred_region
        _
      $region28: #{supervised_policy_forward.4} parent=11 // pred_fallthru
        _
    $region12: #{supervised_policy_forward.4} parent=5 // pred_fallthru
      _
    %p174 = scmp.lt.s32.totalorder %s11, 2
    // Predicated region
    $region29: #{supervised_policy_forward.4} parent=5 // pred_check
      %p175 = pneg %p174
    $region30: #{supervised_policy_forward.4} parent=5 // pred_check_branch
      %177 = sbr.rel (%p175) target = $region32
    $region31: #{supervised_policy_forward.4} parent=5 // pred_region
      // Predicated region
      $region33: #{supervised_policy_forward.4} parent=31 // pred_check
        %p178 = pneg %p31
      $region34: #{supervised_policy_forward.4} parent=31 // pred_check_branch
        %180 = sbr.rel (%p178) target = $region36
      $region35: #{supervised_policy_forward.4} parent=31 // pred_region
        %p181 = scmp.lt.s32.totalorder %s11, 1
        %s182 = scalar_select %p181, %s11, 1
        %s183 = smul.addr %s182, 14
        %s184 = smul.addr %s183, 4
        %s185 = scalar_lea.vmem %s0, %s184
      $region36: #{supervised_policy_forward.4} parent=31 // pred_fallthru
        _
    $region32: #{supervised_policy_forward.4} parent=5 // pred_fallthru
      _
    %p186 = scmp.le.s32.totalorder 1, %s11
    %p187 = scmp.lt.s32.totalorder %s11, 3
    %p188 = pnand %p186, %p187
    %p189 = pneg %p188
    // Predicated region
    $region37: #{supervised_policy_forward.4} parent=5 // pred_check
      _
    $region38: #{supervised_policy_forward.4} parent=5 // pred_check_branch
      %191 = sbr.rel (%p188) target = $region40
    $region39: #{supervised_policy_forward.4} parent=5 // pred_region
      %s192 = ssub.s32 %s11, 1
      %p193 = scmp.lt.s32.totalorder %s16, 1
      %s194 = scalar_select %p193, %s16, 1
      %s195 = smul.addr %s194, 14
      %s196 = smul.addr %s195, 4
      %s197 = scalar_lea.vmem %s0, %s196
      %p198 = pneg %p37
      %p199 = pneg %p34
      %p200 = pneg %p58
      %p201 = pneg %p55
      %p202 = pneg %p79
      %p203 = pneg %p76
      %p204 = pneg %p100
      %p205 = pneg %p97
      %p206 = pneg %p121
      %p207 = pneg %p118
      %p208 = pneg %p147
      %p209 = pneg %p144
      %p210 = scmp.lt.s32.totalorder %s16, 1
      %s211 = scalar_select %p210, %s16, 1
      %s212 = smul.addr %s211, 9
      %s213 = smul.addr %s212, 4
      %s214 = scalar_lea.vmem %s5, %s213
      %p215 = scmp.lt.s32.totalorder %s16, 1
      %s216 = scalar_select %p215, %s16, 1
      %s217 = smul.addr %s216, 14
      %s218 = smul.addr %s217, 4
      %s219 = scalar_lea.vmem %s0, %s218
      %p220 = scmp.lt.s32.totalorder %s16, 1
      %s221 = scalar_select %p220, %s16, 1
      %s222 = smul.addr %s221, 9
      %s223 = smul.addr %s222, 4
      %s224 = scalar_lea.vmem %s5, %s223
      %v226 = vld [vmem:[%s219] sm:$0xf]
      %v227 = vld [vmem:[%s219 + $0x4] sm:$0xf]
      %v228 = vld [vmem:[%s219 + $0x8] sm:$0xf]
      %v229 = vld [vmem:[%s219 + $0xc] sm:$0xf]
      %v230 = vld [vmem:[%s219 + $0x10] sm:$0xf]
      %v231 = vld [vmem:[%s219 + $0x14] sm:$0xf]
      %v232 = vld [vmem:[%s219 + $0x18] sm:$0xf]
      %v233 = vld [vmem:[%s219 + $0x1c] sm:$0xf]
      %v234 = vld [vmem:[%s219 + $0x20] sm:$0xf]
      %v235 = vld [vmem:[%s219 + $0x24] sm:$0xf]
      %v236 = vld [vmem:[%s219 + $0x28] sm:$0xf]
      %v237 = vld [vmem:[%s219 + $0x2c] sm:$0xf]
      %v238 = vld [vmem:[%s219 + $0x30] sm:$0xf]
      %v239 = vld [vmem:[%s219 + $0x34] sm:$0xf]
      %v240 = vld [vmem:[%s1] sm:$0xff]
      %v241 = vld [vmem:[%s1 + $0x8] sm:$0xff]
      %v242 = vld [vmem:[%s1 + $0x10] sm:$0xff]
      %v243 = vld [vmem:[%s1 + $0x18] sm:$0xff]
      %v244 = vld [vmem:[%s1 + $0x20] sm:$0xff]
      %v245 = vld [vmem:[%s1 + $0x28] sm:$0xff]
      %v246 = vld [vmem:[%s1 + $0x30] sm:$0xff]
      %v247 = vld [vmem:[%s1 + $0x38] sm:$0xff]
      %v248 = vld [vmem:[%s1 + $0x40] sm:$0xff]
      %v249 = vld [vmem:[%s1 + $0x48] sm:$0xff]
      %v250 = vld [vmem:[%s1 + $0x50] sm:$0xff]
      %v251 = vld [vmem:[%s1 + $0x58] sm:$0xff]
      %v252 = vld [vmem:[%s1 + $0x60] sm:$0xff]
      %v253 = vld [vmem:[%s1 + $0x68] sm:$0xff]
      %v254 = vld [vmem:[%s1 + $0x70] sm:$0xff]
      %v255 = vld [vmem:[%s1 + $0x78] sm:$0xff]
      %v270 = vunpack.c.l.b16 %v226
      %v271 = vunpack.c.l.b16 %v227
      %v272 = vunpack.c.l.b16 %v228
      %v273 = vunpack.c.l.b16 %v229
      %v274 = vunpack.c.l.b16 %v230
      %v275 = vunpack.c.l.b16 %v231
      %v276 = vunpack.c.l.b16 %v232
      %v277 = vunpack.c.l.b16 %v233
      %v278 = vunpack.c.l.b16 %v234
      %v279 = vunpack.c.l.b16 %v235
      %v280 = vunpack.c.l.b16 %v236
      %v281 = vunpack.c.l.b16 %v237
      %v282 = vunpack.c.l.b16 %v238
      %v283 = vunpack.c.l.b16 %v239
      %v284 = vpack.c.b16 %v271, %v270
      %v285 = vpack.c.b16 %v273, %v272
      %v286 = vpack.c.b16 %v275, %v274
      %v287 = vpack.c.b16 %v277, %v276
      %v288 = vpack.c.b16 %v279, %v278
      %v289 = vpack.c.b16 %v281, %v280
      %v290 = vpack.c.b16 %v283, %v282
      %v314 = vunpack.c.l.b16 %v240
      %v315 = vunpack.c.h.b16 %v240
      %v316 = vunpack.c.l.b16 %v241
      %v317 = vunpack.c.h.b16 %v241
      %v318 = vunpack.c.l.b16 %v242
      %v319 = vunpack.c.h.b16 %v242
      %v320 = vunpack.c.l.b16 %v243
      %v321 = vunpack.c.h.b16 %v243
      %v322 = vunpack.c.l.b16 %v244
      %v323 = vunpack.c.h.b16 %v244
      %v324 = vunpack.c.l.b16 %v245
      %v325 = vunpack.c.h.b16 %v245
      %v326 = vunpack.c.l.b16 %v246
      %v327 = vunpack.c.h.b16 %v246
      %v328 = vunpack.c.l.b16 %v247
      %v329 = vunpack.c.h.b16 %v247
      %v330 = vunpack.c.l.b16 %v248
      %v331 = vunpack.c.h.b16 %v248
      %v332 = vunpack.c.l.b16 %v249
      %v333 = vunpack.c.h.b16 %v249
      %v334 = vunpack.c.l.b16 %v250
      %v335 = vunpack.c.h.b16 %v250
      %v336 = vunpack.c.l.b16 %v251
      %v337 = vunpack.c.h.b16 %v251
      %v338 = vunpack.c.l.b16 %v252
      %v339 = vunpack.c.h.b16 %v252
      %v340 = vunpack.c.l.b16 %v253
      %v341 = vunpack.c.h.b16 %v253
      %v342 = vunpack.c.l.b16 %v254
      %v343 = vunpack.c.h.b16 %v254
      %v344 = vunpack.c.l.b16 %v255
      %v345 = vunpack.c.h.b16 %v255
      %v346 = vpack.c.b16 %v316, %v314
      %v347 = vpack.c.b16 %v317, %v315
      %v348 = vpack.c.b16 %v320, %v318
      %v349 = vpack.c.b16 %v321, %v319
      %v350 = vpack.c.b16 %v324, %v322
      %v351 = vpack.c.b16 %v325, %v323
      %v352 = vpack.c.b16 %v328, %v326
      %v353 = vpack.c.b16 %v329, %v327
      %v354 = vpack.c.b16 %v332, %v330
      %v355 = vpack.c.b16 %v333, %v331
      %v356 = vpack.c.b16 %v336, %v334
      %v357 = vpack.c.b16 %v337, %v335
      %v358 = vpack.c.b16 %v340, %v338
      %v359 = vpack.c.b16 %v341, %v339
      %v360 = vpack.c.b16 %v344, %v342
      %v361 = vpack.c.b16 %v345, %v343
      %378 = vmatprep.subr.bf16.mxu0 %v347
      %379 = vmatpush1.bf16.msra.mxu0 %v346
      %380 = vmatprep.subr.bf16.mxu0 %v349
      %381 = vmatpush1.bf16.msra.mxu0 %v348
      %382 = vmatprep.subr.bf16.mxu0 %v351
      %383 = vmatpush1.bf16.msra.mxu0 %v350
      %384 = vmatprep.subr.bf16.mxu0 %v353
      %385 = vmatpush1.bf16.msra.mxu0 %v352
      %386 = vmatprep.subr.bf16.mxu0 %v355
      %387 = vmatpush1.bf16.msra.mxu0 %v354
      %388 = vmatprep.subr.bf16.mxu0 %v357
      %389 = vmatpush1.bf16.msra.mxu0 %v356
      %390 = vmatprep.subr.bf16.mxu0 %v359
      %391 = vmatpush1.bf16.msra.mxu0 %v358
      %392 = vmatprep.subr.bf16.mxu0 %v361
      %393 = vmatpush1.bf16.msra.mxu0 %v360
      %394 = vmatprep.subr.bf16.mxu0 0
      %395 = vmatpush1.bf16.msra.mxu0 0
      %396 = vmatprep.subr.bf16.mxu0 0
      %397 = vmatpush1.bf16.msra.mxu0 0
      %398 = vmatprep.subr.bf16.mxu0 0
      %399 = vmatpush1.bf16.msra.mxu0 0
      %400 = vmatprep.subr.bf16.mxu0 0
      %401 = vmatpush1.bf16.msra.mxu0 0
      %402 = vmatprep.subr.bf16.mxu0 0
      %403 = vmatpush1.bf16.msra.mxu0 0
      %404 = vmatprep.subr.bf16.mxu0 0
      %405 = vmatpush1.bf16.msra.mxu0 0
      %406 = vmatprep.subr.bf16.mxu0 0
      %407 = vmatpush1.bf16.msra.mxu0 0
      %408 = vmatprep.subr.bf16.mxu0 0
      %409 = vmatpush1.bf16.msra.mxu0 0
      %410 = vmatprep.mubr.bf16.mxu0 0
      %411 = vmatmul.mubr.bf16.gmra.mrb[0].mxu0 %v284
      %v412 = vpop.f32.mrb[0].mxu0
      %v413 = vadd.f32 0.0, %v412
      %v414 = vpop.f32.mrb[0].mxu0
      %v415 = vpop.f32.mrb[0].mxu0
      %v416 = vadd.f32 0.0, %v415
      %v417 = vpop.f32.mrb[0].mxu0
      %v418 = vadd.f32 0.0, %v417
      %419 = vmatprep.mubr.bf16.mxu0 0
      %420 = vmatmul.mubr.bf16.gmra.mrb[0].mxu0 %v285
      %v421 = vpop.f32.mrb[0].mxu0
      %v422 = vadd.f32 0.0, %v421
      %v423 = vpop.f32.mrb[0].mxu0
      %v424 = vadd.f32 0.0, %v423
      %v425 = vpop.f32.mrb[0].mxu0
      %v426 = vadd.f32 0.0, %v425
      %v427 = vpop.f32.mrb[0].mxu0
      %v428 = vadd.f32 0.0, %v427
      %429 = vmatprep.mubr.bf16.mxu0 0
      %430 = vmatmul.mubr.bf16.gmra.mrb[0].mxu0 %v286
      %v431 = vpop.f32.mrb[0].mxu0
      %v432 = vadd.f32 0.0, %v431
      %v433 = vpop.f32.mrb[0].mxu0
      %v434 = vadd.f32 0.0, %v433
      %v435 = vpop.f32.mrb[0].mxu0
      %v436 = vadd.f32 0.0, %v435
      %v437 = vpop.f32.mrb[0].mxu0
      %v438 = vadd.f32 0.0, %v437
      %439 = vmatprep.mubr.bf16.mxu0 0
      %440 = vmatmul.mubr.bf16.gmra.mrb[0].mxu0 %v287
      %v441 = vpop.f32.mrb[0].mxu0
      %v442 = vadd.f32 0.0, %v441
      %v443 = vpop.f32.mrb[0].mxu0
      %v444 = vadd.f32 0.0, %v443
      %v445 = vpop.f32.mrb[0].mxu0
      %v446 = vadd.f32 0.0, %v445
      %v447 = vpop.f32.mrb[0].mxu0
      %v448 = vadd.f32 0.0, %v447
      %449 = vmatprep.mubr.bf16.mxu0 0
      %450 = vmatmul.mubr.bf16.gmra.mrb[0].mxu0 %v288
      %v451 = vpop.f32.mrb[0].mxu0
      %v452 = vadd.f32 0.0, %v451
      %v453 = vpop.f32.mrb[0].mxu0
      %v454 = vadd.f32 0.0, %v453
      %v455 = vpop.f32.mrb[0].mxu0
      %v456 = vadd.f32 0.0, %v455
      %v457 = vpop.f32.mrb[0].mxu0
      %v458 = vadd.f32 0.0, %v457
      %459 = vmatprep.mubr.bf16.mxu0 0
      %460 = vmatmul.mubr.bf16.gmra.mrb[0].mxu0 %v289
      %v461 = vpop.f32.mrb[0].mxu0
      %v462 = vadd.f32 0.0, %v461
      %v463 = vpop.f32.mrb[0].mxu0
      %v464 = vadd.f32 0.0, %v463
      %v465 = vpop.f32.mrb[0].mxu0
      %v466 = vadd.f32 0.0, %v465
      %v467 = vpop.f32.mrb[0].mxu0
      %v468 = vadd.f32 0.0, %v467
      %469 = vmatprep.mubr.bf16.mxu0 0
      %470 = vmatmul.mubr.bf16.gmra.mrb[0].mxu0 %v290
      %v471 = vpop.f32.mrb[0].mxu0
      %v472 = vadd.f32 0.0, %v471
      %v473 = vpop.f32.mrb[0].mxu0
      %v474 = vadd.f32 0.0, %v473
      %v475 = vpop.f32.mrb[0].mxu0
      %v476 = vpop.f32.mrb[0].mxu0
      %v477 = vadd.f32 0.0, %v476
      %478 = vdwg.mxu0
      %v479 = vld [vmem:[%s2] sm:$0x1]
      %v480 = vld [vmem:[%s4] sm:$0x1]
      %vm494 = vcmask 1046528
      %v495 = vrot.slane %v413, 1
      %v496 = vrot.slane %v416, 1
      %v497 = vsel %vm494, %v495, %v496
      %v498 = vrot.slane %v422, 1
      %v499 = vsel %vm494, %v496, %v498
      %v500 = vrot.slane %v426, 1
      %v501 = vsel %vm494, %v498, %v500
      %v502 = vrot.slane %v432, 1
      %v503 = vsel %vm494, %v500, %v502
      %v504 = vrot.slane %v436, 1
      %v505 = vsel %vm494, %v502, %v504
      %v506 = vrot.slane %v442, 1
      %v507 = vsel %vm494, %v504, %v506
      %v508 = vrot.slane %v446, 1
      %v509 = vsel %vm494, %v506, %v508
      %v510 = vrot.slane %v452, 1
      %v511 = vsel %vm494, %v508, %v510
      %v512 = vrot.slane %v456, 1
      %v513 = vsel %vm494, %v510, %v512
      %v514 = vrot.slane %v462, 1
      %v515 = vsel %vm494, %v512, %v514
      %v516 = vrot.slane %v466, 1
      %v517 = vsel %vm494, %v514, %v516
      %v518 = vrot.slane %v472, 1
      %v519 = vsel %vm494, %v516, %v518
      %520 = vrot.lane.b32.xlu0 %v497, 64
      %v521 = vpop.permute.xlu0 %520
      %522 = vrot.lane.b32.xlu0 %v499, 64
      %v523 = vpop.permute.xlu0 %522
      %524 = vrot.lane.b32.xlu0 %v501, 64
      %v525 = vpop.permute.xlu0 %524
      %526 = vrot.lane.b32.xlu0 %v503, 64
      %v527 = vpop.permute.xlu0 %526
      %528 = vrot.lane.b32.xlu0 %v505, 64
      %v529 = vpop.permute.xlu0 %528
      %530 = vrot.lane.b32.xlu0 %v507, 64
      %v531 = vpop.permute.xlu0 %530
      %532 = vrot.lane.b32.xlu0 %v509, 64
      %v533 = vpop.permute.xlu0 %532
      %534 = vrot.lane.b32.xlu0 %v511, 64
      %v535 = vpop.permute.xlu0 %534
      %536 = vrot.lane.b32.xlu0 %v513, 64
      %v537 = vpop.permute.xlu0 %536
      %538 = vrot.lane.b32.xlu0 %v515, 64
      %v539 = vpop.permute.xlu0 %538
      %540 = vrot.lane.b32.xlu0 %v517, 64
      %v541 = vpop.permute.xlu0 %540
      %542 = vrot.lane.b32.xlu0 %v519, 64
      %v543 = vpop.permute.xlu0 %542
      %v556 = vadd.f32 %v413, %v521
      %v557 = vadd.f32 %v416, %v523
      %v558 = vadd.f32 %v422, %v525
      %v559 = vadd.f32 %v426, %v527
      %v560 = vadd.f32 %v432, %v529
      %v561 = vadd.f32 %v436, %v531
      %v562 = vadd.f32 %v442, %v533
      %v563 = vadd.f32 %v446, %v535
      %v564 = vadd.f32 %v452, %v537
      %v565 = vadd.f32 %v456, %v539
      %v566 = vadd.f32 %v462, %v541
      %v567 = vadd.f32 %v466, %v543
      %vm581 = vcmask 1045504
      %v582 = vrot.slane %v418, 2
      %v583 = vrot.slane %v424, 2
      %v584 = vsel %vm581, %v582, %v583
      %v585 = vrot.slane %v428, 2
      %v586 = vsel %vm581, %v583, %v585
      %v587 = vrot.slane %v434, 2
      %v588 = vsel %vm581, %v585, %v587
      %v589 = vrot.slane %v438, 2
      %v590 = vsel %vm581, %v587, %v589
      %v591 = vrot.slane %v444, 2
      %v592 = vsel %vm581, %v589, %v591
      %v593 = vrot.slane %v448, 2
      %v594 = vsel %vm581, %v591, %v593
      %v595 = vrot.slane %v454, 2
      %v596 = vsel %vm581, %v593, %v595
      %v597 = vrot.slane %v458, 2
      %v598 = vsel %vm581, %v595, %v597
      %v599 = vrot.slane %v464, 2
      %v600 = vsel %vm581, %v597, %v599
      %v601 = vrot.slane %v468, 2
      %v602 = vsel %vm581, %v599, %v601
      %v603 = vrot.slane %v474, 2
      %v604 = vsel %vm581, %v601, %v603
      %v605 = vrot.slane %v477, 2
      %v606 = vsel %vm581, %v603, %v605
      %v619 = vadd.f32 %v556, %v584
      %v620 = vadd.f32 %v557, %v586
      %v621 = vadd.f32 %v558, %v588
      %v622 = vadd.f32 %v559, %v590
      %v623 = vadd.f32 %v560, %v592
      %v624 = vadd.f32 %v561, %v594
      %v625 = vadd.f32 %v562, %v596
      %v626 = vadd.f32 %v563, %v598
      %v627 = vadd.f32 %v564, %v600
      %v628 = vadd.f32 %v565, %v602
      %v629 = vadd.f32 %v566, %v604
      %v630 = vadd.f32 %v567, %v606
      %vm631 = vcmask 1044480
      %v632 = vrot.slane %v418, 3
      %v633 = vrot.slane %v424, 3
      %v634 = vsel %vm631, %v632, %v633
      %v635 = vrot.slane %v428, 3
      %v636 = vsel %vm631, %v633, %v635
      %v637 = vrot.slane %v434, 3
      %v638 = vsel %vm631, %v635, %v637
      %v639 = vrot.slane %v438, 3
      %v640 = vsel %vm631, %v637, %v639
      %v641 = vrot.slane %v444, 3
      %v642 = vsel %vm631, %v639, %v641
      %v643 = vrot.slane %v448, 3
      %v644 = vsel %vm631, %v641, %v643
      %v645 = vrot.slane %v454, 3
      %v646 = vsel %vm631, %v643, %v645
      %v647 = vrot.slane %v458, 3
      %v648 = vsel %vm631, %v645, %v647
      %v649 = vrot.slane %v464, 3
      %v650 = vsel %vm631, %v647, %v649
      %v651 = vrot.slane %v468, 3
      %v652 = vsel %vm631, %v649, %v651
      %v653 = vrot.slane %v474, 3
      %v654 = vsel %vm631, %v651, %v653
      %v655 = vrot.slane %v477, 3
      %v656 = vsel %vm631, %v653, %v655
      %657 = vrot.lane.b32.xlu0 %v634, 64
      %v658 = vpop.permute.xlu0 %657
      %659 = vrot.lane.b32.xlu0 %v636, 64
      %v660 = vpop.permute.xlu0 %659
      %661 = vrot.lane.b32.xlu0 %v638, 64
      %v662 = vpop.permute.xlu0 %661
      %663 = vrot.lane.b32.xlu0 %v640, 64
      %v664 = vpop.permute.xlu0 %663
      %665 = vrot.lane.b32.xlu0 %v642, 64
      %v666 = vpop.permute.xlu0 %665
      %667 = vrot.lane.b32.xlu0 %v644, 64
      %v668 = vpop.permute.xlu0 %667
      %669 = vrot.lane.b32.xlu0 %v646, 64
      %v670 = vpop.permute.xlu0 %669
      %671 = vrot.lane.b32.xlu0 %v648, 64
      %v672 = vpop.permute.xlu0 %671
      %673 = vrot.lane.b32.xlu0 %v650, 64
      %v674 = vpop.permute.xlu0 %673
      %675 = vrot.lane.b32.xlu0 %v652, 64
      %v676 = vpop.permute.xlu0 %675
      %677 = vrot.lane.b32.xlu0 %v654, 64
      %v678 = vpop.permute.xlu0 %677
      %679 = vrot.lane.b32.xlu0 %v656, 64
      %v680 = vpop.permute.xlu0 %679
      %v693 = vadd.f32 %v619, %v658
      %v694 = vadd.f32 %v620, %v660
      %v695 = vadd.f32 %v621, %v662
      %v696 = vadd.f32 %v622, %v664
      %v697 = vadd.f32 %v623, %v666
      %v698 = vadd.f32 %v624, %v668
      %v699 = vadd.f32 %v625, %v670
      %v700 = vadd.f32 %v626, %v672
      %v701 = vadd.f32 %v627, %v674
      %v702 = vadd.f32 %v628, %v676
      %v703 = vadd.f32 %v629, %v678
      %v704 = vadd.f32 %v630, %v680
      %v706 = vlaneseq
      %v707 = vshrl.u32 %v706, 7
      %v708 = vsub.s32 0, %v707
      %v709 = vrot.slane %v479, %v708
      %v711 = vadd.f32 %v693, %v709
      %v712 = vadd.f32 %v694, %v709
      %v713 = vadd.f32 %v695, %v709
      %v714 = vadd.f32 %v696, %v709
      %v715 = vadd.f32 %v697, %v709
      %v716 = vadd.f32 %v698, %v709
      %v717 = vadd.f32 %v699, %v709
      %v718 = vadd.f32 %v700, %v709
      %v719 = vadd.f32 %v701, %v709
      %v720 = vadd.f32 %v702, %v709
      %v721 = vadd.f32 %v703, %v709
      %v722 = vadd.f32 %v704, %v709
      %v723 = vmax.f32 %v711, 0.0
      %v724 = vmax.f32 %v712, 0.0
      %v725 = vmax.f32 %v713, 0.0
      %v726 = vmax.f32 %v714, 0.0
      %v727 = vmax.f32 %v715, 0.0
      %v728 = vmax.f32 %v716, 0.0
      %v729 = vmax.f32 %v717, 0.0
      %v730 = vmax.f32 %v718, 0.0
      %v731 = vmax.f32 %v719, 0.0
      %v732 = vmax.f32 %v720, 0.0
      %v733 = vmax.f32 %v721, 0.0
      %v734 = vmax.f32 %v722, 0.0
      %v735 = vpack.c.bf16 %v724, %v723
      %v736 = vpack.c.bf16 %v726, %v725
      %v737 = vpack.c.bf16 %v728, %v727
      %v738 = vpack.c.bf16 %v730, %v729
      %v739 = vpack.c.bf16 %v732, %v731
      %v740 = vpack.c.bf16 %v734, %v733
      %v741 = vld [vmem:[%s3] sm:$0xff]
      %v742 = vld [vmem:[%s3 + $0x8] sm:$0xff]
      %v743 = vld [vmem:[%s3 + $0x10] sm:$0xf]
      %v744 = vld [vmem:[%s3 + $0x14] sm:$0xff]
      %v745 = vld [vmem:[%s3 + $0x1c] sm:$0xff]
      %v746 = vld [vmem:[%s3 + $0x24] sm:$0xf]
      %v747 = vld [vmem:[%s3 + $0x28] sm:$0xff]
      %v748 = vld [vmem:[%s3 + $0x30] sm:$0xff]
      %v749 = vld [vmem:[%s3 + $0x38] sm:$0xf]
      %v750 = vld [vmem:[%s3 + $0x3c] sm:$0xff]
      %v751 = vld [vmem:[%s3 + $0x44] sm:$0xff]
      %v752 = vld [vmem:[%s3 + $0x4c] sm:$0xf]
      %v753 = vld [vmem:[%s3 + $0x50] sm:$0xff]
      %v754 = vld [vmem:[%s3 + $0x58] sm:$0xff]
      %v755 = vld [vmem:[%s3 + $0x60] sm:$0xf]
      %v756 = vld [vmem:[%s3 + $0x64] sm:$0xff]
      %v757 = vld [vmem:[%s3 + $0x6c] sm:$0xff]
      %v758 = vld [vmem:[%s3 + $0x74] sm:$0xf]
      %v759 = vld [vmem:[%s3 + $0x78] sm:$0xff]
      %v760 = vld [vmem:[%s3 + $0x80] sm:$0xff]
      %v761 = vld [vmem:[%s3 + $0x88] sm:$0xf]
      %v762 = vld [vmem:[%s3 + $0x8c] sm:$0xff]
      %v763 = vld [vmem:[%s3 + $0x94] sm:$0xff]
      %v764 = vld [vmem:[%s3 + $0x9c] sm:$0xf]
      %v789 = vunpack.c.l.b16 %v741
      %v790 = vunpack.c.h.b16 %v741
      %v791 = vunpack.c.l.b16 %v742
      %v792 = vunpack.c.h.b16 %v742
      %v793 = vunpack.c.l.b16 %v743
      %v794 = vunpack.c.l.b16 %v744
      %v795 = vunpack.c.h.b16 %v744
      %v796 = vunpack.c.l.b16 %v745
      %v797 = vunpack.c.h.b16 %v745
      %v798 = vunpack.c.l.b16 %v746
      %v799 = vunpack.c.l.b16 %v747
      %v800 = vunpack.c.h.b16 %v747
      %v801 = vunpack.c.l.b16 %v748
      %v802 = vunpack.c.h.b16 %v748
      %v803 = vunpack.c.l.b16 %v749
      %v804 = vunpack.c.l.b16 %v750
      %v805 = vunpack.c.h.b16 %v750
      %v806 = vunpack.c.l.b16 %v751
      %v807 = vunpack.c.h.b16 %v751
      %v808 = vunpack.c.l.b16 %v752
      %v809 = vunpack.c.l.b16 %v753
      %v810 = vunpack.c.h.b16 %v753
      %v811 = vunpack.c.l.b16 %v754
      %v812 = vunpack.c.h.b16 %v754
      %v813 = vunpack.c.l.b16 %v755
      %v814 = vunpack.c.l.b16 %v756
      %v815 = vunpack.c.h.b16 %v756
      %v816 = vunpack.c.l.b16 %v757
      %v817 = vunpack.c.h.b16 %v757
      %v818 = vunpack.c.l.b16 %v758
      %v819 = vunpack.c.l.b16 %v759
      %v820 = vunpack.c.h.b16 %v759
      %v821 = vunpack.c.l.b16 %v760
      %v822 = vunpack.c.h.b16 %v760
      %v823 = vunpack.c.l.b16 %v761
      %v824 = vunpack.c.l.b16 %v762
      %v825 = vunpack.c.h.b16 %v762
      %v826 = vunpack.c.l.b16 %v763
      %v827 = vunpack.c.h.b16 %v763
      %v828 = vunpack.c.l.b16 %v764
      %v829 = vpack.c.b16 %v794, %v789
      %v830 = vpack.c.b16 %v795, %v790
      %v831 = vpack.c.b16 %v796, %v791
      %v832 = vpack.c.b16 %v797, %v792
      %v833 = vpack.c.b16 %v798, %v793
      %v834 = vpack.c.b16 %v804, %v799
      %v835 = vpack.c.b16 %v805, %v800
      %v836 = vpack.c.b16 %v806, %v801
      %v837 = vpack.c.b16 %v807, %v802
      %v838 = vpack.c.b16 %v808, %v803
      %v839 = vpack.c.b16 %v814, %v809
      %v840 = vpack.c.b16 %v815, %v810
      %v841 = vpack.c.b16 %v816, %v811
      %v842 = vpack.c.b16 %v817, %v812
      %v843 = vpack.c.b16 %v818, %v813
      %v844 = vpack.c.b16 %v824, %v819
      %v845 = vpack.c.b16 %v825, %v820
      %v846 = vpack.c.b16 %v826, %v821
      %v847 = vpack.c.b16 %v827, %v822
      %v848 = vpack.c.b16 %v828, %v823
      %vm869 = vcmask 523264
      %v871 = vsel %vm869, %v735, 0
      %v874 = vsel %vm869, %v736, 0
      %v877 = vsel %vm869, %v737, 0
      %v880 = vsel %vm869, %v738, 0
      %v883 = vsel %vm869, %v739, 0
      %v886 = vsel %vm869, %v740, 0
      %888 = vmatprep.subr.bf16.mxu0 %v830
      %889 = vmatpush1.bf16.msra.mxu0 %v829
      %890 = vmatprep.subr.bf16.mxu0 %v835
      %891 = vmatpush1.bf16.msra.mxu0 %v834
      %892 = vmatprep.subr.bf16.mxu0 %v840
      %893 = vmatpush1.bf16.msra.mxu0 %v839
      %894 = vmatprep.subr.bf16.mxu0 %v845
      %895 = vmatpush1.bf16.msra.mxu0 %v844
      %896 = vmatprep.subr.bf16.mxu0 0
      %897 = vmatpush1.bf16.msra.mxu0 0
      %898 = vmatprep.subr.bf16.mxu0 0
      %899 = vmatpush1.bf16.msra.mxu0 0
      %900 = vmatprep.subr.bf16.mxu0 0
      %901 = vmatpush1.bf16.msra.mxu0 0
      %902 = vmatprep.subr.bf16.mxu0 0
      %903 = vmatpush1.bf16.msra.mxu0 0
      %904 = vmatprep.subr.bf16.mxu0 0
      %905 = vmatpush1.bf16.msra.mxu0 0
      %906 = vmatprep.subr.bf16.mxu0 0
      %907 = vmatpush1.bf16.msra.mxu0 0
      %908 = vmatprep.subr.bf16.mxu0 0
      %909 = vmatpush1.bf16.msra.mxu0 0
      %910 = vmatprep.subr.bf16.mxu0 0
      %911 = vmatpush1.bf16.msra.mxu0 0
      %912 = vmatprep.subr.bf16.mxu0 0
      %913 = vmatpush1.bf16.msra.mxu0 0
      %914 = vmatprep.subr.bf16.mxu0 0
      %915 = vmatpush1.bf16.msra.mxu0 0
      %916 = vmatprep.subr.bf16.mxu0 0
      %917 = vmatpush1.bf16.msra.mxu0 0
      %918 = vmatprep.subr.bf16.mxu0 0
      %919 = vmatpush1.bf16.msra.mxu0 0
      %920 = vmatprep.mubr.bf16.mxu0 0
      %921 = vmatmul.mubr.bf16.gmra.mrb[0].mxu0 %v871
      %v922 = vpop.f32.mrb[0].mxu0
      %v923 = vadd.f32 0.0, %v922
      %v924 = vpop.f32.mrb[0].mxu0
      %v925 = vadd.f32 0.0, %v924
      %v926 = vpop.f32.mrb[0].mxu0
      %v927 = vadd.f32 0.0, %v926
      %v928 = vpop.f32.mrb[0].mxu0
      %v929 = vadd.f32 0.0, %v928
      %930 = vmatprep.mubr.bf16.mxu0 0
      %931 = vmatmul.mubr.bf16.gmra.mrb[0].mxu0 %v874
      %v932 = vpop.f32.mrb[0].mxu0
      %v933 = vadd.f32 0.0, %v932
      %v934 = vpop.f32.mrb[0].mxu0
      %v935 = vadd.f32 0.0, %v934
      %v936 = vpop.f32.mrb[0].mxu0
      %v937 = vadd.f32 0.0, %v936
      %v938 = vpop.f32.mrb[0].mxu0
      %v939 = vadd.f32 0.0, %v938
      %940 = vmatprep.mubr.bf16.mxu0 0
      %941 = vmatmul.mubr.bf16.gmra.mrb[0].mxu0 %v877
      %v942 = vpop.f32.mrb[0].mxu0
      %v943 = vadd.f32 0.0, %v942
      %v944 = vpop.f32.mrb[0].mxu0
      %v945 = vadd.f32 0.0, %v944
      %v946 = vpop.f32.mrb[0].mxu0
      %v947 = vadd.f32 0.0, %v946
      %v948 = vpop.f32.mrb[0].mxu0
      %v949 = vadd.f32 0.0, %v948
      %950 = vmatprep.mubr.bf16.mxu0 0
      %951 = vmatmul.mubr.bf16.gmra.mrb[0].mxu0 %v880
      %v952 = vpop.f32.mrb[0].mxu0
      %v953 = vadd.f32 0.0, %v952
      %v954 = vpop.f32.mrb[0].mxu0
      %v955 = vadd.f32 0.0, %v954
      %v956 = vpop.f32.mrb[0].mxu0
      %v957 = vadd.f32 0.0, %v956
      %v958 = vpop.f32.mrb[0].mxu0
      %v959 = vadd.f32 0.0, %v958
      %960 = vmatprep.mubr.bf16.mxu0 0
      %961 = vmatmul.mubr.bf16.gmra.mrb[0].mxu0 %v883
      %v962 = vpop.f32.mrb[0].mxu0
      %v963 = vadd.f32 0.0, %v962
      %v964 = vpop.f32.mrb[0].mxu0
      %v965 = vadd.f32 0.0, %v964
      %v966 = vpop.f32.mrb[0].mxu0
      %v967 = vadd.f32 0.0, %v966
      %v968 = vpop.f32.mrb[0].mxu0
      %v969 = vadd.f32 0.0, %v968
      %970 = vmatprep.mubr.bf16.mxu0 0
      %971 = vmatmul.mubr.bf16.gmra.mrb[0].mxu0 %v886
      %v972 = vpop.f32.mrb[0].mxu0
      %v973 = vpop.f32.mrb[0].mxu0
      %v974 = vadd.f32 0.0, %v973
      %v975 = vpop.f32.mrb[0].mxu0
      %v976 = vpop.f32.mrb[0].mxu0
      %977 = vdwg.mxu0
      %978 = vmatprep.subr.bf16.mxu0 %v832
      %979 = vmatpush1.bf16.msra.mxu0 %v831
      %980 = vmatprep.subr.bf16.mxu0 %v837
      %981 = vmatpush1.bf16.msra.mxu0 %v836
      %982 = vmatprep.subr.bf16.mxu0 %v842
      %983 = vmatpush1.bf16.msra.mxu0 %v841
      %984 = vmatprep.subr.bf16.mxu0 %v847
      %985 = vmatpush1.bf16.msra.mxu0 %v846
      %986 = vmatprep.subr.bf16.mxu0 0
      %987 = vmatpush1.bf16.msra.mxu0 0
      %988 = vmatprep.subr.bf16.mxu0 0
      %989 = vmatpush1.bf16.msra.mxu0 0
      %990 = vmatprep.subr.bf16.mxu0 0
      %991 = vmatpush1.bf16.msra.mxu0 0
      %992 = vmatprep.subr.bf16.mxu0 0
      %993 = vmatpush1.bf16.msra.mxu0 0
      %994 = vmatprep.subr.bf16.mxu0 0
      %995 = vmatpush1.bf16.msra.mxu0 0
      %996 = vmatprep.subr.bf16.mxu0 0
      %997 = vmatpush1.bf16.msra.mxu0 0
      %998 = vmatprep.subr.bf16.mxu0 0
      %999 = vmatpush1.bf16.msra.mxu0 0
      %1000 = vmatprep.subr.bf16.mxu0 0
      %1001 = vmatpush1.bf16.msra.mxu0 0
      %1002 = vmatprep.subr.bf16.mxu0 0
      %1003 = vmatpush1.bf16.msra.mxu0 0
      %1004 = vmatprep.subr.bf16.mxu0 0
      %1005 = vmatpush1.bf16.msra.mxu0 0
      %1006 = vmatprep.subr.bf16.mxu0 0
      %1007 = vmatpush1.bf16.msra.mxu0 0
      %1008 = vmatprep.subr.bf16.mxu0 0
      %1009 = vmatpush1.bf16.msra.mxu0 0
      %1010 = vmatprep.mubr.bf16.mxu0 0
      %1011 = vmatmul.mubr.bf16.gmra.mrb[0].mxu0 %v871
      %v1012 = vpop.f32.mrb[0].mxu0
      %v1013 = vpop.f32.mrb[0].mxu0
      %v1014 = vpop.f32.mrb[0].mxu0
      %v1015 = vadd.f32 0.0, %v1014
      %v1016 = vpop.f32.mrb[0].mxu0
      %1017 = vmatprep.mubr.bf16.mxu0 0
      %1018 = vmatmul.mubr.bf16.gmra.mrb[0].mxu0 %v874
      %v1019 = vpop.f32.mrb[0].mxu0
      %v1020 = vadd.f32 0.0, %v1019
      %v1021 = vpop.f32.mrb[0].mxu0
      %v1022 = vadd.f32 0.0, %v1021
      %v1023 = vpop.f32.mrb[0].mxu0
      %v1024 = vadd.f32 0.0, %v1023
      %v1025 = vpop.f32.mrb[0].mxu0
      %v1026 = vadd.f32 0.0, %v1025
      %1027 = vmatprep.mubr.bf16.mxu0 0
      %1028 = vmatmul.mubr.bf16.gmra.mrb[0].mxu0 %v877
      %v1029 = vpop.f32.mrb[0].mxu0
      %v1030 = vadd.f32 0.0, %v1029
      %v1031 = vpop.f32.mrb[0].mxu0
      %v1032 = vadd.f32 0.0, %v1031
      %v1033 = vpop.f32.mrb[0].mxu0
      %v1034 = vadd.f32 0.0, %v1033
      %v1035 = vpop.f32.mrb[0].mxu0
      %v1036 = vadd.f32 0.0, %v1035
      %1037 = vmatprep.mubr.bf16.mxu0 0
      %1038 = vmatmul.mubr.bf16.gmra.mrb[0].mxu0 %v880
      %v1039 = vpop.f32.mrb[0].mxu0
      %v1040 = vadd.f32 0.0, %v1039
      %v1041 = vpop.f32.mrb[0].mxu0
      %v1042 = vadd.f32 0.0, %v1041
      %v1043 = vpop.f32.mrb[0].mxu0
      %v1044 = vadd.f32 0.0, %v1043
      %v1045 = vpop.f32.mrb[0].mxu0
      %v1046 = vadd.f32 0.0, %v1045
      %1047 = vmatprep.mubr.bf16.mxu0 0
      %1048 = vmatmul.mubr.bf16.gmra.mrb[0].mxu0 %v883
      %v1049 = vpop.f32.mrb[0].mxu0
      %v1050 = vadd.f32 0.0, %v1049
      %v1051 = vpop.f32.mrb[0].mxu0
      %v1052 = vadd.f32 0.0, %v1051
      %v1053 = vpop.f32.mrb[0].mxu0
      %v1054 = vadd.f32 0.0, %v1053
      %v1055 = vpop.f32.mrb[0].mxu0
      %v1056 = vadd.f32 0.0, %v1055
      %1057 = vmatprep.mubr.bf16.mxu0 0
      %1058 = vmatmul.mubr.bf16.gmra.mrb[0].mxu0 %v886
      %v1059 = vpop.f32.mrb[0].mxu0
      %v1060 = vadd.f32 0.0, %v1059
      %v1061 = vpop.f32.mrb[0].mxu0
      %v1062 = vadd.f32 0.0, %v1061
      %v1063 = vpop.f32.mrb[0].mxu0
      %v1064 = vpop.f32.mrb[0].mxu0
      %v1065 = vadd.f32 0.0, %v1064
      %1066 = vdwg.mxu0
      %1067 = vmatprep.subr.bf16.mxu0 0
      %1068 = vmatpush1.bf16.msra.mxu0 %v833
      %1069 = vmatprep.subr.bf16.mxu0 0
      %1070 = vmatpush1.bf16.msra.mxu0 %v838
      %1071 = vmatprep.subr.bf16.mxu0 0
      %1072 = vmatpush1.bf16.msra.mxu0 %v843
      %1073 = vmatprep.subr.bf16.mxu0 0
      %1074 = vmatpush1.bf16.msra.mxu0 %v848
      %1075 = vmatprep.subr.bf16.mxu0 0
      %1076 = vmatpush1.bf16.msra.mxu0 0
      %1077 = vmatprep.subr.bf16.mxu0 0
      %1078 = vmatpush1.bf16.msra.mxu0 0
      %1079 = vmatprep.subr.bf16.mxu0 0
      %1080 = vmatpush1.bf16.msra.mxu0 0
      %1081 = vmatprep.subr.bf16.mxu0 0
      %1082 = vmatpush1.bf16.msra.mxu0 0
      %1083 = vmatprep.subr.bf16.mxu0 0
      %1084 = vmatpush1.bf16.msra.mxu0 0
      %1085 = vmatprep.subr.bf16.mxu0 0
      %1086 = vmatpush1.bf16.msra.mxu0 0
      %1087 = vmatprep.subr.bf16.mxu0 0
      %1088 = vmatpush1.bf16.msra.mxu0 0
      %1089 = vmatprep.subr.bf16.mxu0 0
      %1090 = vmatpush1.bf16.msra.mxu0 0
      %1091 = vmatprep.subr.bf16.mxu0 0
      %1092 = vmatpush1.bf16.msra.mxu0 0
      %1093 = vmatprep.subr.bf16.mxu0 0
      %1094 = vmatpush1.bf16.msra.mxu0 0
      %1095 = vmatprep.subr.bf16.mxu0 0
      %1096 = vmatpush1.bf16.msra.mxu0 0
      %1097 = vmatprep.subr.bf16.mxu0 0
      %1098 = vmatpush1.bf16.msra.mxu0 0
      %1099 = vmatprep.mubr.bf16.mxu0 0
      %1100 = vmatmul.mubr.bf16.gmra.mrb[0].mxu0 %v871
      %v1101 = vpop.f32.mrb[0].mxu0
      %v1102 = vpop.f32.mrb[0].mxu0
      %v1103 = vpop.f32.mrb[0].mxu0
      %v1104 = vpop.f32.mrb[0].mxu0
      %1105 = vmatprep.mubr.bf16.mxu0 0
      %1106 = vmatmul.mubr.bf16.gmra.mrb[0].mxu0 %v874
      %v1107 = vpop.f32.mrb[0].mxu0
      %v1108 = vadd.f32 0.0, %v1107
      %v1109 = vpop.f32.mrb[0].mxu0
      %v1110 = vpop.f32.mrb[0].mxu0
      %v1111 = vadd.f32 0.0, %v1110
      %v1112 = vpop.f32.mrb[0].mxu0
      %1113 = vmatprep.mubr.bf16.mxu0 0
      %1114 = vmatmul.mubr.bf16.gmra.mrb[0].mxu0 %v877
      %v1115 = vpop.f32.mrb[0].mxu0
      %v1116 = vadd.f32 0.0, %v1115
      %v1117 = vpop.f32.mrb[0].mxu0
      %v1118 = vpop.f32.mrb[0].mxu0
      %v1119 = vadd.f32 0.0, %v1118
      %v1120 = vpop.f32.mrb[0].mxu0
      %1121 = vmatprep.mubr.bf16.mxu0 0
      %1122 = vmatmul.mubr.bf16.gmra.mrb[0].mxu0 %v880
      %v1123 = vpop.f32.mrb[0].mxu0
      %v1124 = vadd.f32 0.0, %v1123
      %v1125 = vpop.f32.mrb[0].mxu0
      %v1126 = vpop.f32.mrb[0].mxu0
      %v1127 = vadd.f32 0.0, %v1126
      %v1128 = vpop.f32.mrb[0].mxu0
      %1129 = vmatprep.mubr.bf16.mxu0 0
      %1130 = vmatmul.mubr.bf16.gmra.mrb[0].mxu0 %v883
      %v1131 = vpop.f32.mrb[0].mxu0
      %v1132 = vadd.f32 0.0, %v1131
      %v1133 = vpop.f32.mrb[0].mxu0
      %v1134 = vpop.f32.mrb[0].mxu0
      %v1135 = vadd.f32 0.0, %v1134
      %v1136 = vpop.f32.mrb[0].mxu0
      %1137 = vmatprep.mubr.bf16.mxu0 0
      %1138 = vmatmul.mubr.bf16.gmra.mrb[0].mxu0 %v886
      %v1139 = vpop.f32.mrb[0].mxu0
      %v1140 = vadd.f32 0.0, %v1139
      %v1141 = vpop.f32.mrb[0].mxu0
      %v1142 = vpop.f32.mrb[0].mxu0
      %v1143 = vadd.f32 0.0, %v1142
      %v1144 = vpop.f32.mrb[0].mxu0
      %1145 = vdwg.mxu0
      %v1156 = vrot.slane %v923, 1
      %v1157 = vrot.slane %v927, 1
      %v1158 = vsel %vm494, %v1156, %v1157
      %v1159 = vrot.slane %v933, 1
      %v1160 = vsel %vm494, %v1157, %v1159
      %v1161 = vrot.slane %v937, 1
      %v1162 = vsel %vm494, %v1159, %v1161
      %v1163 = vrot.slane %v943, 1
      %v1164 = vsel %vm494, %v1161, %v1163
      %v1165 = vrot.slane %v947, 1
      %v1166 = vsel %vm494, %v1163, %v1165
      %v1167 = vrot.slane %v953, 1
      %v1168 = vsel %vm494, %v1165, %v1167
      %v1169 = vrot.slane %v957, 1
      %v1170 = vsel %vm494, %v1167, %v1169
      %v1171 = vrot.slane %v963, 1
      %v1172 = vsel %vm494, %v1169, %v1171
      %v1173 = vrot.slane %v967, 1
      %v1174 = vsel %vm494, %v1171, %v1173
      %1175 = vrot.lane.b32.xlu0 %v1158, 64
      %v1176 = vpop.permute.xlu0 %1175
      %1177 = vrot.lane.b32.xlu0 %v1160, 64
      %v1178 = vpop.permute.xlu0 %1177
      %1179 = vrot.lane.b32.xlu0 %v1162, 64
      %v1180 = vpop.permute.xlu0 %1179
      %1181 = vrot.lane.b32.xlu0 %v1164, 64
      %v1182 = vpop.permute.xlu0 %1181
      %1183 = vrot.lane.b32.xlu0 %v1166, 64
      %v1184 = vpop.permute.xlu0 %1183
      %1185 = vrot.lane.b32.xlu0 %v1168, 64
      %v1186 = vpop.permute.xlu0 %1185
      %1187 = vrot.lane.b32.xlu0 %v1170, 64
      %v1188 = vpop.permute.xlu0 %1187
      %1189 = vrot.lane.b32.xlu0 %v1172, 64
      %v1190 = vpop.permute.xlu0 %1189
      %1191 = vrot.lane.b32.xlu0 %v1174, 64
      %v1192 = vpop.permute.xlu0 %1191
      %v1202 = vadd.f32 %v923, %v1176
      %v1203 = vadd.f32 %v927, %v1178
      %v1204 = vadd.f32 %v933, %v1180
      %v1205 = vadd.f32 %v937, %v1182
      %v1206 = vadd.f32 %v943, %v1184
      %v1207 = vadd.f32 %v947, %v1186
      %v1208 = vadd.f32 %v953, %v1188
      %v1209 = vadd.f32 %v957, %v1190
      %v1210 = vadd.f32 %v963, %v1192
      %v1221 = vrot.slane %v925, 2
      %v1222 = vrot.slane %v929, 2
      %v1223 = vsel %vm581, %v1221, %v1222
      %v1224 = vrot.slane %v935, 2
      %v1225 = vsel %vm581, %v1222, %v1224
      %v1226 = vrot.slane %v939, 2
      %v1227 = vsel %vm581, %v1224, %v1226
      %v1228 = vrot.slane %v945, 2
      %v1229 = vsel %vm581, %v1226, %v1228
      %v1230 = vrot.slane %v949, 2
      %v1231 = vsel %vm581, %v1228, %v1230
      %v1232 = vrot.slane %v955, 2
      %v1233 = vsel %vm581, %v1230, %v1232
      %v1234 = vrot.slane %v959, 2
      %v1235 = vsel %vm581, %v1232, %v1234
      %v1236 = vrot.slane %v965, 2
      %v1237 = vsel %vm581, %v1234, %v1236
      %v1238 = vrot.slane %v969, 2
      %v1239 = vsel %vm581, %v1236, %v1238
      %v1249 = vadd.f32 %v1202, %v1223
      %v1250 = vadd.f32 %v1203, %v1225
      %v1251 = vadd.f32 %v1204, %v1227
      %v1252 = vadd.f32 %v1205, %v1229
      %v1253 = vadd.f32 %v1206, %v1231
      %v1254 = vadd.f32 %v1207, %v1233
      %v1255 = vadd.f32 %v1208, %v1235
      %v1256 = vadd.f32 %v1209, %v1237
      %v1257 = vadd.f32 %v1210, %v1239
      %v1259 = vrot.slane %v974, 2
      %v1260 = vsel %vm581, %v1238, %v1259
      %1261 = vrot.lane.b32.xlu0 %v1225, 64
      %v1262 = vpop.permute.xlu0 %1261
      %1263 = vrot.lane.b32.xlu0 %v1227, 64
      %v1264 = vpop.permute.xlu0 %1263
      %1265 = vrot.lane.b32.xlu0 %v1229, 64
      %v1266 = vpop.permute.xlu0 %1265
      %1267 = vrot.lane.b32.xlu0 %v1231, 64
      %v1268 = vpop.permute.xlu0 %1267
      %1269 = vrot.lane.b32.xlu0 %v1233, 64
      %v1270 = vpop.permute.xlu0 %1269
      %1271 = vrot.lane.b32.xlu0 %v1235, 64
      %v1272 = vpop.permute.xlu0 %1271
      %1273 = vrot.lane.b32.xlu0 %v1237, 64
      %v1274 = vpop.permute.xlu0 %1273
      %1275 = vrot.lane.b32.xlu0 %v1239, 64
      %v1276 = vpop.permute.xlu0 %1275
      %1277 = vrot.lane.b32.xlu0 %v1260, 64
      %v1278 = vpop.permute.xlu0 %1277
      %v1288 = vadd.f32 %v1249, %v1262
      %v1289 = vadd.f32 %v1250, %v1264
      %v1290 = vadd.f32 %v1251, %v1266
      %v1291 = vadd.f32 %v1252, %v1268
      %v1292 = vadd.f32 %v1253, %v1270
      %v1293 = vadd.f32 %v1254, %v1272
      %v1294 = vadd.f32 %v1255, %v1274
      %v1295 = vadd.f32 %v1256, %v1276
      %v1296 = vadd.f32 %v1257, %v1278
      %v1307 = vrot.slane %v1015, 3
      %v1308 = vrot.slane %v1020, 3
      %v1309 = vsel %vm631, %v1307, %v1308
      %v1310 = vrot.slane %v1024, 3
      %v1311 = vsel %vm631, %v1308, %v1310
      %v1312 = vrot.slane %v1030, 3
      %v1313 = vsel %vm631, %v1310, %v1312
      %v1314 = vrot.slane %v1034, 3
      %v1315 = vsel %vm631, %v1312, %v1314
      %v1316 = vrot.slane %v1040, 3
      %v1317 = vsel %vm631, %v1314, %v1316
      %v1318 = vrot.slane %v1044, 3
      %v1319 = vsel %vm631, %v1316, %v1318
      %v1320 = vrot.slane %v1050, 3
      %v1321 = vsel %vm631, %v1318, %v1320
      %v1322 = vrot.slane %v1054, 3
      %v1323 = vsel %vm631, %v1320, %v1322
      %v1324 = vrot.slane %v1060, 3
      %v1325 = vsel %vm631, %v1322, %v1324
      %v1335 = vadd.f32 %v1288, %v1309
      %v1336 = vadd.f32 %v1289, %v1311
      %v1337 = vadd.f32 %v1290, %v1313
      %v1338 = vadd.f32 %v1291, %v1315
      %v1339 = vadd.f32 %v1292, %v1317
      %v1340 = vadd.f32 %v1293, %v1319
      %v1341 = vadd.f32 %v1294, %v1321
      %v1342 = vadd.f32 %v1295, %v1323
      %v1343 = vadd.f32 %v1296, %v1325
      %vm1344 = vcmask 1043456
      %v1345 = vrot.slane %v1015, 4
      %v1346 = vrot.slane %v1020, 4
      %v1347 = vsel %vm1344, %v1345, %v1346
      %v1348 = vrot.slane %v1024, 4
      %v1349 = vsel %vm1344, %v1346, %v1348
      %v1350 = vrot.slane %v1030, 4
      %v1351 = vsel %vm1344, %v1348, %v1350
      %v1352 = vrot.slane %v1034, 4
      %v1353 = vsel %vm1344, %v1350, %v1352
      %v1354 = vrot.slane %v1040, 4
      %v1355 = vsel %vm1344, %v1352, %v1354
      %v1356 = vrot.slane %v1044, 4
      %v1357 = vsel %vm1344, %v1354, %v1356
      %v1358 = vrot.slane %v1050, 4
      %v1359 = vsel %vm1344, %v1356, %v1358
      %v1360 = vrot.slane %v1054, 4
      %v1361 = vsel %vm1344, %v1358, %v1360
      %v1362 = vrot.slane %v1060, 4
      %v1363 = vsel %vm1344, %v1360, %v1362
      %1364 = vrot.lane.b32.xlu0 %v1347, 64
      %v1365 = vpop.permute.xlu0 %1364
      %1366 = vrot.lane.b32.xlu0 %v1349, 64
      %v1367 = vpop.permute.xlu0 %1366
      %1368 = vrot.lane.b32.xlu0 %v1351, 64
      %v1369 = vpop.permute.xlu0 %1368
      %1370 = vrot.lane.b32.xlu0 %v1353, 64
      %v1371 = vpop.permute.xlu0 %1370
      %1372 = vrot.lane.b32.xlu0 %v1355, 64
      %v1373 = vpop.permute.xlu0 %1372
      %1374 = vrot.lane.b32.xlu0 %v1357, 64
      %v1375 = vpop.permute.xlu0 %1374
      %1376 = vrot.lane.b32.xlu0 %v1359, 64
      %v1377 = vpop.permute.xlu0 %1376
      %1378 = vrot.lane.b32.xlu0 %v1361, 64
      %v1379 = vpop.permute.xlu0 %1378
      %1380 = vrot.lane.b32.xlu0 %v1363, 64
      %v1381 = vpop.permute.xlu0 %1380
      %v1391 = vadd.f32 %v1335, %v1365
      %v1392 = vadd.f32 %v1336, %v1367
      %v1393 = vadd.f32 %v1337, %v1369
      %v1394 = vadd.f32 %v1338, %v1371
      %v1395 = vadd.f32 %v1339, %v1373
      %v1396 = vadd.f32 %v1340, %v1375
      %v1397 = vadd.f32 %v1341, %v1377
      %v1398 = vadd.f32 %v1342, %v1379
      %v1399 = vadd.f32 %v1343, %v1381
      %v1410 = vrot.slane %v1022, 4
      %v1411 = vrot.slane %v1026, 4
      %v1412 = vsel %vm1344, %v1410, %v1411
      %v1413 = vrot.slane %v1032, 4
      %v1414 = vsel %vm1344, %v1411, %v1413
      %v1415 = vrot.slane %v1036, 4
      %v1416 = vsel %vm1344, %v1413, %v1415
      %v1417 = vrot.slane %v1042, 4
      %v1418 = vsel %vm1344, %v1415, %v1417
      %v1419 = vrot.slane %v1046, 4
      %v1420 = vsel %vm1344, %v1417, %v1419
      %v1421 = vrot.slane %v1052, 4
      %v1422 = vsel %vm1344, %v1419, %v1421
      %v1423 = vrot.slane %v1056, 4
      %v1424 = vsel %vm1344, %v1421, %v1423
      %v1425 = vrot.slane %v1062, 4
      %v1426 = vsel %vm1344, %v1423, %v1425
      %v1427 = vrot.slane %v1065, 4
      %v1428 = vsel %vm1344, %v1425, %v1427
      %v1438 = vadd.f32 %v1391, %v1412
      %v1439 = vadd.f32 %v1392, %v1414
      %v1440 = vadd.f32 %v1393, %v1416
      %v1441 = vadd.f32 %v1394, %v1418
      %v1442 = vadd.f32 %v1395, %v1420
      %v1443 = vadd.f32 %v1396, %v1422
      %v1444 = vadd.f32 %v1397, %v1424
      %v1445 = vadd.f32 %v1398, %v1426
      %v1446 = vadd.f32 %v1399, %v1428
      %vm1447 = vcmask 1042432
      %v1448 = vrot.slane %v1022, 5
      %v1449 = vrot.slane %v1026, 5
      %v1450 = vsel %vm1447, %v1448, %v1449
      %v1451 = vrot.slane %v1032, 5
      %v1452 = vsel %vm1447, %v1449, %v1451
      %v1453 = vrot.slane %v1036, 5
      %v1454 = vsel %vm1447, %v1451, %v1453
      %v1455 = vrot.slane %v1042, 5
      %v1456 = vsel %vm1447, %v1453, %v1455
      %v1457 = vrot.slane %v1046, 5
      %v1458 = vsel %vm1447, %v1455, %v1457
      %v1459 = vrot.slane %v1052, 5
      %v1460 = vsel %vm1447, %v1457, %v1459
      %v1461 = vrot.slane %v1056, 5
      %v1462 = vsel %vm1447, %v1459, %v1461
      %v1463 = vrot.slane %v1062, 5
      %v1464 = vsel %vm1447, %v1461, %v1463
      %v1465 = vrot.slane %v1065, 5
      %v1466 = vsel %vm1447, %v1463, %v1465
      %1467 = vrot.lane.b32.xlu0 %v1450, 64
      %v1468 = vpop.permute.xlu0 %1467
      %1469 = vrot.lane.b32.xlu0 %v1452, 64
      %v1470 = vpop.permute.xlu0 %1469
      %1471 = vrot.lane.b32.xlu0 %v1454, 64
      %v1472 = vpop.permute.xlu0 %1471
      %1473 = vrot.lane.b32.xlu0 %v1456, 64
      %v1474 = vpop.permute.xlu0 %1473
      %1475 = vrot.lane.b32.xlu0 %v1458, 64
      %v1476 = vpop.permute.xlu0 %1475
      %1477 = vrot.lane.b32.xlu0 %v1460, 64
      %v1478 = vpop.permute.xlu0 %1477
      %1479 = vrot.lane.b32.xlu0 %v1462, 64
      %v1480 = vpop.permute.xlu0 %1479
      %1481 = vrot.lane.b32.xlu0 %v1464, 64
      %v1482 = vpop.permute.xlu0 %1481
      %1483 = vrot.lane.b32.xlu0 %v1466, 64
      %v1484 = vpop.permute.xlu0 %1483
      %v1494 = vadd.f32 %v1438, %v1468
      %v1495 = vadd.f32 %v1439, %v1470
      %v1496 = vadd.f32 %v1440, %v1472
      %v1497 = vadd.f32 %v1441, %v1474
      %v1498 = vadd.f32 %v1442, %v1476
      %v1499 = vadd.f32 %v1443, %v1478
      %v1500 = vadd.f32 %v1444, %v1480
      %v1501 = vadd.f32 %v1445, %v1482
      %v1502 = vadd.f32 %v1446, %v1484
      %vm1513 = vcmask 1041408
      %v1514 = vrot.slane %v1108, 6
      %v1515 = vrot.slane %v1111, 6
      %v1516 = vsel %vm1513, %v1514, %v1515
      %v1517 = vrot.slane %v1116, 6
      %v1518 = vsel %vm1513, %v1515, %v1517
      %v1519 = vrot.slane %v1119, 6
      %v1520 = vsel %vm1513, %v1517, %v1519
      %v1521 = vrot.slane %v1124, 6
      %v1522 = vsel %vm1513, %v1519, %v1521
      %v1523 = vrot.slane %v1127, 6
      %v1524 = vsel %vm1513, %v1521, %v1523
      %v1525 = vrot.slane %v1132, 6
      %v1526 = vsel %vm1513, %v1523, %v1525
      %v1527 = vrot.slane %v1135, 6
      %v1528 = vsel %vm1513, %v1525, %v1527
      %v1529 = vrot.slane %v1140, 6
      %v1530 = vsel %vm1513, %v1527, %v1529
      %v1531 = vrot.slane %v1143, 6
      %v1532 = vsel %vm1513, %v1529, %v1531
      %v1542 = vadd.f32 %v1494, %v1516
      %v1543 = vadd.f32 %v1495, %v1518
      %v1544 = vadd.f32 %v1496, %v1520
      %v1545 = vadd.f32 %v1497, %v1522
      %v1546 = vadd.f32 %v1498, %v1524
      %v1547 = vadd.f32 %v1499, %v1526
      %v1548 = vadd.f32 %v1500, %v1528
      %v1549 = vadd.f32 %v1501, %v1530
      %v1550 = vadd.f32 %v1502, %v1532
      %v1552 = vlaneseq
      %v1553 = vshrl.u32 %v1552, 7
      %v1554 = vsub.s32 0, %v1553
      %v1555 = vrot.slane %v480, %v1554
      %v1557 = vadd.f32 %v1542, %v1555
      %v1558 = vadd.f32 %v1543, %v1555
      %v1559 = vadd.f32 %v1544, %v1555
      %v1560 = vadd.f32 %v1545, %v1555
      %v1561 = vadd.f32 %v1546, %v1555
      %v1562 = vadd.f32 %v1547, %v1555
      %v1563 = vadd.f32 %v1548, %v1555
      %v1564 = vadd.f32 %v1549, %v1555
      %v1565 = vadd.f32 %v1550, %v1555
      %v1566 = vmax.f32 %v1557, 0.0
      %v1567 = vmax.f32 %v1558, 0.0
      %v1568 = vmax.f32 %v1559, 0.0
      %v1569 = vmax.f32 %v1560, 0.0
      %v1570 = vmax.f32 %v1561, 0.0
      %v1571 = vmax.f32 %v1562, 0.0
      %v1572 = vmax.f32 %v1563, 0.0
      %v1573 = vmax.f32 %v1564, 0.0
      %v1574 = vmax.f32 %v1565, 0.0
      %v1575 = vpack.c.bf16 %v1567, %v1566
      %v1576 = vpack.c.bf16 %v1569, %v1568
      %v1577 = vpack.c.bf16 %v1571, %v1570
      %v1578 = vpack.c.bf16 %v1573, %v1572
      %v1579 = vpack.c.bf16 %v1574, %v1574
      %v1585 = vunpack.c.l.b16 %v1575
      %v1586 = vunpack.c.h.b16 %v1575
      %v1587 = vunpack.c.l.b16 %v1576
      %v1588 = vunpack.c.h.b16 %v1576
      %v1589 = vunpack.c.l.b16 %v1577
      %v1590 = vunpack.c.h.b16 %v1577
      %v1591 = vunpack.c.l.b16 %v1578
      %v1592 = vunpack.c.h.b16 %v1578
      %v1593 = vunpack.c.l.b16 %v1579
      %v1594 = vpack.c.b16 %v1585, %v1585
      %v1595 = vpack.c.b16 %v1586, %v1586
      %v1596 = vpack.c.b16 %v1587, %v1587
      %v1597 = vpack.c.b16 %v1588, %v1588
      %v1598 = vpack.c.b16 %v1589, %v1589
      %v1599 = vpack.c.b16 %v1590, %v1590
      %v1600 = vpack.c.b16 %v1591, %v1591
      %v1601 = vpack.c.b16 %v1592, %v1592
      %v1602 = vpack.c.b16 %v1593, %v1593
      %vm1612 = vcmask 519168
      %1613 = vst.msk [vmem:[%s224] sm:$0xf] %vm1612, %v1594
      %1614 = vst.msk [vmem:[%s224 + $0x4] sm:$0xf] %vm1612, %v1595
      %1615 = vst.msk [vmem:[%s224 + $0x8] sm:$0xf] %vm1612, %v1596
      %1616 = vst.msk [vmem:[%s224 + $0xc] sm:$0xf] %vm1612, %v1597
      %1617 = vst.msk [vmem:[%s224 + $0x10] sm:$0xf] %vm1612, %v1598
      %1618 = vst.msk [vmem:[%s224 + $0x14] sm:$0xf] %vm1612, %v1599
      %1619 = vst.msk [vmem:[%s224 + $0x18] sm:$0xf] %vm1612, %v1600
      %1620 = vst.msk [vmem:[%s224 + $0x1c] sm:$0xf] %vm1612, %v1601
      %1621 = vst.msk [vmem:[%s224 + $0x20] sm:$0xf] %vm1612, %v1602
      %p1622 = scmp.lt.s32.totalorder %s16, 1
      %s1623 = scalar_select %p1622, %s16, 1
      %s1624 = smul.addr %s1623, 9
      %s1625 = smul.addr %s1624, 4
      %s1626 = scalar_lea.vmem %s5, %s1625
      // Predicated region
      $region41: #{supervised_policy_forward.4} parent=39 // pred_check
        %p1627 = pneg %p144
      $region42: #{supervised_policy_forward.4} parent=39 // pred_check_branch
        %1629 = sbr.rel (%p1627) target = $region44
      $region43: #{supervised_policy_forward.4} parent=39 // pred_region
        _
      $region44: #{supervised_policy_forward.4} parent=39 // pred_fallthru
        _
    $region40: #{supervised_policy_forward.4} parent=5 // pred_fallthru
      _
    %p1630 = scmp.le.s32.totalorder 2, %s11
    // Predicated region
    $region45: #{supervised_policy_forward.4} parent=5 // pred_check
      %p1631 = pneg %p1630
    $region46: #{supervised_policy_forward.4} parent=5 // pred_check_branch
      %1633 = sbr.rel (%p1631) target = $region48
    $region47: #{supervised_policy_forward.4} parent=5 // pred_region
      %s1634 = ssub.s32 %s11, 2
      // Predicated region
      $region49: #{supervised_policy_forward.4} parent=47 // pred_check
        %p1635 = pneg %p150
      $region50: #{supervised_policy_forward.4} parent=47 // pred_check_branch
        %1637 = sbr.rel (%p1635) target = $region52
      $region51: #{supervised_policy_forward.4} parent=47 // pred_region
        %p1638 = scmp.lt.s32.totalorder %s17, 1
        %s1639 = scalar_select %p1638, %s17, 1
        %s1640 = smul.addr %s1639, 9
        %s1641 = smul.addr %s1640, 4
        %s1642 = scalar_lea.vmem %s5, %s1641
      $region52: #{supervised_policy_forward.4} parent=47 // pred_fallthru
        _
    $region48: #{supervised_policy_forward.4} parent=5 // pred_fallthru
      _
  $region6: #{supervised_policy_forward.4} parent=0 // loop_footer
    %s15 = sadd.s32 1, %s11
  $region7: #{supervised_policy_forward.4} parent=0 // loop_footer_branch
    %10 = sbr.rel target = $region3
  $region8: #{supervised_policy_forward.4} parent=0 // loop_exit
    _

// kernel: supervised_policy_forward.5
$region0: #{supervised_policy_forward.5}
  #allocation0 [shape = 'u32[]', space=smem, size = 0x4, offset = 0x4, fixed_abs, tag = 'smem constant byte address 0x4 - core index']
  #allocation1 [shape = 'u32[144,128]{1,0:T(1,128)}', space=vmem, size = 0x12000, scoped, tag = 'internal scratch']
  %s0 = inlined_call_operand.vmem [shape: bf16[8,4608], index: 0, kind: input, shape index: {}]
  %s1 = inlined_call_operand.vmem [shape: bf16[4608,64], index: 1, kind: input, shape index: {}]
  %s2 = inlined_call_operand.vmem [shape: f32[1,64], index: 2, kind: input, shape index: {}]
  %s3 = inlined_call_operand.vmem [shape: bf16[64,64], index: 3, kind: input, shape index: {}]
  %s4 = inlined_call_operand.vmem [shape: f32[1,64], index: 4, kind: input, shape index: {}]
  %s5 = inlined_call_operand.vmem [shape: bf16[64,128], index: 5, kind: input, shape index: {}]
  %s6 = inlined_call_operand.vmem [shape: f32[1,128], index: 6, kind: input, shape index: {}]
  %s7 = inlined_call_operand.vmem [shape: f32[8,128], index: 7, kind: output, shape index: {}]
  %s8 = sld [smem:[#allocation0]]
  $region38: #{supervised_policy_forward.5} parent=0
    _
  %s10 = ssub.s32 1, %s8
  %s11 = scalar_select 0, %s10, %s8
  // Predicated region
  $region2: #{supervised_policy_forward.5} parent=0 // pred_check
    _
  $region3: #{supervised_policy_forward.5} parent=0 // pred_check_branch
    %13 = sbr.rel (0) target = $region5
  $region4: #{supervised_policy_forward.5} parent=0 // pred_region
    _
  $region5: #{supervised_policy_forward.5} parent=0 // pred_fallthru
    _
  // Predicated region
  $region6: #{supervised_policy_forward.5} parent=0 // pred_check
    _
  $region7: #{supervised_policy_forward.5} parent=0 // pred_check_branch
    %15 = sbr.rel (0) target = $region9
  $region8: #{supervised_policy_forward.5} parent=0 // pred_region
    _
  $region9: #{supervised_policy_forward.5} parent=0 // pred_fallthru
    _
  // Predicated region
  $region10: #{supervised_policy_forward.5} parent=0 // pred_check
    _
  $region11: #{supervised_policy_forward.5} parent=0 // pred_check_branch
    %17 = sbr.rel (0) target = $region13
  $region12: #{supervised_policy_forward.5} parent=0 // pred_region
    _
  $region13: #{supervised_policy_forward.5} parent=0 // pred_fallthru
    _
  // Predicated region
  $region14: #{supervised_policy_forward.5} parent=0 // pred_check
    _
  $region15: #{supervised_policy_forward.5} parent=0 // pred_check_branch
    %19 = sbr.rel (0) target = $region17
  $region16: #{supervised_policy_forward.5} parent=0 // pred_region
    _
  $region17: #{supervised_policy_forward.5} parent=0 // pred_fallthru
    _
  // Predicated region
  $region18: #{supervised_policy_forward.5} parent=0 // pred_check
    _
  $region19: #{supervised_policy_forward.5} parent=0 // pred_check_branch
    %21 = sbr.rel (0) target = $region21
  $region20: #{supervised_policy_forward.5} parent=0 // pred_region
    _
  $region21: #{supervised_policy_forward.5} parent=0 // pred_fallthru
    _
  // Predicated region
  $region22: #{supervised_policy_forward.5} parent=0 // pred_check
    _
  $region23: #{supervised_policy_forward.5} parent=0 // pred_check_branch
    %23 = sbr.rel (0) target = $region25
  $region24: #{supervised_policy_forward.5} parent=0 // pred_region
    _
  $region25: #{supervised_policy_forward.5} parent=0 // pred_fallthru
    _
  // Predicated region
  $region26: #{supervised_policy_forward.5} parent=0 // pred_check
    _
  $region27: #{supervised_policy_forward.5} parent=0 // pred_check_branch
    %25 = sbr.rel (0) target = $region29
  $region28: #{supervised_policy_forward.5} parent=0 // pred_region
    _
  $region29: #{supervised_policy_forward.5} parent=0 // pred_fallthru
    _
  %v27 = vld [vmem:[%s0] sm:$0xff]
  %v28 = vld [vmem:[%s0 + $0x8] sm:$0xff]
  %v29 = vld [vmem:[%s0 + $0x10] sm:$0xff]
  %v30 = vld [vmem:[%s0 + $0x18] sm:$0xff]
  %v31 = vld [vmem:[%s0 + $0x20] sm:$0xff]
  %v32 = vld [vmem:[%s0 + $0x28] sm:$0xff]
  %v33 = vld [vmem:[%s0 + $0x30] sm:$0xff]
  %v34 = vld [vmem:[%s0 + $0x38] sm:$0xff]
  %v35 = vld [vmem:[%s0 + $0x40] sm:$0xff]
  %v36 = vld [vmem:[%s0 + $0x48] sm:$0xff]
  %v37 = vld [vmem:[%s0 + $0x50] sm:$0xff]
  %v38 = vld [vmem:[%s0 + $0x58] sm:$0xff]
  %v39 = vld [vmem:[%s0 + $0x60] sm:$0xff]
  %v40 = vld [vmem:[%s0 + $0x68] sm:$0xff]
  %v41 = vld [vmem:[%s0 + $0x70] sm:$0xff]
  %v42 = vld [vmem:[%s0 + $0x78] sm:$0xff]
  %v43 = vld [vmem:[%s0 + $0x80] sm:$0xff]
  %v44 = vld [vmem:[%s0 + $0x88] sm:$0xff]
  %v45 = vld [vmem:[%s1] sm:$0xf]
  %v46 = vld [vmem:[%s1 + $0x4] sm:$0xf]
  %v47 = vld [vmem:[%s1 + $0x8] sm:$0xf]
  %v48 = vld [vmem:[%s1 + $0xc] sm:$0xf]
  %v49 = vld [vmem:[%s1 + $0x10] sm:$0xf]
  %v50 = vld [vmem:[%s1 + $0x14] sm:$0xf]
  %v51 = vld [vmem:[%s1 + $0x18] sm:$0xf]
  %v52 = vld [vmem:[%s1 + $0x1c] sm:$0xf]
  %v53 = vld [vmem:[%s1 + $0x20] sm:$0xf]
  %v54 = vld [vmem:[%s1 + $0x24] sm:$0xf]
  %v55 = vld [vmem:[%s1 + $0x28] sm:$0xf]
  %v56 = vld [vmem:[%s1 + $0x2c] sm:$0xf]
  %v57 = vld [vmem:[%s1 + $0x30] sm:$0xf]
  %v58 = vld [vmem:[%s1 + $0x34] sm:$0xf]
  %v59 = vld [vmem:[%s1 + $0x38] sm:$0xf]
  %v60 = vld [vmem:[%s1 + $0x3c] sm:$0xf]
  %v61 = vld [vmem:[%s1 + $0x40] sm:$0xf]
  %v62 = vld [vmem:[%s1 + $0x44] sm:$0xf]
  %v63 = vld [vmem:[%s1 + $0x48] sm:$0xf]
  %v64 = vld [vmem:[%s1 + $0x4c] sm:$0xf]
  %v65 = vld [vmem:[%s1 + $0x50] sm:$0xf]
  %v66 = vld [vmem:[%s1 + $0x54] sm:$0xf]
  %v67 = vld [vmem:[%s1 + $0x58] sm:$0xf]
  %v68 = vld [vmem:[%s1 + $0x5c] sm:$0xf]
  %v69 = vld [vmem:[%s1 + $0x60] sm:$0xf]
  %v70 = vld [vmem:[%s1 + $0x64] sm:$0xf]
  %v71 = vld [vmem:[%s1 + $0x68] sm:$0xf]
  %v72 = vld [vmem:[%s1 + $0x6c] sm:$0xf]
  %v73 = vld [vmem:[%s1 + $0x70] sm:$0xf]
  %v74 = vld [vmem:[%s1 + $0x74] sm:$0xf]
  %v75 = vld [vmem:[%s1 + $0x78] sm:$0xf]
  %v76 = vld [vmem:[%s1 + $0x7c] sm:$0xf]
  %v77 = vld [vmem:[%s1 + $0x80] sm:$0xf]
  %v78 = vld [vmem:[%s1 + $0x84] sm:$0xf]
  %v79 = vld [vmem:[%s1 + $0x88] sm:$0xf]
  %v80 = vld [vmem:[%s1 + $0x8c] sm:$0xf]
  %v81 = vld [vmem:[%s1 + $0x90] sm:$0xf]
  %v82 = vld [vmem:[%s1 + $0x94] sm:$0xf]
  %v83 = vld [vmem:[%s1 + $0x98] sm:$0xf]
  %v84 = vld [vmem:[%s1 + $0x9c] sm:$0xf]
  %v85 = vld [vmem:[%s1 + $0xa0] sm:$0xf]
  %v86 = vld [vmem:[%s1 + $0xa4] sm:$0xf]
  %v87 = vld [vmem:[%s1 + $0xa8] sm:$0xf]
  %v88 = vld [vmem:[%s1 + $0xac] sm:$0xf]
  %v89 = vld [vmem:[%s1 + $0xb0] sm:$0xf]
  %v90 = vld [vmem:[%s1 + $0xb4] sm:$0xf]
  %v91 = vld [vmem:[%s1 + $0xb8] sm:$0xf]
  %v92 = vld [vmem:[%s1 + $0xbc] sm:$0xf]
  %v93 = vld [vmem:[%s1 + $0xc0] sm:$0xf]
  %v94 = vld [vmem:[%s1 + $0xc4] sm:$0xf]
  %v95 = vld [vmem:[%s1 + $0xc8] sm:$0xf]
  %v96 = vld [vmem:[%s1 + $0xcc] sm:$0xf]
  %v97 = vld [vmem:[%s1 + $0xd0] sm:$0xf]
  %v98 = vld [vmem:[%s1 + $0xd4] sm:$0xf]
  %v99 = vld [vmem:[%s1 + $0xd8] sm:$0xf]
  %v100 = vld [vmem:[%s1 + $0xdc] sm:$0xf]
  %v101 = vld [vmem:[%s1 + $0xe0] sm:$0xf]
  %v102 = vld [vmem:[%s1 + $0xe4] sm:$0xf]
  %v103 = vld [vmem:[%s1 + $0xe8] sm:$0xf]
  %v104 = vld [vmem:[%s1 + $0xec] sm:$0xf]
  %v105 = vld [vmem:[%s1 + $0xf0] sm:$0xf]
  %v106 = vld [vmem:[%s1 + $0xf4] sm:$0xf]
  %v107 = vld [vmem:[%s1 + $0xf8] sm:$0xf]
  %v108 = vld [vmem:[%s1 + $0xfc] sm:$0xf]
  %v109 = vld [vmem:[%s1 + $0x100] sm:$0xf]
  %v110 = vld [vmem:[%s1 + $0x104] sm:$0xf]
  %v111 = vld [vmem:[%s1 + $0x108] sm:$0xf]
  %v112 = vld [vmem:[%s1 + $0x10c] sm:$0xf]
  %v113 = vld [vmem:[%s1 + $0x110] sm:$0xf]
  %v114 = vld [vmem:[%s1 + $0x114] sm:$0xf]
  %v115 = vld [vmem:[%s1 + $0x118] sm:$0xf]
  %v116 = vld [vmem:[%s1 + $0x11c] sm:$0xf]
  %v117 = vld [vmem:[%s1 + $0x120] sm:$0xf]
  %v118 = vld [vmem:[%s1 + $0x124] sm:$0xf]
  %v119 = vld [vmem:[%s1 + $0x128] sm:$0xf]
  %v120 = vld [vmem:[%s1 + $0x12c] sm:$0xf]
  %v121 = vld [vmem:[%s1 + $0x130] sm:$0xf]
  %v122 = vld [vmem:[%s1 + $0x134] sm:$0xf]
  %v123 = vld [vmem:[%s1 + $0x138] sm:$0xf]
  %v124 = vld [vmem:[%s1 + $0x13c] sm:$0xf]
  %v125 = vld [vmem:[%s1 + $0x140] sm:$0xf]
  %v126 = vld [vmem:[%s1 + $0x144] sm:$0xf]
  %v127 = vld [vmem:[%s1 + $0x148] sm:$0xf]
  %v128 = vld [vmem:[%s1 + $0x14c] sm:$0xf]
  %v129 = vld [vmem:[%s1 + $0x150] sm:$0xf]
  %v130 = vld [vmem:[%s1 + $0x154] sm:$0xf]
  %v131 = vld [vmem:[%s1 + $0x158] sm:$0xf]
  %v132 = vld [vmem:[%s1 + $0x15c] sm:$0xf]
  %v133 = vld [vmem:[%s1 + $0x160] sm:$0xf]
  %v134 = vld [vmem:[%s1 + $0x164] sm:$0xf]
  %v135 = vld [vmem:[%s1 + $0x168] sm:$0xf]
  %v136 = vld [vmem:[%s1 + $0x16c] sm:$0xf]
  %v137 = vld [vmem:[%s1 + $0x170] sm:$0xf]
  %v138 = vld [vmem:[%s1 + $0x174] sm:$0xf]
  %v139 = vld [vmem:[%s1 + $0x178] sm:$0xf]
  %v140 = vld [vmem:[%s1 + $0x17c] sm:$0xf]
  %v141 = vld [vmem:[%s1 + $0x180] sm:$0xf]
  %v142 = vld [vmem:[%s1 + $0x184] sm:$0xf]
  %v143 = vld [vmem:[%s1 + $0x188] sm:$0xf]
  %v144 = vld [vmem:[%s1 + $0x18c] sm:$0xf]
  %v145 = vld [vmem:[%s1 + $0x190] sm:$0xf]
  %v146 = vld [vmem:[%s1 + $0x194] sm:$0xf]
  %v147 = vld [vmem:[%s1 + $0x198] sm:$0xf]
  %v148 = vld [vmem:[%s1 + $0x19c] sm:$0xf]
  %v149 = vld [vmem:[%s1 + $0x1a0] sm:$0xf]
  %v150 = vld [vmem:[%s1 + $0x1a4] sm:$0xf]
  %v151 = vld [vmem:[%s1 + $0x1a8] sm:$0xf]
  %v152 = vld [vmem:[%s1 + $0x1ac] sm:$0xf]
  %v153 = vld [vmem:[%s1 + $0x1b0] sm:$0xf]
  %v154 = vld [vmem:[%s1 + $0x1b4] sm:$0xf]
  %v155 = vld [vmem:[%s1 + $0x1b8] sm:$0xf]
  %v156 = vld [vmem:[%s1 + $0x1bc] sm:$0xf]
  %v157 = vld [vmem:[%s1 + $0x1c0] sm:$0xf]
  %v158 = vld [vmem:[%s1 + $0x1c4] sm:$0xf]
  %v159 = vld [vmem:[%s1 + $0x1c8] sm:$0xf]
  %v160 = vld [vmem:[%s1 + $0x1cc] sm:$0xf]
  %v161 = vld [vmem:[%s1 + $0x1d0] sm:$0xf]
  %v162 = vld [vmem:[%s1 + $0x1d4] sm:$0xf]
  %v163 = vld [vmem:[%s1 + $0x1d8] sm:$0xf]
  %v164 = vld [vmem:[%s1 + $0x1dc] sm:$0xf]
  %v165 = vld [vmem:[%s1 + $0x1e0] sm:$0xf]
  %v166 = vld [vmem:[%s1 + $0x1e4] sm:$0xf]
  %v167 = vld [vmem:[%s1 + $0x1e8] sm:$0xf]
  %v168 = vld [vmem:[%s1 + $0x1ec] sm:$0xf]
  %v169 = vld [vmem:[%s1 + $0x1f0] sm:$0xf]
  %v170 = vld [vmem:[%s1 + $0x1f4] sm:$0xf]
  %v171 = vld [vmem:[%s1 + $0x1f8] sm:$0xf]
  %v172 = vld [vmem:[%s1 + $0x1fc] sm:$0xf]
  %v173 = vld [vmem:[%s1 + $0x200] sm:$0xf]
  %v174 = vld [vmem:[%s1 + $0x204] sm:$0xf]
  %v175 = vld [vmem:[%s1 + $0x208] sm:$0xf]
  %v176 = vld [vmem:[%s1 + $0x20c] sm:$0xf]
  %v177 = vld [vmem:[%s1 + $0x210] sm:$0xf]
  %v178 = vld [vmem:[%s1 + $0x214] sm:$0xf]
  %v179 = vld [vmem:[%s1 + $0x218] sm:$0xf]
  %v180 = vld [vmem:[%s1 + $0x21c] sm:$0xf]
  %v181 = vld [vmem:[%s1 + $0x220] sm:$0xf]
  %v182 = vld [vmem:[%s1 + $0x224] sm:$0xf]
  %v183 = vld [vmem:[%s1 + $0x228] sm:$0xf]
  %v184 = vld [vmem:[%s1 + $0x22c] sm:$0xf]
  %v185 = vld [vmem:[%s1 + $0x230] sm:$0xf]
  %v186 = vld [vmem:[%s1 + $0x234] sm:$0xf]
  %v187 = vld [vmem:[%s1 + $0x238] sm:$0xf]
  %v188 = vld [vmem:[%s1 + $0x23c] sm:$0xf]
  %v189 = vld [vmem:[%s1 + $0x240] sm:$0xf]
  %v190 = vld [vmem:[%s1 + $0x244] sm:$0xf]
  %v191 = vld [vmem:[%s1 + $0x248] sm:$0xf]
  %v192 = vld [vmem:[%s1 + $0x24c] sm:$0xf]
  %v193 = vld [vmem:[%s1 + $0x250] sm:$0xf]
  %v194 = vld [vmem:[%s1 + $0x254] sm:$0xf]
  %v195 = vld [vmem:[%s1 + $0x258] sm:$0xf]
  %v196 = vld [vmem:[%s1 + $0x25c] sm:$0xf]
  %v197 = vld [vmem:[%s1 + $0x260] sm:$0xf]
  %v198 = vld [vmem:[%s1 + $0x264] sm:$0xf]
  %v199 = vld [vmem:[%s1 + $0x268] sm:$0xf]
  %v200 = vld [vmem:[%s1 + $0x26c] sm:$0xf]
  %v201 = vld [vmem:[%s1 + $0x270] sm:$0xf]
  %v202 = vld [vmem:[%s1 + $0x274] sm:$0xf]
  %v203 = vld [vmem:[%s1 + $0x278] sm:$0xf]
  %v204 = vld [vmem:[%s1 + $0x27c] sm:$0xf]
  %v205 = vld [vmem:[%s1 + $0x280] sm:$0xf]
  %v206 = vld [vmem:[%s1 + $0x284] sm:$0xf]
  %v207 = vld [vmem:[%s1 + $0x288] sm:$0xf]
  %v208 = vld [vmem:[%s1 + $0x28c] sm:$0xf]
  %v209 = vld [vmem:[%s1 + $0x290] sm:$0xf]
  %v210 = vld [vmem:[%s1 + $0x294] sm:$0xf]
  %v211 = vld [vmem:[%s1 + $0x298] sm:$0xf]
  %v212 = vld [vmem:[%s1 + $0x29c] sm:$0xf]
  %v213 = vld [vmem:[%s1 + $0x2a0] sm:$0xf]
  %v214 = vld [vmem:[%s1 + $0x2a4] sm:$0xf]
  %v215 = vld [vmem:[%s1 + $0x2a8] sm:$0xf]
  %v216 = vld [vmem:[%s1 + $0x2ac] sm:$0xf]
  %v217 = vld [vmem:[%s1 + $0x2b0] sm:$0xf]
  %v218 = vld [vmem:[%s1 + $0x2b4] sm:$0xf]
  %v219 = vld [vmem:[%s1 + $0x2b8] sm:$0xf]
  %v220 = vld [vmem:[%s1 + $0x2bc] sm:$0xf]
  %v221 = vld [vmem:[%s1 + $0x2c0] sm:$0xf]
  %v222 = vld [vmem:[%s1 + $0x2c4] sm:$0xf]
  %v223 = vld [vmem:[%s1 + $0x2c8] sm:$0xf]
  %v224 = vld [vmem:[%s1 + $0x2cc] sm:$0xf]
  %v225 = vld [vmem:[%s1 + $0x2d0] sm:$0xf]
  %v226 = vld [vmem:[%s1 + $0x2d4] sm:$0xf]
  %v227 = vld [vmem:[%s1 + $0x2d8] sm:$0xf]
  %v228 = vld [vmem:[%s1 + $0x2dc] sm:$0xf]
  %v229 = vld [vmem:[%s1 + $0x2e0] sm:$0xf]
  %v230 = vld [vmem:[%s1 + $0x2e4] sm:$0xf]
  %v231 = vld [vmem:[%s1 + $0x2e8] sm:$0xf]
  %v232 = vld [vmem:[%s1 + $0x2ec] sm:$0xf]
  %v233 = vld [vmem:[%s1 + $0x2f0] sm:$0xf]
  %v234 = vld [vmem:[%s1 + $0x2f4] sm:$0xf]
  %v235 = vld [vmem:[%s1 + $0x2f8] sm:$0xf]
  %v236 = vld [vmem:[%s1 + $0x2fc] sm:$0xf]
  %v237 = vld [vmem:[%s1 + $0x300] sm:$0xf]
  %v238 = vld [vmem:[%s1 + $0x304] sm:$0xf]
  %v239 = vld [vmem:[%s1 + $0x308] sm:$0xf]
  %v240 = vld [vmem:[%s1 + $0x30c] sm:$0xf]
  %v241 = vld [vmem:[%s1 + $0x310] sm:$0xf]
  %v242 = vld [vmem:[%s1 + $0x314] sm:$0xf]
  %v243 = vld [vmem:[%s1 + $0x318] sm:$0xf]
  %v244 = vld [vmem:[%s1 + $0x31c] sm:$0xf]
  %v245 = vld [vmem:[%s1 + $0x320] sm:$0xf]
  %v246 = vld [vmem:[%s1 + $0x324] sm:$0xf]
  %v247 = vld [vmem:[%s1 + $0x328] sm:$0xf]
  %v248 = vld [vmem:[%s1 + $0x32c] sm:$0xf]
  %v249 = vld [vmem:[%s1 + $0x330] sm:$0xf]
  %v250 = vld [vmem:[%s1 + $0x334] sm:$0xf]
  %v251 = vld [vmem:[%s1 + $0x338] sm:$0xf]
  %v252 = vld [vmem:[%s1 + $0x33c] sm:$0xf]
  %v253 = vld [vmem:[%s1 + $0x340] sm:$0xf]
  %v254 = vld [vmem:[%s1 + $0x344] sm:$0xf]
  %v255 = vld [vmem:[%s1 + $0x348] sm:$0xf]
  %v256 = vld [vmem:[%s1 + $0x34c] sm:$0xf]
  %v257 = vld [vmem:[%s1 + $0x350] sm:$0xf]
  %v258 = vld [vmem:[%s1 + $0x354] sm:$0xf]
  %v259 = vld [vmem:[%s1 + $0x358] sm:$0xf]
  %v260 = vld [vmem:[%s1 + $0x35c] sm:$0xf]
  %v261 = vld [vmem:[%s1 + $0x360] sm:$0xf]
  %v262 = vld [vmem:[%s1 + $0x364] sm:$0xf]
  %v263 = vld [vmem:[%s1 + $0x368] sm:$0xf]
  %v264 = vld [vmem:[%s1 + $0x36c] sm:$0xf]
  %v265 = vld [vmem:[%s1 + $0x370] sm:$0xf]
  %v266 = vld [vmem:[%s1 + $0x374] sm:$0xf]
  %v267 = vld [vmem:[%s1 + $0x378] sm:$0xf]
  %v268 = vld [vmem:[%s1 + $0x37c] sm:$0xf]
  %v269 = vld [vmem:[%s1 + $0x380] sm:$0xf]
  %v270 = vld [vmem:[%s1 + $0x384] sm:$0xf]
  %v271 = vld [vmem:[%s1 + $0x388] sm:$0xf]
  %v272 = vld [vmem:[%s1 + $0x38c] sm:$0xf]
  %v273 = vld [vmem:[%s1 + $0x390] sm:$0xf]
  %v274 = vld [vmem:[%s1 + $0x394] sm:$0xf]
  %v275 = vld [vmem:[%s1 + $0x398] sm:$0xf]
  %v276 = vld [vmem:[%s1 + $0x39c] sm:$0xf]
  %v277 = vld [vmem:[%s1 + $0x3a0] sm:$0xf]
  %v278 = vld [vmem:[%s1 + $0x3a4] sm:$0xf]
  %v279 = vld [vmem:[%s1 + $0x3a8] sm:$0xf]
  %v280 = vld [vmem:[%s1 + $0x3ac] sm:$0xf]
  %v281 = vld [vmem:[%s1 + $0x3b0] sm:$0xf]
  %v282 = vld [vmem:[%s1 + $0x3b4] sm:$0xf]
  %v283 = vld [vmem:[%s1 + $0x3b8] sm:$0xf]
  %v284 = vld [vmem:[%s1 + $0x3bc] sm:$0xf]
  %v285 = vld [vmem:[%s1 + $0x3c0] sm:$0xf]
  %v286 = vld [vmem:[%s1 + $0x3c4] sm:$0xf]
  %v287 = vld [vmem:[%s1 + $0x3c8] sm:$0xf]
  %v288 = vld [vmem:[%s1 + $0x3cc] sm:$0xf]
  %v289 = vld [vmem:[%s1 + $0x3d0] sm:$0xf]
  %v290 = vld [vmem:[%s1 + $0x3d4] sm:$0xf]
  %v291 = vld [vmem:[%s1 + $0x3d8] sm:$0xf]
  %v292 = vld [vmem:[%s1 + $0x3dc] sm:$0xf]
  %v293 = vld [vmem:[%s1 + $0x3e0] sm:$0xf]
  %v294 = vld [vmem:[%s1 + $0x3e4] sm:$0xf]
  %v295 = vld [vmem:[%s1 + $0x3e8] sm:$0xf]
  %v296 = vld [vmem:[%s1 + $0x3ec] sm:$0xf]
  %v297 = vld [vmem:[%s1 + $0x3f0] sm:$0xf]
  %v298 = vld [vmem:[%s1 + $0x3f4] sm:$0xf]
  %v299 = vld [vmem:[%s1 + $0x3f8] sm:$0xf]
  %v300 = vld [vmem:[%s1 + $0x3fc] sm:$0xf]
  %v301 = vld [vmem:[%s1 + $0x400] sm:$0xf]
  %v302 = vld [vmem:[%s1 + $0x404] sm:$0xf]
  %v303 = vld [vmem:[%s1 + $0x408] sm:$0xf]
  %v304 = vld [vmem:[%s1 + $0x40c] sm:$0xf]
  %v305 = vld [vmem:[%s1 + $0x410] sm:$0xf]
  %v306 = vld [vmem:[%s1 + $0x414] sm:$0xf]
  %v307 = vld [vmem:[%s1 + $0x418] sm:$0xf]
  %v308 = vld [vmem:[%s1 + $0x41c] sm:$0xf]
  %v309 = vld [vmem:[%s1 + $0x420] sm:$0xf]
  %v310 = vld [vmem:[%s1 + $0x424] sm:$0xf]
  %v311 = vld [vmem:[%s1 + $0x428] sm:$0xf]
  %v312 = vld [vmem:[%s1 + $0x42c] sm:$0xf]
  %v313 = vld [vmem:[%s1 + $0x430] sm:$0xf]
  %v314 = vld [vmem:[%s1 + $0x434] sm:$0xf]
  %v315 = vld [vmem:[%s1 + $0x438] sm:$0xf]
  %v316 = vld [vmem:[%s1 + $0x43c] sm:$0xf]
  %v317 = vld [vmem:[%s1 + $0x440] sm:$0xf]
  %v318 = vld [vmem:[%s1 + $0x444] sm:$0xf]
  %v319 = vld [vmem:[%s1 + $0x448] sm:$0xf]
  %v320 = vld [vmem:[%s1 + $0x44c] sm:$0xf]
  %v321 = vld [vmem:[%s1 + $0x450] sm:$0xf]
  %v322 = vld [vmem:[%s1 + $0x454] sm:$0xf]
  %v323 = vld [vmem:[%s1 + $0x458] sm:$0xf]
  %v324 = vld [vmem:[%s1 + $0x45c] sm:$0xf]
  %v325 = vld [vmem:[%s1 + $0x460] sm:$0xf]
  %v326 = vld [vmem:[%s1 + $0x464] sm:$0xf]
  %v327 = vld [vmem:[%s1 + $0x468] sm:$0xf]
  %v328 = vld [vmem:[%s1 + $0x46c] sm:$0xf]
  %v329 = vld [vmem:[%s1 + $0x470] sm:$0xf]
  %v330 = vld [vmem:[%s1 + $0x474] sm:$0xf]
  %v331 = vld [vmem:[%s1 + $0x478] sm:$0xf]
  %v332 = vld [vmem:[%s1 + $0x47c] sm:$0xf]
  %v333 = vld [vmem:[%s1 + $0x480] sm:$0xf]
  %v334 = vld [vmem:[%s1 + $0x484] sm:$0xf]
  %v335 = vld [vmem:[%s1 + $0x488] sm:$0xf]
  %v336 = vld [vmem:[%s1 + $0x48c] sm:$0xf]
  %v337 = vld [vmem:[%s1 + $0x490] sm:$0xf]
  %v338 = vld [vmem:[%s1 + $0x494] sm:$0xf]
  %v339 = vld [vmem:[%s1 + $0x498] sm:$0xf]
  %v340 = vld [vmem:[%s1 + $0x49c] sm:$0xf]
  %v341 = vld [vmem:[%s1 + $0x4a0] sm:$0xf]
  %v342 = vld [vmem:[%s1 + $0x4a4] sm:$0xf]
  %v343 = vld [vmem:[%s1 + $0x4a8] sm:$0xf]
  %v344 = vld [vmem:[%s1 + $0x4ac] sm:$0xf]
  %v345 = vld [vmem:[%s1 + $0x4b0] sm:$0xf]
  %v346 = vld [vmem:[%s1 + $0x4b4] sm:$0xf]
  %v347 = vld [vmem:[%s1 + $0x4b8] sm:$0xf]
  %v348 = vld [vmem:[%s1 + $0x4bc] sm:$0xf]
  %v349 = vld [vmem:[%s1 + $0x4c0] sm:$0xf]
  %v350 = vld [vmem:[%s1 + $0x4c4] sm:$0xf]
  %v351 = vld [vmem:[%s1 + $0x4c8] sm:$0xf]
  %v352 = vld [vmem:[%s1 + $0x4cc] sm:$0xf]
  %v353 = vld [vmem:[%s1 + $0x4d0] sm:$0xf]
  %v354 = vld [vmem:[%s1 + $0x4d4] sm:$0xf]
  %v355 = vld [vmem:[%s1 + $0x4d8] sm:$0xf]
  %v356 = vld [vmem:[%s1 + $0x4dc] sm:$0xf]
  %v357 = vld [vmem:[%s1 + $0x4e0] sm:$0xf]
  %v358 = vld [vmem:[%s1 + $0x4e4] sm:$0xf]
  %v359 = vld [vmem:[%s1 + $0x4e8] sm:$0xf]
  %v360 = vld [vmem:[%s1 + $0x4ec] sm:$0xf]
  %v361 = vld [vmem:[%s1 + $0x4f0] sm:$0xf]
  %v362 = vld [vmem:[%s1 + $0x4f4] sm:$0xf]
  %v363 = vld [vmem:[%s1 + $0x4f8] sm:$0xf]
  %v364 = vld [vmem:[%s1 + $0x4fc] sm:$0xf]
  %v365 = vld [vmem:[%s1 + $0x500] sm:$0xf]
  %v366 = vld [vmem:[%s1 + $0x504] sm:$0xf]
  %v367 = vld [vmem:[%s1 + $0x508] sm:$0xf]
  %v368 = vld [vmem:[%s1 + $0x50c] sm:$0xf]
  %v369 = vld [vmem:[%s1 + $0x510] sm:$0xf]
  %v370 = vld [vmem:[%s1 + $0x514] sm:$0xf]
  %v371 = vld [vmem:[%s1 + $0x518] sm:$0xf]
  %v372 = vld [vmem:[%s1 + $0x51c] sm:$0xf]
  %v373 = vld [vmem:[%s1 + $0x520] sm:$0xf]
  %v374 = vld [vmem:[%s1 + $0x524] sm:$0xf]
  %v375 = vld [vmem:[%s1 + $0x528] sm:$0xf]
  %v376 = vld [vmem:[%s1 + $0x52c] sm:$0xf]
  %v377 = vld [vmem:[%s1 + $0x530] sm:$0xf]
  %v378 = vld [vmem:[%s1 + $0x534] sm:$0xf]
  %v379 = vld [vmem:[%s1 + $0x538] sm:$0xf]
  %v380 = vld [vmem:[%s1 + $0x53c] sm:$0xf]
  %v381 = vld [vmem:[%s1 + $0x540] sm:$0xf]
  %v382 = vld [vmem:[%s1 + $0x544] sm:$0xf]
  %v383 = vld [vmem:[%s1 + $0x548] sm:$0xf]
  %v384 = vld [vmem:[%s1 + $0x54c] sm:$0xf]
  %v385 = vld [vmem:[%s1 + $0x550] sm:$0xf]
  %v386 = vld [vmem:[%s1 + $0x554] sm:$0xf]
  %v387 = vld [vmem:[%s1 + $0x558] sm:$0xf]
  %v388 = vld [vmem:[%s1 + $0x55c] sm:$0xf]
  %v389 = vld [vmem:[%s1 + $0x560] sm:$0xf]
  %v390 = vld [vmem:[%s1 + $0x564] sm:$0xf]
  %v391 = vld [vmem:[%s1 + $0x568] sm:$0xf]
  %v392 = vld [vmem:[%s1 + $0x56c] sm:$0xf]
  %v393 = vld [vmem:[%s1 + $0x570] sm:$0xf]
  %v394 = vld [vmem:[%s1 + $0x574] sm:$0xf]
  %v395 = vld [vmem:[%s1 + $0x578] sm:$0xf]
  %v396 = vld [vmem:[%s1 + $0x57c] sm:$0xf]
  %v397 = vld [vmem:[%s1 + $0x580] sm:$0xf]
  %v398 = vld [vmem:[%s1 + $0x584] sm:$0xf]
  %v399 = vld [vmem:[%s1 + $0x588] sm:$0xf]
  %v400 = vld [vmem:[%s1 + $0x58c] sm:$0xf]
  %v401 = vld [vmem:[%s1 + $0x590] sm:$0xf]
  %v402 = vld [vmem:[%s1 + $0x594] sm:$0xf]
  %v403 = vld [vmem:[%s1 + $0x598] sm:$0xf]
  %v404 = vld [vmem:[%s1 + $0x59c] sm:$0xf]
  %v405 = vld [vmem:[%s1 + $0x5a0] sm:$0xf]
  %v406 = vld [vmem:[%s1 + $0x5a4] sm:$0xf]
  %v407 = vld [vmem:[%s1 + $0x5a8] sm:$0xf]
  %v408 = vld [vmem:[%s1 + $0x5ac] sm:$0xf]
  %v409 = vld [vmem:[%s1 + $0x5b0] sm:$0xf]
  %v410 = vld [vmem:[%s1 + $0x5b4] sm:$0xf]
  %v411 = vld [vmem:[%s1 + $0x5b8] sm:$0xf]
  %v412 = vld [vmem:[%s1 + $0x5bc] sm:$0xf]
  %v413 = vld [vmem:[%s1 + $0x5c0] sm:$0xf]
  %v414 = vld [vmem:[%s1 + $0x5c4] sm:$0xf]
  %v415 = vld [vmem:[%s1 + $0x5c8] sm:$0xf]
  %v416 = vld [vmem:[%s1 + $0x5cc] sm:$0xf]
  %v417 = vld [vmem:[%s1 + $0x5d0] sm:$0xf]
  %v418 = vld [vmem:[%s1 + $0x5d4] sm:$0xf]
  %v419 = vld [vmem:[%s1 + $0x5d8] sm:$0xf]
  %v420 = vld [vmem:[%s1 + $0x5dc] sm:$0xf]
  %v421 = vld [vmem:[%s1 + $0x5e0] sm:$0xf]
  %v422 = vld [vmem:[%s1 + $0x5e4] sm:$0xf]
  %v423 = vld [vmem:[%s1 + $0x5e8] sm:$0xf]
  %v424 = vld [vmem:[%s1 + $0x5ec] sm:$0xf]
  %v425 = vld [vmem:[%s1 + $0x5f0] sm:$0xf]
  %v426 = vld [vmem:[%s1 + $0x5f4] sm:$0xf]
  %v427 = vld [vmem:[%s1 + $0x5f8] sm:$0xf]
  %v428 = vld [vmem:[%s1 + $0x5fc] sm:$0xf]
  %v429 = vld [vmem:[%s1 + $0x600] sm:$0xf]
  %v430 = vld [vmem:[%s1 + $0x604] sm:$0xf]
  %v431 = vld [vmem:[%s1 + $0x608] sm:$0xf]
  %v432 = vld [vmem:[%s1 + $0x60c] sm:$0xf]
  %v433 = vld [vmem:[%s1 + $0x610] sm:$0xf]
  %v434 = vld [vmem:[%s1 + $0x614] sm:$0xf]
  %v435 = vld [vmem:[%s1 + $0x618] sm:$0xf]
  %v436 = vld [vmem:[%s1 + $0x61c] sm:$0xf]
  %v437 = vld [vmem:[%s1 + $0x620] sm:$0xf]
  %v438 = vld [vmem:[%s1 + $0x624] sm:$0xf]
  %v439 = vld [vmem:[%s1 + $0x628] sm:$0xf]
  %v440 = vld [vmem:[%s1 + $0x62c] sm:$0xf]
  %v441 = vld [vmem:[%s1 + $0x630] sm:$0xf]
  %v442 = vld [vmem:[%s1 + $0x634] sm:$0xf]
  %v443 = vld [vmem:[%s1 + $0x638] sm:$0xf]
  %v444 = vld [vmem:[%s1 + $0x63c] sm:$0xf]
  %v445 = vld [vmem:[%s1 + $0x640] sm:$0xf]
  %v446 = vld [vmem:[%s1 + $0x644] sm:$0xf]
  %v447 = vld [vmem:[%s1 + $0x648] sm:$0xf]
  %v448 = vld [vmem:[%s1 + $0x64c] sm:$0xf]
  %v449 = vld [vmem:[%s1 + $0x650] sm:$0xf]
  %v450 = vld [vmem:[%s1 + $0x654] sm:$0xf]
  %v451 = vld [vmem:[%s1 + $0x658] sm:$0xf]
  %v452 = vld [vmem:[%s1 + $0x65c] sm:$0xf]
  %v453 = vld [vmem:[%s1 + $0x660] sm:$0xf]
  %v454 = vld [vmem:[%s1 + $0x664] sm:$0xf]
  %v455 = vld [vmem:[%s1 + $0x668] sm:$0xf]
  %v456 = vld [vmem:[%s1 + $0x66c] sm:$0xf]
  %v457 = vld [vmem:[%s1 + $0x670] sm:$0xf]
  %v458 = vld [vmem:[%s1 + $0x674] sm:$0xf]
  %v459 = vld [vmem:[%s1 + $0x678] sm:$0xf]
  %v460 = vld [vmem:[%s1 + $0x67c] sm:$0xf]
  %v461 = vld [vmem:[%s1 + $0x680] sm:$0xf]
  %v462 = vld [vmem:[%s1 + $0x684] sm:$0xf]
  %v463 = vld [vmem:[%s1 + $0x688] sm:$0xf]
  %v464 = vld [vmem:[%s1 + $0x68c] sm:$0xf]
  %v465 = vld [vmem:[%s1 + $0x690] sm:$0xf]
  %v466 = vld [vmem:[%s1 + $0x694] sm:$0xf]
  %v467 = vld [vmem:[%s1 + $0x698] sm:$0xf]
  %v468 = vld [vmem:[%s1 + $0x69c] sm:$0xf]
  %v469 = vld [vmem:[%s1 + $0x6a0] sm:$0xf]
  %v470 = vld [vmem:[%s1 + $0x6a4] sm:$0xf]
  %v471 = vld [vmem:[%s1 + $0x6a8] sm:$0xf]
  %v472 = vld [vmem:[%s1 + $0x6ac] sm:$0xf]
  %v473 = vld [vmem:[%s1 + $0x6b0] sm:$0xf]
  %v474 = vld [vmem:[%s1 + $0x6b4] sm:$0xf]
  %v475 = vld [vmem:[%s1 + $0x6b8] sm:$0xf]
  %v476 = vld [vmem:[%s1 + $0x6bc] sm:$0xf]
  %v477 = vld [vmem:[%s1 + $0x6c0] sm:$0xf]
  %v478 = vld [vmem:[%s1 + $0x6c4] sm:$0xf]
  %v479 = vld [vmem:[%s1 + $0x6c8] sm:$0xf]
  %v480 = vld [vmem:[%s1 + $0x6cc] sm:$0xf]
  %v481 = vld [vmem:[%s1 + $0x6d0] sm:$0xf]
  %v482 = vld [vmem:[%s1 + $0x6d4] sm:$0xf]
  %v483 = vld [vmem:[%s1 + $0x6d8] sm:$0xf]
  %v484 = vld [vmem:[%s1 + $0x6dc] sm:$0xf]
  %v485 = vld [vmem:[%s1 + $0x6e0] sm:$0xf]
  %v486 = vld [vmem:[%s1 + $0x6e4] sm:$0xf]
  %v487 = vld [vmem:[%s1 + $0x6e8] sm:$0xf]
  %v488 = vld [vmem:[%s1 + $0x6ec] sm:$0xf]
  %v489 = vld [vmem:[%s1 + $0x6f0] sm:$0xf]
  %v490 = vld [vmem:[%s1 + $0x6f4] sm:$0xf]
  %v491 = vld [vmem:[%s1 + $0x6f8] sm:$0xf]
  %v492 = vld [vmem:[%s1 + $0x6fc] sm:$0xf]
  %v493 = vld [vmem:[%s1 + $0x700] sm:$0xf]
  %v494 = vld [vmem:[%s1 + $0x704] sm:$0xf]
  %v495 = vld [vmem:[%s1 + $0x708] sm:$0xf]
  %v496 = vld [vmem:[%s1 + $0x70c] sm:$0xf]
  %v497 = vld [vmem:[%s1 + $0x710] sm:$0xf]
  %v498 = vld [vmem:[%s1 + $0x714] sm:$0xf]
  %v499 = vld [vmem:[%s1 + $0x718] sm:$0xf]
  %v500 = vld [vmem:[%s1 + $0x71c] sm:$0xf]
  %v501 = vld [vmem:[%s1 + $0x720] sm:$0xf]
  %v502 = vld [vmem:[%s1 + $0x724] sm:$0xf]
  %v503 = vld [vmem:[%s1 + $0x728] sm:$0xf]
  %v504 = vld [vmem:[%s1 + $0x72c] sm:$0xf]
  %v505 = vld [vmem:[%s1 + $0x730] sm:$0xf]
  %v506 = vld [vmem:[%s1 + $0x734] sm:$0xf]
  %v507 = vld [vmem:[%s1 + $0x738] sm:$0xf]
  %v508 = vld [vmem:[%s1 + $0x73c] sm:$0xf]
  %v509 = vld [vmem:[%s1 + $0x740] sm:$0xf]
  %v510 = vld [vmem:[%s1 + $0x744] sm:$0xf]
  %v511 = vld [vmem:[%s1 + $0x748] sm:$0xf]
  %v512 = vld [vmem:[%s1 + $0x74c] sm:$0xf]
  %v513 = vld [vmem:[%s1 + $0x750] sm:$0xf]
  %v514 = vld [vmem:[%s1 + $0x754] sm:$0xf]
  %v515 = vld [vmem:[%s1 + $0x758] sm:$0xf]
  %v516 = vld [vmem:[%s1 + $0x75c] sm:$0xf]
  %v517 = vld [vmem:[%s1 + $0x760] sm:$0xf]
  %v518 = vld [vmem:[%s1 + $0x764] sm:$0xf]
  %v519 = vld [vmem:[%s1 + $0x768] sm:$0xf]
  %v520 = vld [vmem:[%s1 + $0x76c] sm:$0xf]
  %v521 = vld [vmem:[%s1 + $0x770] sm:$0xf]
  %v522 = vld [vmem:[%s1 + $0x774] sm:$0xf]
  %v523 = vld [vmem:[%s1 + $0x778] sm:$0xf]
  %v524 = vld [vmem:[%s1 + $0x77c] sm:$0xf]
  %v525 = vld [vmem:[%s1 + $0x780] sm:$0xf]
  %v526 = vld [vmem:[%s1 + $0x784] sm:$0xf]
  %v527 = vld [vmem:[%s1 + $0x788] sm:$0xf]
  %v528 = vld [vmem:[%s1 + $0x78c] sm:$0xf]
  %v529 = vld [vmem:[%s1 + $0x790] sm:$0xf]
  %v530 = vld [vmem:[%s1 + $0x794] sm:$0xf]
  %v531 = vld [vmem:[%s1 + $0x798] sm:$0xf]
  %v532 = vld [vmem:[%s1 + $0x79c] sm:$0xf]
  %v533 = vld [vmem:[%s1 + $0x7a0] sm:$0xf]
  %v534 = vld [vmem:[%s1 + $0x7a4] sm:$0xf]
  %v535 = vld [vmem:[%s1 + $0x7a8] sm:$0xf]
  %v536 = vld [vmem:[%s1 + $0x7ac] sm:$0xf]
  %v537 = vld [vmem:[%s1 + $0x7b0] sm:$0xf]
  %v538 = vld [vmem:[%s1 + $0x7b4] sm:$0xf]
  %v539 = vld [vmem:[%s1 + $0x7b8] sm:$0xf]
  %v540 = vld [vmem:[%s1 + $0x7bc] sm:$0xf]
  %v541 = vld [vmem:[%s1 + $0x7c0] sm:$0xf]
  %v542 = vld [vmem:[%s1 + $0x7c4] sm:$0xf]
  %v543 = vld [vmem:[%s1 + $0x7c8] sm:$0xf]
  %v544 = vld [vmem:[%s1 + $0x7cc] sm:$0xf]
  %v545 = vld [vmem:[%s1 + $0x7d0] sm:$0xf]
  %v546 = vld [vmem:[%s1 + $0x7d4] sm:$0xf]
  %v547 = vld [vmem:[%s1 + $0x7d8] sm:$0xf]
  %v548 = vld [vmem:[%s1 + $0x7dc] sm:$0xf]
  %v549 = vld [vmem:[%s1 + $0x7e0] sm:$0xf]
  %v550 = vld [vmem:[%s1 + $0x7e4] sm:$0xf]
  %v551 = vld [vmem:[%s1 + $0x7e8] sm:$0xf]
  %v552 = vld [vmem:[%s1 + $0x7ec] sm:$0xf]
  %v553 = vld [vmem:[%s1 + $0x7f0] sm:$0xf]
  %v554 = vld [vmem:[%s1 + $0x7f4] sm:$0xf]
  %v555 = vld [vmem:[%s1 + $0x7f8] sm:$0xf]
  %v556 = vld [vmem:[%s1 + $0x7fc] sm:$0xf]
  %v557 = vld [vmem:[%s1 + $0x800] sm:$0xf]
  %v558 = vld [vmem:[%s1 + $0x804] sm:$0xf]
  %v559 = vld [vmem:[%s1 + $0x808] sm:$0xf]
  %v560 = vld [vmem:[%s1 + $0x80c] sm:$0xf]
  %v561 = vld [vmem:[%s1 + $0x810] sm:$0xf]
  %v562 = vld [vmem:[%s1 + $0x814] sm:$0xf]
  %v563 = vld [vmem:[%s1 + $0x818] sm:$0xf]
  %v564 = vld [vmem:[%s1 + $0x81c] sm:$0xf]
  %v565 = vld [vmem:[%s1 + $0x820] sm:$0xf]
  %v566 = vld [vmem:[%s1 + $0x824] sm:$0xf]
  %v567 = vld [vmem:[%s1 + $0x828] sm:$0xf]
  %v568 = vld [vmem:[%s1 + $0x82c] sm:$0xf]
  %v569 = vld [vmem:[%s1 + $0x830] sm:$0xf]
  %v570 = vld [vmem:[%s1 + $0x834] sm:$0xf]
  %v571 = vld [vmem:[%s1 + $0x838] sm:$0xf]
  %v572 = vld [vmem:[%s1 + $0x83c] sm:$0xf]
  %v573 = vld [vmem:[%s1 + $0x840] sm:$0xf]
  %v574 = vld [vmem:[%s1 + $0x844] sm:$0xf]
  %v575 = vld [vmem:[%s1 + $0x848] sm:$0xf]
  %v576 = vld [vmem:[%s1 + $0x84c] sm:$0xf]
  %v577 = vld [vmem:[%s1 + $0x850] sm:$0xf]
  %v578 = vld [vmem:[%s1 + $0x854] sm:$0xf]
  %v579 = vld [vmem:[%s1 + $0x858] sm:$0xf]
  %v580 = vld [vmem:[%s1 + $0x85c] sm:$0xf]
  %v581 = vld [vmem:[%s1 + $0x860] sm:$0xf]
  %v582 = vld [vmem:[%s1 + $0x864] sm:$0xf]
  %v583 = vld [vmem:[%s1 + $0x868] sm:$0xf]
  %v584 = vld [vmem:[%s1 + $0x86c] sm:$0xf]
  %v585 = vld [vmem:[%s1 + $0x870] sm:$0xf]
  %v586 = vld [vmem:[%s1 + $0x874] sm:$0xf]
  %v587 = vld [vmem:[%s1 + $0x878] sm:$0xf]
  %v588 = vld [vmem:[%s1 + $0x87c] sm:$0xf]
  %v589 = vld [vmem:[%s1 + $0x880] sm:$0xf]
  %v590 = vld [vmem:[%s1 + $0x884] sm:$0xf]
  %v591 = vld [vmem:[%s1 + $0x888] sm:$0xf]
  %v592 = vld [vmem:[%s1 + $0x88c] sm:$0xf]
  %v593 = vld [vmem:[%s1 + $0x890] sm:$0xf]
  %v594 = vld [vmem:[%s1 + $0x894] sm:$0xf]
  %v595 = vld [vmem:[%s1 + $0x898] sm:$0xf]
  %v596 = vld [vmem:[%s1 + $0x89c] sm:$0xf]
  %v597 = vld [vmem:[%s1 + $0x8a0] sm:$0xf]
  %v598 = vld [vmem:[%s1 + $0x8a4] sm:$0xf]
  %v599 = vld [vmem:[%s1 + $0x8a8] sm:$0xf]
  %v600 = vld [vmem:[%s1 + $0x8ac] sm:$0xf]
  %v601 = vld [vmem:[%s1 + $0x8b0] sm:$0xf]
  %v602 = vld [vmem:[%s1 + $0x8b4] sm:$0xf]
  %v603 = vld [vmem:[%s1 + $0x8b8] sm:$0xf]
  %v604 = vld [vmem:[%s1 + $0x8bc] sm:$0xf]
  %v605 = vld [vmem:[%s1 + $0x8c0] sm:$0xf]
  %v606 = vld [vmem:[%s1 + $0x8c4] sm:$0xf]
  %v607 = vld [vmem:[%s1 + $0x8c8] sm:$0xf]
  %v608 = vld [vmem:[%s1 + $0x8cc] sm:$0xf]
  %v609 = vld [vmem:[%s1 + $0x8d0] sm:$0xf]
  %v610 = vld [vmem:[%s1 + $0x8d4] sm:$0xf]
  %v611 = vld [vmem:[%s1 + $0x8d8] sm:$0xf]
  %v612 = vld [vmem:[%s1 + $0x8dc] sm:$0xf]
  %v613 = vld [vmem:[%s1 + $0x8e0] sm:$0xf]
  %v614 = vld [vmem:[%s1 + $0x8e4] sm:$0xf]
  %v615 = vld [vmem:[%s1 + $0x8e8] sm:$0xf]
  %v616 = vld [vmem:[%s1 + $0x8ec] sm:$0xf]
  %v617 = vld [vmem:[%s1 + $0x8f0] sm:$0xf]
  %v618 = vld [vmem:[%s1 + $0x8f4] sm:$0xf]
  %v619 = vld [vmem:[%s1 + $0x8f8] sm:$0xf]
  %v620 = vld [vmem:[%s1 + $0x8fc] sm:$0xf]
  %v621 = vld [vmem:[%s2] sm:$0x1]
  %v623 = vlaneseq
  %v624 = vshrl.u32 %v623, 7
  %v625 = vsub.s32 0, %v624
  %v626 = vrot.slane %v621, %v625
  %v646 = vunpack.c.l.b16 %v27
  %v647 = vunpack.c.h.b16 %v27
  %v648 = vunpack.c.l.b16 %v28
  %v649 = vunpack.c.h.b16 %v28
  %v650 = vunpack.c.l.b16 %v29
  %v651 = vunpack.c.h.b16 %v29
  %v652 = vunpack.c.l.b16 %v30
  %v653 = vunpack.c.h.b16 %v30
  %v654 = vunpack.c.l.b16 %v31
  %v655 = vunpack.c.h.b16 %v31
  %v656 = vunpack.c.l.b16 %v32
  %v657 = vunpack.c.h.b16 %v32
  %v658 = vunpack.c.l.b16 %v33
  %v659 = vunpack.c.h.b16 %v33
  %v660 = vunpack.c.l.b16 %v34
  %v661 = vunpack.c.h.b16 %v34
  %v662 = vunpack.c.l.b16 %v35
  %v663 = vunpack.c.h.b16 %v35
  %v664 = vunpack.c.l.b16 %v36
  %v665 = vunpack.c.h.b16 %v36
  %v666 = vunpack.c.l.b16 %v37
  %v667 = vunpack.c.h.b16 %v37
  %v668 = vunpack.c.l.b16 %v38
  %v669 = vunpack.c.h.b16 %v38
  %v670 = vunpack.c.l.b16 %v39
  %v671 = vunpack.c.h.b16 %v39
  %v672 = vunpack.c.l.b16 %v40
  %v673 = vunpack.c.h.b16 %v40
  %v674 = vunpack.c.l.b16 %v41
  %v675 = vunpack.c.h.b16 %v41
  %v676 = vunpack.c.l.b16 %v42
  %v677 = vunpack.c.h.b16 %v42
  %v678 = vunpack.c.l.b16 %v43
  %v679 = vunpack.c.h.b16 %v43
  %v680 = vunpack.c.l.b16 %v44
  %v681 = vunpack.c.h.b16 %v44
  %v682 = vpack.c.b16 %v646, %v646
  %v683 = vpack.c.b16 %v647, %v647
  %v684 = vpack.c.b16 %v648, %v648
  %v685 = vpack.c.b16 %v649, %v649
  %v686 = vpack.c.b16 %v650, %v650
  %v687 = vpack.c.b16 %v651, %v651
  %v688 = vpack.c.b16 %v652, %v652
  %v689 = vpack.c.b16 %v653, %v653
  %v690 = vpack.c.b16 %v654, %v654
  %v691 = vpack.c.b16 %v655, %v655
  %v692 = vpack.c.b16 %v656, %v656
  %v693 = vpack.c.b16 %v657, %v657
  %v694 = vpack.c.b16 %v658, %v658
  %v695 = vpack.c.b16 %v659, %v659
  %v696 = vpack.c.b16 %v660, %v660
  %v697 = vpack.c.b16 %v661, %v661
  %v698 = vpack.c.b16 %v662, %v662
  %v699 = vpack.c.b16 %v663, %v663
  %v700 = vpack.c.b16 %v664, %v664
  %v701 = vpack.c.b16 %v665, %v665
  %v702 = vpack.c.b16 %v666, %v666
  %v703 = vpack.c.b16 %v667, %v667
  %v704 = vpack.c.b16 %v668, %v668
  %v705 = vpack.c.b16 %v669, %v669
  %v706 = vpack.c.b16 %v670, %v670
  %v707 = vpack.c.b16 %v671, %v671
  %v708 = vpack.c.b16 %v672, %v672
  %v709 = vpack.c.b16 %v673, %v673
  %v710 = vpack.c.b16 %v674, %v674
  %v711 = vpack.c.b16 %v675, %v675
  %v712 = vpack.c.b16 %v676, %v676
  %v713 = vpack.c.b16 %v677, %v677
  %v714 = vpack.c.b16 %v678, %v678
  %v715 = vpack.c.b16 %v679, %v679
  %v716 = vpack.c.b16 %v680, %v680
  %v717 = vpack.c.b16 %v681, %v681
  %v1330 = vunpack.c.l.b16 %v45
  %v1331 = vunpack.c.l.b16 %v46
  %v1332 = vunpack.c.l.b16 %v47
  %v1333 = vunpack.c.l.b16 %v48
  %v1334 = vunpack.c.l.b16 %v49
  %v1335 = vunpack.c.l.b16 %v50
  %v1336 = vunpack.c.l.b16 %v51
  %v1337 = vunpack.c.l.b16 %v52
  %v1338 = vunpack.c.l.b16 %v53
  %v1339 = vunpack.c.l.b16 %v54
  %v1340 = vunpack.c.l.b16 %v55
  %v1341 = vunpack.c.l.b16 %v56
  %v1342 = vunpack.c.l.b16 %v57
  %v1343 = vunpack.c.l.b16 %v58
  %v1344 = vunpack.c.l.b16 %v59
  %v1345 = vunpack.c.l.b16 %v60
  %v1346 = vunpack.c.l.b16 %v61
  %v1347 = vunpack.c.l.b16 %v62
  %v1348 = vunpack.c.l.b16 %v63
  %v1349 = vunpack.c.l.b16 %v64
  %v1350 = vunpack.c.l.b16 %v65
  %v1351 = vunpack.c.l.b16 %v66
  %v1352 = vunpack.c.l.b16 %v67
  %v1353 = vunpack.c.l.b16 %v68
  %v1354 = vunpack.c.l.b16 %v69
  %v1355 = vunpack.c.l.b16 %v70
  %v1356 = vunpack.c.l.b16 %v71
  %v1357 = vunpack.c.l.b16 %v72
  %v1358 = vunpack.c.l.b16 %v73
  %v1359 = vunpack.c.l.b16 %v74
  %v1360 = vunpack.c.l.b16 %v75
  %v1361 = vunpack.c.l.b16 %v76
  %v1362 = vunpack.c.l.b16 %v77
  %v1363 = vunpack.c.l.b16 %v78
  %v1364 = vunpack.c.l.b16 %v79
  %v1365 = vunpack.c.l.b16 %v80
  %v1366 = vunpack.c.l.b16 %v81
  %v1367 = vunpack.c.l.b16 %v82
  %v1368 = vunpack.c.l.b16 %v83
  %v1369 = vunpack.c.l.b16 %v84
  %v1370 = vunpack.c.l.b16 %v85
  %v1371 = vunpack.c.l.b16 %v86
  %v1372 = vunpack.c.l.b16 %v87
  %v1373 = vunpack.c.l.b16 %v88
  %v1374 = vunpack.c.l.b16 %v89
  %v1375 = vunpack.c.l.b16 %v90
  %v1376 = vunpack.c.l.b16 %v91
  %v1377 = vunpack.c.l.b16 %v92
  %v1378 = vunpack.c.l.b16 %v93
  %v1379 = vunpack.c.l.b16 %v94
  %v1380 = vunpack.c.l.b16 %v95
  %v1381 = vunpack.c.l.b16 %v96
  %v1382 = vunpack.c.l.b16 %v97
  %v1383 = vunpack.c.l.b16 %v98
  %v1384 = vunpack.c.l.b16 %v99
  %v1385 = vunpack.c.l.b16 %v100
  %v1386 = vunpack.c.l.b16 %v101
  %v1387 = vunpack.c.l.b16 %v102
  %v1388 = vunpack.c.l.b16 %v103
  %v1389 = vunpack.c.l.b16 %v104
  %v1390 = vunpack.c.l.b16 %v105
  %v1391 = vunpack.c.l.b16 %v106
  %v1392 = vunpack.c.l.b16 %v107
  %v1393 = vunpack.c.l.b16 %v108
  %v1394 = vunpack.c.l.b16 %v109
  %v1395 = vunpack.c.l.b16 %v110
  %v1396 = vunpack.c.l.b16 %v111
  %v1397 = vunpack.c.l.b16 %v112
  %v1398 = vunpack.c.l.b16 %v113
  %v1399 = vunpack.c.l.b16 %v114
  %v1400 = vunpack.c.l.b16 %v115
  %v1401 = vunpack.c.l.b16 %v116
  %v1402 = vunpack.c.l.b16 %v117
  %v1403 = vunpack.c.l.b16 %v118
  %v1404 = vunpack.c.l.b16 %v119
  %v1405 = vunpack.c.l.b16 %v120
  %v1406 = vunpack.c.l.b16 %v121
  %v1407 = vunpack.c.l.b16 %v122
  %v1408 = vunpack.c.l.b16 %v123
  %v1409 = vunpack.c.l.b16 %v124
  %v1410 = vunpack.c.l.b16 %v125
  %v1411 = vunpack.c.l.b16 %v126
  %v1412 = vunpack.c.l.b16 %v127
  %v1413 = vunpack.c.l.b16 %v128
  %v1414 = vunpack.c.l.b16 %v129
  %v1415 = vunpack.c.l.b16 %v130
  %v1416 = vunpack.c.l.b16 %v131
  %v1417 = vunpack.c.l.b16 %v132
  %v1418 = vunpack.c.l.b16 %v133
  %v1419 = vunpack.c.l.b16 %v134
  %v1420 = vunpack.c.l.b16 %v135
  %v1421 = vunpack.c.l.b16 %v136
  %v1422 = vunpack.c.l.b16 %v137
  %v1423 = vunpack.c.l.b16 %v138
  %v1424 = vunpack.c.l.b16 %v139
  %v1425 = vunpack.c.l.b16 %v140
  %v1426 = vunpack.c.l.b16 %v141
  %v1427 = vunpack.c.l.b16 %v142
  %v1428 = vunpack.c.l.b16 %v143
  %v1429 = vunpack.c.l.b16 %v144
  %v1430 = vunpack.c.l.b16 %v145
  %v1431 = vunpack.c.l.b16 %v146
  %v1432 = vunpack.c.l.b16 %v147
  %v1433 = vunpack.c.l.b16 %v148
  %v1434 = vunpack.c.l.b16 %v149
  %v1435 = vunpack.c.l.b16 %v150
  %v1436 = vunpack.c.l.b16 %v151
  %v1437 = vunpack.c.l.b16 %v152
  %v1438 = vunpack.c.l.b16 %v153
  %v1439 = vunpack.c.l.b16 %v154
  %v1440 = vunpack.c.l.b16 %v155
  %v1441 = vunpack.c.l.b16 %v156
  %v1442 = vunpack.c.l.b16 %v157
  %v1443 = vunpack.c.l.b16 %v158
  %v1444 = vunpack.c.l.b16 %v159
  %v1445 = vunpack.c.l.b16 %v160
  %v1446 = vunpack.c.l.b16 %v161
  %v1447 = vunpack.c.l.b16 %v162
  %v1448 = vunpack.c.l.b16 %v163
  %v1449 = vunpack.c.l.b16 %v164
  %v1450 = vunpack.c.l.b16 %v165
  %v1451 = vunpack.c.l.b16 %v166
  %v1452 = vunpack.c.l.b16 %v167
  %v1453 = vunpack.c.l.b16 %v168
  %v1454 = vunpack.c.l.b16 %v169
  %v1455 = vunpack.c.l.b16 %v170
  %v1456 = vunpack.c.l.b16 %v171
  %v1457 = vunpack.c.l.b16 %v172
  %v1458 = vunpack.c.l.b16 %v173
  %v1459 = vunpack.c.l.b16 %v174
  %v1460 = vunpack.c.l.b16 %v175
  %v1461 = vunpack.c.l.b16 %v176
  %v1462 = vunpack.c.l.b16 %v177
  %v1463 = vunpack.c.l.b16 %v178
  %v1464 = vunpack.c.l.b16 %v179
  %v1465 = vunpack.c.l.b16 %v180
  %v1466 = vunpack.c.l.b16 %v181
  %v1467 = vunpack.c.l.b16 %v182
  %v1468 = vunpack.c.l.b16 %v183
  %v1469 = vunpack.c.l.b16 %v184
  %v1470 = vunpack.c.l.b16 %v185
  %v1471 = vunpack.c.l.b16 %v186
  %v1472 = vunpack.c.l.b16 %v187
  %v1473 = vunpack.c.l.b16 %v188
  %v1474 = vunpack.c.l.b16 %v189
  %v1475 = vunpack.c.l.b16 %v190
  %v1476 = vunpack.c.l.b16 %v191
  %v1477 = vunpack.c.l.b16 %v192
  %v1478 = vunpack.c.l.b16 %v193
  %v1479 = vunpack.c.l.b16 %v194
  %v1480 = vunpack.c.l.b16 %v195
  %v1481 = vunpack.c.l.b16 %v196
  %v1482 = vunpack.c.l.b16 %v197
  %v1483 = vunpack.c.l.b16 %v198
  %v1484 = vunpack.c.l.b16 %v199
  %v1485 = vunpack.c.l.b16 %v200
  %v1486 = vunpack.c.l.b16 %v201
  %v1487 = vunpack.c.l.b16 %v202
  %v1488 = vunpack.c.l.b16 %v203
  %v1489 = vunpack.c.l.b16 %v204
  %v1490 = vunpack.c.l.b16 %v205
  %v1491 = vunpack.c.l.b16 %v206
  %v1492 = vunpack.c.l.b16 %v207
  %v1493 = vunpack.c.l.b16 %v208
  %v1494 = vunpack.c.l.b16 %v209
  %v1495 = vunpack.c.l.b16 %v210
  %v1496 = vunpack.c.l.b16 %v211
  %v1497 = vunpack.c.l.b16 %v212
  %v1498 = vunpack.c.l.b16 %v213
  %v1499 = vunpack.c.l.b16 %v214
  %v1500 = vunpack.c.l.b16 %v215
  %v1501 = vunpack.c.l.b16 %v216
  %v1502 = vunpack.c.l.b16 %v217
  %v1503 = vunpack.c.l.b16 %v218
  %v1504 = vunpack.c.l.b16 %v219
  %v1505 = vunpack.c.l.b16 %v220
  %v1506 = vunpack.c.l.b16 %v221
  %v1507 = vunpack.c.l.b16 %v222
  %v1508 = vunpack.c.l.b16 %v223
  %v1509 = vunpack.c.l.b16 %v224
  %v1510 = vunpack.c.l.b16 %v225
  %v1511 = vunpack.c.l.b16 %v226
  %v1512 = vunpack.c.l.b16 %v227
  %v1513 = vunpack.c.l.b16 %v228
  %v1514 = vunpack.c.l.b16 %v229
  %v1515 = vunpack.c.l.b16 %v230
  %v1516 = vunpack.c.l.b16 %v231
  %v1517 = vunpack.c.l.b16 %v232
  %v1518 = vunpack.c.l.b16 %v233
  %v1519 = vunpack.c.l.b16 %v234
  %v1520 = vunpack.c.l.b16 %v235
  %v1521 = vunpack.c.l.b16 %v236
  %v1522 = vunpack.c.l.b16 %v237
  %v1523 = vunpack.c.l.b16 %v238
  %v1524 = vunpack.c.l.b16 %v239
  %v1525 = vunpack.c.l.b16 %v240
  %v1526 = vunpack.c.l.b16 %v241
  %v1527 = vunpack.c.l.b16 %v242
  %v1528 = vunpack.c.l.b16 %v243
  %v1529 = vunpack.c.l.b16 %v244
  %v1530 = vunpack.c.l.b16 %v245
  %v1531 = vunpack.c.l.b16 %v246
  %v1532 = vunpack.c.l.b16 %v247
  %v1533 = vunpack.c.l.b16 %v248
  %v1534 = vunpack.c.l.b16 %v249
  %v1535 = vunpack.c.l.b16 %v250
  %v1536 = vunpack.c.l.b16 %v251
  %v1537 = vunpack.c.l.b16 %v252
  %v1538 = vunpack.c.l.b16 %v253
  %v1539 = vunpack.c.l.b16 %v254
  %v1540 = vunpack.c.l.b16 %v255
  %v1541 = vunpack.c.l.b16 %v256
  %v1542 = vunpack.c.l.b16 %v257
  %v1543 = vunpack.c.l.b16 %v258
  %v1544 = vunpack.c.l.b16 %v259
  %v1545 = vunpack.c.l.b16 %v260
  %v1546 = vunpack.c.l.b16 %v261
  %v1547 = vunpack.c.l.b16 %v262
  %v1548 = vunpack.c.l.b16 %v263
  %v1549 = vunpack.c.l.b16 %v264
  %v1550 = vunpack.c.l.b16 %v265
  %v1551 = vunpack.c.l.b16 %v266
  %v1552 = vunpack.c.l.b16 %v267
  %v1553 = vunpack.c.l.b16 %v268
  %v1554 = vunpack.c.l.b16 %v269
  %v1555 = vunpack.c.l.b16 %v270
  %v1556 = vunpack.c.l.b16 %v271
  %v1557 = vunpack.c.l.b16 %v272
  %v1558 = vunpack.c.l.b16 %v273
  %v1559 = vunpack.c.l.b16 %v274
  %v1560 = vunpack.c.l.b16 %v275
  %v1561 = vunpack.c.l.b16 %v276
  %v1562 = vunpack.c.l.b16 %v277
  %v1563 = vunpack.c.l.b16 %v278
  %v1564 = vunpack.c.l.b16 %v279
  %v1565 = vunpack.c.l.b16 %v280
  %v1566 = vunpack.c.l.b16 %v281
  %v1567 = vunpack.c.l.b16 %v282
  %v1568 = vunpack.c.l.b16 %v283
  %v1569 = vunpack.c.l.b16 %v284
  %v1570 = vunpack.c.l.b16 %v285
  %v1571 = vunpack.c.l.b16 %v286
  %v1572 = vunpack.c.l.b16 %v287
  %v1573 = vunpack.c.l.b16 %v288
  %v1574 = vunpack.c.l.b16 %v289
  %v1575 = vunpack.c.l.b16 %v290
  %v1576 = vunpack.c.l.b16 %v291
  %v1577 = vunpack.c.l.b16 %v292
  %v1578 = vunpack.c.l.b16 %v293
  %v1579 = vunpack.c.l.b16 %v294
  %v1580 = vunpack.c.l.b16 %v295
  %v1581 = vunpack.c.l.b16 %v296
  %v1582 = vunpack.c.l.b16 %v297
  %v1583 = vunpack.c.l.b16 %v298
  %v1584 = vunpack.c.l.b16 %v299
  %v1585 = vunpack.c.l.b16 %v300
  %v1586 = vunpack.c.l.b16 %v301
  %v1587 = vunpack.c.l.b16 %v302
  %v1588 = vunpack.c.l.b16 %v303
  %v1589 = vunpack.c.l.b16 %v304
  %v1590 = vunpack.c.l.b16 %v305
  %v1591 = vunpack.c.l.b16 %v306
  %v1592 = vunpack.c.l.b16 %v307
  %v1593 = vunpack.c.l.b16 %v308
  %v1594 = vunpack.c.l.b16 %v309
  %v1595 = vunpack.c.l.b16 %v310
  %v1596 = vunpack.c.l.b16 %v311
  %v1597 = vunpack.c.l.b16 %v312
  %v1598 = vunpack.c.l.b16 %v313
  %v1599 = vunpack.c.l.b16 %v314
  %v1600 = vunpack.c.l.b16 %v315
  %v1601 = vunpack.c.l.b16 %v316
  %v1602 = vunpack.c.l.b16 %v317
  %v1603 = vunpack.c.l.b16 %v318
  %v1604 = vunpack.c.l.b16 %v319
  %v1605 = vunpack.c.l.b16 %v320
  %v1606 = vunpack.c.l.b16 %v321
  %v1607 = vunpack.c.l.b16 %v322
  %v1608 = vunpack.c.l.b16 %v323
  %v1609 = vunpack.c.l.b16 %v324
  %v1610 = vunpack.c.l.b16 %v325
  %v1611 = vunpack.c.l.b16 %v326
  %v1612 = vunpack.c.l.b16 %v327
  %v1613 = vunpack.c.l.b16 %v328
  %v1614 = vunpack.c.l.b16 %v329
  %v1615 = vunpack.c.l.b16 %v330
  %v1616 = vunpack.c.l.b16 %v331
  %v1617 = vunpack.c.l.b16 %v332
  %v1618 = vunpack.c.l.b16 %v333
  %v1619 = vunpack.c.l.b16 %v334
  %v1620 = vunpack.c.l.b16 %v335
  %v1621 = vunpack.c.l.b16 %v336
  %v1622 = vunpack.c.l.b16 %v337
  %v1623 = vunpack.c.l.b16 %v338
  %v1624 = vunpack.c.l.b16 %v339
  %v1625 = vunpack.c.l.b16 %v340
  %v1626 = vunpack.c.l.b16 %v341
  %v1627 = vunpack.c.l.b16 %v342
  %v1628 = vunpack.c.l.b16 %v343
  %v1629 = vunpack.c.l.b16 %v344
  %v1630 = vunpack.c.l.b16 %v345
  %v1631 = vunpack.c.l.b16 %v346
  %v1632 = vunpack.c.l.b16 %v347
  %v1633 = vunpack.c.l.b16 %v348
  %v1634 = vunpack.c.l.b16 %v349
  %v1635 = vunpack.c.l.b16 %v350
  %v1636 = vunpack.c.l.b16 %v351
  %v1637 = vunpack.c.l.b16 %v352
  %v1638 = vunpack.c.l.b16 %v353
  %v1639 = vunpack.c.l.b16 %v354
  %v1640 = vunpack.c.l.b16 %v355
  %v1641 = vunpack.c.l.b16 %v356
  %v1642 = vunpack.c.l.b16 %v357
  %v1643 = vunpack.c.l.b16 %v358
  %v1644 = vunpack.c.l.b16 %v359
  %v1645 = vunpack.c.l.b16 %v360
  %v1646 = vunpack.c.l.b16 %v361
  %v1647 = vunpack.c.l.b16 %v362
  %v1648 = vunpack.c.l.b16 %v363
  %v1649 = vunpack.c.l.b16 %v364
  %v1650 = vunpack.c.l.b16 %v365
  %v1651 = vunpack.c.l.b16 %v366
  %v1652 = vunpack.c.l.b16 %v367
  %v1653 = vunpack.c.l.b16 %v368
  %v1654 = vunpack.c.l.b16 %v369
  %v1655 = vunpack.c.l.b16 %v370
  %v1656 = vunpack.c.l.b16 %v371
  %v1657 = vunpack.c.l.b16 %v372
  %v1658 = vunpack.c.l.b16 %v373
  %v1659 = vunpack.c.l.b16 %v374
  %v1660 = vunpack.c.l.b16 %v375
  %v1661 = vunpack.c.l.b16 %v376
  %v1662 = vunpack.c.l.b16 %v377
  %v1663 = vunpack.c.l.b16 %v378
  %v1664 = vunpack.c.l.b16 %v379
  %v1665 = vunpack.c.l.b16 %v380
  %v1666 = vunpack.c.l.b16 %v381
  %v1667 = vunpack.c.l.b16 %v382
  %v1668 = vunpack.c.l.b16 %v383
  %v1669 = vunpack.c.l.b16 %v384
  %v1670 = vunpack.c.l.b16 %v385
  %v1671 = vunpack.c.l.b16 %v386
  %v1672 = vunpack.c.l.b16 %v387
  %v1673 = vunpack.c.l.b16 %v388
  %v1674 = vunpack.c.l.b16 %v389
  %v1675 = vunpack.c.l.b16 %v390
  %v1676 = vunpack.c.l.b16 %v391
  %v1677 = vunpack.c.l.b16 %v392
  %v1678 = vunpack.c.l.b16 %v393
  %v1679 = vunpack.c.l.b16 %v394
  %v1680 = vunpack.c.l.b16 %v395
  %v1681 = vunpack.c.l.b16 %v396
  %v1682 = vunpack.c.l.b16 %v397
  %v1683 = vunpack.c.l.b16 %v398
  %v1684 = vunpack.c.l.b16 %v399
  %v1685 = vunpack.c.l.b16 %v400
  %v1686 = vunpack.c.l.b16 %v401
  %v1687 = vunpack.c.l.b16 %v402
  %v1688 = vunpack.c.l.b16 %v403
  %v1689 = vunpack.c.l.b16 %v404
  %v1690 = vunpack.c.l.b16 %v405
  %v1691 = vunpack.c.l.b16 %v406
  %v1692 = vunpack.c.l.b16 %v407
  %v1693 = vunpack.c.l.b16 %v408
  %v1694 = vunpack.c.l.b16 %v409
  %v1695 = vunpack.c.l.b16 %v410
  %v1696 = vunpack.c.l.b16 %v411
  %v1697 = vunpack.c.l.b16 %v412
  %v1698 = vunpack.c.l.b16 %v413
  %v1699 = vunpack.c.l.b16 %v414
  %v1700 = vunpack.c.l.b16 %v415
  %v1701 = vunpack.c.l.b16 %v416
  %v1702 = vunpack.c.l.b16 %v417
  %v1703 = vunpack.c.l.b16 %v418
  %v1704 = vunpack.c.l.b16 %v419
  %v1705 = vunpack.c.l.b16 %v420
  %v1706 = vunpack.c.l.b16 %v421
  %v1707 = vunpack.c.l.b16 %v422
  %v1708 = vunpack.c.l.b16 %v423
  %v1709 = vunpack.c.l.b16 %v424
  %v1710 = vunpack.c.l.b16 %v425
  %v1711 = vunpack.c.l.b16 %v426
  %v1712 = vunpack.c.l.b16 %v427
  %v1713 = vunpack.c.l.b16 %v428
  %v1714 = vunpack.c.l.b16 %v429
  %v1715 = vunpack.c.l.b16 %v430
  %v1716 = vunpack.c.l.b16 %v431
  %v1717 = vunpack.c.l.b16 %v432
  %v1718 = vunpack.c.l.b16 %v433
  %v1719 = vunpack.c.l.b16 %v434
  %v1720 = vunpack.c.l.b16 %v435
  %v1721 = vunpack.c.l.b16 %v436
  %v1722 = vunpack.c.l.b16 %v437
  %v1723 = vunpack.c.l.b16 %v438
  %v1724 = vunpack.c.l.b16 %v439
  %v1725 = vunpack.c.l.b16 %v440
  %v1726 = vunpack.c.l.b16 %v441
  %v1727 = vunpack.c.l.b16 %v442
  %v1728 = vunpack.c.l.b16 %v443
  %v1729 = vunpack.c.l.b16 %v444
  %v1730 = vunpack.c.l.b16 %v445
  %v1731 = vunpack.c.l.b16 %v446
  %v1732 = vunpack.c.l.b16 %v447
  %v1733 = vunpack.c.l.b16 %v448
  %v1734 = vunpack.c.l.b16 %v449
  %v1735 = vunpack.c.l.b16 %v450
  %v1736 = vunpack.c.l.b16 %v451
  %v1737 = vunpack.c.l.b16 %v452
  %v1738 = vunpack.c.l.b16 %v453
  %v1739 = vunpack.c.l.b16 %v454
  %v1740 = vunpack.c.l.b16 %v455
  %v1741 = vunpack.c.l.b16 %v456
  %v1742 = vunpack.c.l.b16 %v457
  %v1743 = vunpack.c.l.b16 %v458
  %v1744 = vunpack.c.l.b16 %v459
  %v1745 = vunpack.c.l.b16 %v460
  %v1746 = vunpack.c.l.b16 %v461
  %v1747 = vunpack.c.l.b16 %v462
  %v1748 = vunpack.c.l.b16 %v463
  %v1749 = vunpack.c.l.b16 %v464
  %v1750 = vunpack.c.l.b16 %v465
  %v1751 = vunpack.c.l.b16 %v466
  %v1752 = vunpack.c.l.b16 %v467
  %v1753 = vunpack.c.l.b16 %v468
  %v1754 = vunpack.c.l.b16 %v469
  %v1755 = vunpack.c.l.b16 %v470
  %v1756 = vunpack.c.l.b16 %v471
  %v1757 = vunpack.c.l.b16 %v472
  %v1758 = vunpack.c.l.b16 %v473
  %v1759 = vunpack.c.l.b16 %v474
  %v1760 = vunpack.c.l.b16 %v475
  %v1761 = vunpack.c.l.b16 %v476
  %v1762 = vunpack.c.l.b16 %v477
  %v1763 = vunpack.c.l.b16 %v478
  %v1764 = vunpack.c.l.b16 %v479
  %v1765 = vunpack.c.l.b16 %v480
  %v1766 = vunpack.c.l.b16 %v481
  %v1767 = vunpack.c.l.b16 %v482
  %v1768 = vunpack.c.l.b16 %v483
  %v1769 = vunpack.c.l.b16 %v484
  %v1770 = vunpack.c.l.b16 %v485
  %v1771 = vunpack.c.l.b16 %v486
  %v1772 = vunpack.c.l.b16 %v487
  %v1773 = vunpack.c.l.b16 %v488
  %v1774 = vunpack.c.l.b16 %v489
  %v1775 = vunpack.c.l.b16 %v490
  %v1776 = vunpack.c.l.b16 %v491
  %v1777 = vunpack.c.l.b16 %v492
  %v1778 = vunpack.c.l.b16 %v493
  %v1779 = vunpack.c.l.b16 %v494
  %v1780 = vunpack.c.l.b16 %v495
  %v1781 = vunpack.c.l.b16 %v496
  %v1782 = vunpack.c.l.b16 %v497
  %v1783 = vunpack.c.l.b16 %v498
  %v1784 = vunpack.c.l.b16 %v499
  %v1785 = vunpack.c.l.b16 %v500
  %v1786 = vunpack.c.l.b16 %v501
  %v1787 = vunpack.c.l.b16 %v502
  %v1788 = vunpack.c.l.b16 %v503
  %v1789 = vunpack.c.l.b16 %v504
  %v1790 = vunpack.c.l.b16 %v505
  %v1791 = vunpack.c.l.b16 %v506
  %v1792 = vunpack.c.l.b16 %v507
  %v1793 = vunpack.c.l.b16 %v508
  %v1794 = vunpack.c.l.b16 %v509
  %v1795 = vunpack.c.l.b16 %v510
  %v1796 = vunpack.c.l.b16 %v511
  %v1797 = vunpack.c.l.b16 %v512
  %v1798 = vunpack.c.l.b16 %v513
  %v1799 = vunpack.c.l.b16 %v514
  %v1800 = vunpack.c.l.b16 %v515
  %v1801 = vunpack.c.l.b16 %v516
  %v1802 = vunpack.c.l.b16 %v517
  %v1803 = vunpack.c.l.b16 %v518
  %v1804 = vunpack.c.l.b16 %v519
  %v1805 = vunpack.c.l.b16 %v520
  %v1806 = vunpack.c.l.b16 %v521
  %v1807 = vunpack.c.l.b16 %v522
  %v1808 = vunpack.c.l.b16 %v523
  %v1809 = vunpack.c.l.b16 %v524
  %v1810 = vunpack.c.l.b16 %v525
  %v1811 = vunpack.c.l.b16 %v526
  %v1812 = vunpack.c.l.b16 %v527
  %v1813 = vunpack.c.l.b16 %v528
  %v1814 = vunpack.c.l.b16 %v529
  %v1815 = vunpack.c.l.b16 %v530
  %v1816 = vunpack.c.l.b16 %v531
  %v1817 = vunpack.c.l.b16 %v532
  %v1818 = vunpack.c.l.b16 %v533
  %v1819 = vunpack.c.l.b16 %v534
  %v1820 = vunpack.c.l.b16 %v535
  %v1821 = vunpack.c.l.b16 %v536
  %v1822 = vunpack.c.l.b16 %v537
  %v1823 = vunpack.c.l.b16 %v538
  %v1824 = vunpack.c.l.b16 %v539
  %v1825 = vunpack.c.l.b16 %v540
  %v1826 = vunpack.c.l.b16 %v541
  %v1827 = vunpack.c.l.b16 %v542
  %v1828 = vunpack.c.l.b16 %v543
  %v1829 = vunpack.c.l.b16 %v544
  %v1830 = vunpack.c.l.b16 %v545
  %v1831 = vunpack.c.l.b16 %v546
  %v1832 = vunpack.c.l.b16 %v547
  %v1833 = vunpack.c.l.b16 %v548
  %v1834 = vunpack.c.l.b16 %v549
  %v1835 = vunpack.c.l.b16 %v550
  %v1836 = vunpack.c.l.b16 %v551
  %v1837 = vunpack.c.l.b16 %v552
  %v1838 = vunpack.c.l.b16 %v553
  %v1839 = vunpack.c.l.b16 %v554
  %v1840 = vunpack.c.l.b16 %v555
  %v1841 = vunpack.c.l.b16 %v556
  %v1842 = vunpack.c.l.b16 %v557
  %v1843 = vunpack.c.l.b16 %v558
  %v1844 = vunpack.c.l.b16 %v559
  %v1845 = vunpack.c.l.b16 %v560
  %v1846 = vunpack.c.l.b16 %v561
  %v1847 = vunpack.c.l.b16 %v562
  %v1848 = vunpack.c.l.b16 %v563
  %v1849 = vunpack.c.l.b16 %v564
  %v1850 = vunpack.c.l.b16 %v565
  %v1851 = vunpack.c.l.b16 %v566
  %v1852 = vunpack.c.l.b16 %v567
  %v1853 = vunpack.c.l.b16 %v568
  %v1854 = vunpack.c.l.b16 %v569
  %v1855 = vunpack.c.l.b16 %v570
  %v1856 = vunpack.c.l.b16 %v571
  %v1857 = vunpack.c.l.b16 %v572
  %v1858 = vunpack.c.l.b16 %v573
  %v1859 = vunpack.c.l.b16 %v574
  %v1860 = vunpack.c.l.b16 %v575
  %v1861 = vunpack.c.l.b16 %v576
  %v1862 = vunpack.c.l.b16 %v577
  %v1863 = vunpack.c.l.b16 %v578
  %v1864 = vunpack.c.l.b16 %v579
  %v1865 = vunpack.c.l.b16 %v580
  %v1866 = vunpack.c.l.b16 %v581
  %v1867 = vunpack.c.l.b16 %v582
  %v1868 = vunpack.c.l.b16 %v583
  %v1869 = vunpack.c.l.b16 %v584
  %v1870 = vunpack.c.l.b16 %v585
  %v1871 = vunpack.c.l.b16 %v586
  %v1872 = vunpack.c.l.b16 %v587
  %v1873 = vunpack.c.l.b16 %v588
  %v1874 = vunpack.c.l.b16 %v589
  %v1875 = vunpack.c.l.b16 %v590
  %v1876 = vunpack.c.l.b16 %v591
  %v1877 = vunpack.c.l.b16 %v592
  %v1878 = vunpack.c.l.b16 %v593
  %v1879 = vunpack.c.l.b16 %v594
  %v1880 = vunpack.c.l.b16 %v595
  %v1881 = vunpack.c.l.b16 %v596
  %v1882 = vunpack.c.l.b16 %v597
  %v1883 = vunpack.c.l.b16 %v598
  %v1884 = vunpack.c.l.b16 %v599
  %v1885 = vunpack.c.l.b16 %v600
  %v1886 = vunpack.c.l.b16 %v601
  %v1887 = vunpack.c.l.b16 %v602
  %v1888 = vunpack.c.l.b16 %v603
  %v1889 = vunpack.c.l.b16 %v604
  %v1890 = vunpack.c.l.b16 %v605
  %v1891 = vunpack.c.l.b16 %v606
  %v1892 = vunpack.c.l.b16 %v607
  %v1893 = vunpack.c.l.b16 %v608
  %v1894 = vunpack.c.l.b16 %v609
  %v1895 = vunpack.c.l.b16 %v610
  %v1896 = vunpack.c.l.b16 %v611
  %v1897 = vunpack.c.l.b16 %v612
  %v1898 = vunpack.c.l.b16 %v613
  %v1899 = vunpack.c.l.b16 %v614
  %v1900 = vunpack.c.l.b16 %v615
  %v1901 = vunpack.c.l.b16 %v616
  %v1902 = vunpack.c.l.b16 %v617
  %v1903 = vunpack.c.l.b16 %v618
  %v1904 = vunpack.c.l.b16 %v619
  %v1905 = vunpack.c.l.b16 %v620
  %v1906 = vpack.c.b16 %v1331, %v1330
  %v1907 = vpack.c.b16 %v1333, %v1332
  %v1908 = vpack.c.b16 %v1335, %v1334
  %v1909 = vpack.c.b16 %v1337, %v1336
  %v1910 = vpack.c.b16 %v1339, %v1338
  %v1911 = vpack.c.b16 %v1341, %v1340
  %v1912 = vpack.c.b16 %v1343, %v1342
  %v1913 = vpack.c.b16 %v1345, %v1344
  %v1914 = vpack.c.b16 %v1347, %v1346
  %v1915 = vpack.c.b16 %v1349, %v1348
  %v1916 = vpack.c.b16 %v1351, %v1350
  %v1917 = vpack.c.b16 %v1353, %v1352
  %v1918 = vpack.c.b16 %v1355, %v1354
  %v1919 = vpack.c.b16 %v1357, %v1356
  %v1920 = vpack.c.b16 %v1359, %v1358
  %v1921 = vpack.c.b16 %v1361, %v1360
  %v1922 = vpack.c.b16 %v1363, %v1362
  %v1923 = vpack.c.b16 %v1365, %v1364
  %v1924 = vpack.c.b16 %v1367, %v1366
  %v1925 = vpack.c.b16 %v1369, %v1368
  %v1926 = vpack.c.b16 %v1371, %v1370
  %v1927 = vpack.c.b16 %v1373, %v1372
  %v1928 = vpack.c.b16 %v1375, %v1374
  %v1929 = vpack.c.b16 %v1377, %v1376
  %v1930 = vpack.c.b16 %v1379, %v1378
  %v1931 = vpack.c.b16 %v1381, %v1380
  %v1932 = vpack.c.b16 %v1383, %v1382
  %v1933 = vpack.c.b16 %v1385, %v1384
  %v1934 = vpack.c.b16 %v1387, %v1386
  %v1935 = vpack.c.b16 %v1389, %v1388
  %v1936 = vpack.c.b16 %v1391, %v1390
  %v1937 = vpack.c.b16 %v1393, %v1392
  %v1938 = vpack.c.b16 %v1395, %v1394
  %v1939 = vpack.c.b16 %v1397, %v1396
  %v1940 = vpack.c.b16 %v1399, %v1398
  %v1941 = vpack.c.b16 %v1401, %v1400
  %v1942 = vpack.c.b16 %v1403, %v1402
  %v1943 = vpack.c.b16 %v1405, %v1404
  %v1944 = vpack.c.b16 %v1407, %v1406
  %v1945 = vpack.c.b16 %v1409, %v1408
  %v1946 = vpack.c.b16 %v1411, %v1410
  %v1947 = vpack.c.b16 %v1413, %v1412
  %v1948 = vpack.c.b16 %v1415, %v1414
  %v1949 = vpack.c.b16 %v1417, %v1416
  %v1950 = vpack.c.b16 %v1419, %v1418
  %v1951 = vpack.c.b16 %v1421, %v1420
  %v1952 = vpack.c.b16 %v1423, %v1422
  %v1953 = vpack.c.b16 %v1425, %v1424
  %v1954 = vpack.c.b16 %v1427, %v1426
  %v1955 = vpack.c.b16 %v1429, %v1428
  %v1956 = vpack.c.b16 %v1431, %v1430
  %v1957 = vpack.c.b16 %v1433, %v1432
  %v1958 = vpack.c.b16 %v1435, %v1434
  %v1959 = vpack.c.b16 %v1437, %v1436
  %v1960 = vpack.c.b16 %v1439, %v1438
  %v1961 = vpack.c.b16 %v1441, %v1440
  %v1962 = vpack.c.b16 %v1443, %v1442
  %v1963 = vpack.c.b16 %v1445, %v1444
  %v1964 = vpack.c.b16 %v1447, %v1446
  %v1965 = vpack.c.b16 %v1449, %v1448
  %v1966 = vpack.c.b16 %v1451, %v1450
  %v1967 = vpack.c.b16 %v1453, %v1452
  %v1968 = vpack.c.b16 %v1455, %v1454
  %v1969 = vpack.c.b16 %v1457, %v1456
  %v1970 = vpack.c.b16 %v1459, %v1458
  %v1971 = vpack.c.b16 %v1461, %v1460
  %v1972 = vpack.c.b16 %v1463, %v1462
  %v1973 = vpack.c.b16 %v1465, %v1464
  %v1974 = vpack.c.b16 %v1467, %v1466
  %v1975 = vpack.c.b16 %v1469, %v1468
  %v1976 = vpack.c.b16 %v1471, %v1470
  %v1977 = vpack.c.b16 %v1473, %v1472
  %v1978 = vpack.c.b16 %v1475, %v1474
  %v1979 = vpack.c.b16 %v1477, %v1476
  %v1980 = vpack.c.b16 %v1479, %v1478
  %v1981 = vpack.c.b16 %v1481, %v1480
  %v1982 = vpack.c.b16 %v1483, %v1482
  %v1983 = vpack.c.b16 %v1485, %v1484
  %v1984 = vpack.c.b16 %v1487, %v1486
  %v1985 = vpack.c.b16 %v1489, %v1488
  %v1986 = vpack.c.b16 %v1491, %v1490
  %v1987 = vpack.c.b16 %v1493, %v1492
  %v1988 = vpack.c.b16 %v1495, %v1494
  %v1989 = vpack.c.b16 %v1497, %v1496
  %v1990 = vpack.c.b16 %v1499, %v1498
  %v1991 = vpack.c.b16 %v1501, %v1500
  %v1992 = vpack.c.b16 %v1503, %v1502
  %v1993 = vpack.c.b16 %v1505, %v1504
  %v1994 = vpack.c.b16 %v1507, %v1506
  %v1995 = vpack.c.b16 %v1509, %v1508
  %v1996 = vpack.c.b16 %v1511, %v1510
  %v1997 = vpack.c.b16 %v1513, %v1512
  %v1998 = vpack.c.b16 %v1515, %v1514
  %v1999 = vpack.c.b16 %v1517, %v1516
  %v2000 = vpack.c.b16 %v1519, %v1518
  %v2001 = vpack.c.b16 %v1521, %v1520
  %v2002 = vpack.c.b16 %v1523, %v1522
  %v2003 = vpack.c.b16 %v1525, %v1524
  %v2004 = vpack.c.b16 %v1527, %v1526
  %v2005 = vpack.c.b16 %v1529, %v1528
  %v2006 = vpack.c.b16 %v1531, %v1530
  %v2007 = vpack.c.b16 %v1533, %v1532
  %v2008 = vpack.c.b16 %v1535, %v1534
  %v2009 = vpack.c.b16 %v1537, %v1536
  %v2010 = vpack.c.b16 %v1539, %v1538
  %v2011 = vpack.c.b16 %v1541, %v1540
  %v2012 = vpack.c.b16 %v1543, %v1542
  %v2013 = vpack.c.b16 %v1545, %v1544
  %v2014 = vpack.c.b16 %v1547, %v1546
  %v2015 = vpack.c.b16 %v1549, %v1548
  %v2016 = vpack.c.b16 %v1551, %v1550
  %v2017 = vpack.c.b16 %v1553, %v1552
  %v2018 = vpack.c.b16 %v1555, %v1554
  %v2019 = vpack.c.b16 %v1557, %v1556
  %v2020 = vpack.c.b16 %v1559, %v1558
  %v2021 = vpack.c.b16 %v1561, %v1560
  %v2022 = vpack.c.b16 %v1563, %v1562
  %v2023 = vpack.c.b16 %v1565, %v1564
  %v2024 = vpack.c.b16 %v1567, %v1566
  %v2025 = vpack.c.b16 %v1569, %v1568
  %v2026 = vpack.c.b16 %v1571, %v1570
  %v2027 = vpack.c.b16 %v1573, %v1572
  %v2028 = vpack.c.b16 %v1575, %v1574
  %v2029 = vpack.c.b16 %v1577, %v1576
  %v2030 = vpack.c.b16 %v1579, %v1578
  %v2031 = vpack.c.b16 %v1581, %v1580
  %v2032 = vpack.c.b16 %v1583, %v1582
  %v2033 = vpack.c.b16 %v1585, %v1584
  %v2034 = vpack.c.b16 %v1587, %v1586
  %v2035 = vpack.c.b16 %v1589, %v1588
  %v2036 = vpack.c.b16 %v1591, %v1590
  %v2037 = vpack.c.b16 %v1593, %v1592
  %v2038 = vpack.c.b16 %v1595, %v1594
  %v2039 = vpack.c.b16 %v1597, %v1596
  %v2040 = vpack.c.b16 %v1599, %v1598
  %v2041 = vpack.c.b16 %v1601, %v1600
  %v2042 = vpack.c.b16 %v1603, %v1602
  %v2043 = vpack.c.b16 %v1605, %v1604
  %v2044 = vpack.c.b16 %v1607, %v1606
  %v2045 = vpack.c.b16 %v1609, %v1608
  %v2046 = vpack.c.b16 %v1611, %v1610
  %v2047 = vpack.c.b16 %v1613, %v1612
  %v2048 = vpack.c.b16 %v1615, %v1614
  %v2049 = vpack.c.b16 %v1617, %v1616
  %v2050 = vpack.c.b16 %v1619, %v1618
  %v2051 = vpack.c.b16 %v1621, %v1620
  %v2052 = vpack.c.b16 %v1623, %v1622
  %v2053 = vpack.c.b16 %v1625, %v1624
  %v2054 = vpack.c.b16 %v1627, %v1626
  %v2055 = vpack.c.b16 %v1629, %v1628
  %v2056 = vpack.c.b16 %v1631, %v1630
  %v2057 = vpack.c.b16 %v1633, %v1632
  %v2058 = vpack.c.b16 %v1635, %v1634
  %v2059 = vpack.c.b16 %v1637, %v1636
  %v2060 = vpack.c.b16 %v1639, %v1638
  %v2061 = vpack.c.b16 %v1641, %v1640
  %v2062 = vpack.c.b16 %v1643, %v1642
  %v2063 = vpack.c.b16 %v1645, %v1644
  %v2064 = vpack.c.b16 %v1647, %v1646
  %v2065 = vpack.c.b16 %v1649, %v1648
  %v2066 = vpack.c.b16 %v1651, %v1650
  %v2067 = vpack.c.b16 %v1653, %v1652
  %v2068 = vpack.c.b16 %v1655, %v1654
  %v2069 = vpack.c.b16 %v1657, %v1656
  %v2070 = vpack.c.b16 %v1659, %v1658
  %v2071 = vpack.c.b16 %v1661, %v1660
  %v2072 = vpack.c.b16 %v1663, %v1662
  %v2073 = vpack.c.b16 %v1665, %v1664
  %v2074 = vpack.c.b16 %v1667, %v1666
  %v2075 = vpack.c.b16 %v1669, %v1668
  %v2076 = vpack.c.b16 %v1671, %v1670
  %v2077 = vpack.c.b16 %v1673, %v1672
  %v2078 = vpack.c.b16 %v1675, %v1674
  %v2079 = vpack.c.b16 %v1677, %v1676
  %v2080 = vpack.c.b16 %v1679, %v1678
  %v2081 = vpack.c.b16 %v1681, %v1680
  %v2082 = vpack.c.b16 %v1683, %v1682
  %v2083 = vpack.c.b16 %v1685, %v1684
  %v2084 = vpack.c.b16 %v1687, %v1686
  %v2085 = vpack.c.b16 %v1689, %v1688
  %v2086 = vpack.c.b16 %v1691, %v1690
  %v2087 = vpack.c.b16 %v1693, %v1692
  %v2088 = vpack.c.b16 %v1695, %v1694
  %v2089 = vpack.c.b16 %v1697, %v1696
  %v2090 = vpack.c.b16 %v1699, %v1698
  %v2091 = vpack.c.b16 %v1701, %v1700
  %v2092 = vpack.c.b16 %v1703, %v1702
  %v2093 = vpack.c.b16 %v1705, %v1704
  %v2094 = vpack.c.b16 %v1707, %v1706
  %v2095 = vpack.c.b16 %v1709, %v1708
  %v2096 = vpack.c.b16 %v1711, %v1710
  %v2097 = vpack.c.b16 %v1713, %v1712
  %v2098 = vpack.c.b16 %v1715, %v1714
  %v2099 = vpack.c.b16 %v1717, %v1716
  %v2100 = vpack.c.b16 %v1719, %v1718
  %v2101 = vpack.c.b16 %v1721, %v1720
  %v2102 = vpack.c.b16 %v1723, %v1722
  %v2103 = vpack.c.b16 %v1725, %v1724
  %v2104 = vpack.c.b16 %v1727, %v1726
  %v2105 = vpack.c.b16 %v1729, %v1728
  %v2106 = vpack.c.b16 %v1731, %v1730
  %v2107 = vpack.c.b16 %v1733, %v1732
  %v2108 = vpack.c.b16 %v1735, %v1734
  %v2109 = vpack.c.b16 %v1737, %v1736
  %v2110 = vpack.c.b16 %v1739, %v1738
  %v2111 = vpack.c.b16 %v1741, %v1740
  %v2112 = vpack.c.b16 %v1743, %v1742
  %v2113 = vpack.c.b16 %v1745, %v1744
  %v2114 = vpack.c.b16 %v1747, %v1746
  %v2115 = vpack.c.b16 %v1749, %v1748
  %v2116 = vpack.c.b16 %v1751, %v1750
  %v2117 = vpack.c.b16 %v1753, %v1752
  %v2118 = vpack.c.b16 %v1755, %v1754
  %v2119 = vpack.c.b16 %v1757, %v1756
  %v2120 = vpack.c.b16 %v1759, %v1758
  %v2121 = vpack.c.b16 %v1761, %v1760
  %v2122 = vpack.c.b16 %v1763, %v1762
  %v2123 = vpack.c.b16 %v1765, %v1764
  %v2124 = vpack.c.b16 %v1767, %v1766
  %v2125 = vpack.c.b16 %v1769, %v1768
  %v2126 = vpack.c.b16 %v1771, %v1770
  %v2127 = vpack.c.b16 %v1773, %v1772
  %v2128 = vpack.c.b16 %v1775, %v1774
  %v2129 = vpack.c.b16 %v1777, %v1776
  %v2130 = vpack.c.b16 %v1779, %v1778
  %v2131 = vpack.c.b16 %v1781, %v1780
  %v2132 = vpack.c.b16 %v1783, %v1782
  %v2133 = vpack.c.b16 %v1785, %v1784
  %v2134 = vpack.c.b16 %v1787, %v1786
  %v2135 = vpack.c.b16 %v1789, %v1788
  %v2136 = vpack.c.b16 %v1791, %v1790
  %v2137 = vpack.c.b16 %v1793, %v1792
  %v2138 = vpack.c.b16 %v1795, %v1794
  %v2139 = vpack.c.b16 %v1797, %v1796
  %v2140 = vpack.c.b16 %v1799, %v1798
  %v2141 = vpack.c.b16 %v1801, %v1800
  %v2142 = vpack.c.b16 %v1803, %v1802
  %v2143 = vpack.c.b16 %v1805, %v1804
  %v2144 = vpack.c.b16 %v1807, %v1806
  %v2145 = vpack.c.b16 %v1809, %v1808
  %v2146 = vpack.c.b16 %v1811, %v1810
  %v2147 = vpack.c.b16 %v1813, %v1812
  %v2148 = vpack.c.b16 %v1815, %v1814
  %v2149 = vpack.c.b16 %v1817, %v1816
  %v2150 = vpack.c.b16 %v1819, %v1818
  %v2151 = vpack.c.b16 %v1821, %v1820
  %v2152 = vpack.c.b16 %v1823, %v1822
  %v2153 = vpack.c.b16 %v1825, %v1824
  %v2154 = vpack.c.b16 %v1827, %v1826
  %v2155 = vpack.c.b16 %v1829, %v1828
  %v2156 = vpack.c.b16 %v1831, %v1830
  %v2157 = vpack.c.b16 %v1833, %v1832
  %v2158 = vpack.c.b16 %v1835, %v1834
  %v2159 = vpack.c.b16 %v1837, %v1836
  %v2160 = vpack.c.b16 %v1839, %v1838
  %v2161 = vpack.c.b16 %v1841, %v1840
  %v2162 = vpack.c.b16 %v1843, %v1842
  %v2163 = vpack.c.b16 %v1845, %v1844
  %v2164 = vpack.c.b16 %v1847, %v1846
  %v2165 = vpack.c.b16 %v1849, %v1848
  %v2166 = vpack.c.b16 %v1851, %v1850
  %v2167 = vpack.c.b16 %v1853, %v1852
  %v2168 = vpack.c.b16 %v1855, %v1854
  %v2169 = vpack.c.b16 %v1857, %v1856
  %v2170 = vpack.c.b16 %v1859, %v1858
  %v2171 = vpack.c.b16 %v1861, %v1860
  %v2172 = vpack.c.b16 %v1863, %v1862
  %v2173 = vpack.c.b16 %v1865, %v1864
  %v2174 = vpack.c.b16 %v1867, %v1866
  %v2175 = vpack.c.b16 %v1869, %v1868
  %v2176 = vpack.c.b16 %v1871, %v1870
  %v2177 = vpack.c.b16 %v1873, %v1872
  %v2178 = vpack.c.b16 %v1875, %v1874
  %v2179 = vpack.c.b16 %v1877, %v1876
  %v2180 = vpack.c.b16 %v1879, %v1878
  %v2181 = vpack.c.b16 %v1881, %v1880
  %v2182 = vpack.c.b16 %v1883, %v1882
  %v2183 = vpack.c.b16 %v1885, %v1884
  %v2184 = vpack.c.b16 %v1887, %v1886
  %v2185 = vpack.c.b16 %v1889, %v1888
  %v2186 = vpack.c.b16 %v1891, %v1890
  %v2187 = vpack.c.b16 %v1893, %v1892
  %v2188 = vpack.c.b16 %v1895, %v1894
  %v2189 = vpack.c.b16 %v1897, %v1896
  %v2190 = vpack.c.b16 %v1899, %v1898
  %v2191 = vpack.c.b16 %v1901, %v1900
  %v2192 = vpack.c.b16 %v1903, %v1902
  %v2193 = vpack.c.b16 %v1905, %v1904
  %2482 = vmatprep.subr.bf16.mxu0 0
  %2483 = vmatpush1.bf16.msra.mxu0 %v1906
  %2484 = vmatprep.subr.bf16.mxu0 0
  %2485 = vmatpush1.bf16.msra.mxu0 %v1907
  %2486 = vmatprep.subr.bf16.mxu0 0
  %2487 = vmatpush1.bf16.msra.mxu0 %v1908
  %2488 = vmatprep.subr.bf16.mxu0 0
  %2489 = vmatpush1.bf16.msra.mxu0 %v1909
  %2490 = vmatprep.subr.bf16.mxu0 0
  %2491 = vmatpush1.bf16.msra.mxu0 %v1910
  %2492 = vmatprep.subr.bf16.mxu0 0
  %2493 = vmatpush1.bf16.msra.mxu0 %v1911
  %2494 = vmatprep.subr.bf16.mxu0 0
  %2495 = vmatpush1.bf16.msra.mxu0 %v1912
  %2496 = vmatprep.subr.bf16.mxu0 0
  %2497 = vmatpush1.bf16.msra.mxu0 %v1913
  %2498 = vmatprep.subr.bf16.mxu0 0
  %2499 = vmatpush1.bf16.msra.mxu0 %v1914
  %2500 = vmatprep.subr.bf16.mxu0 0
  %2501 = vmatpush1.bf16.msra.mxu0 %v1915
  %2502 = vmatprep.subr.bf16.mxu0 0
  %2503 = vmatpush1.bf16.msra.mxu0 %v1916
  %2504 = vmatprep.subr.bf16.mxu0 0
  %2505 = vmatpush1.bf16.msra.mxu0 %v1917
  %2506 = vmatprep.subr.bf16.mxu0 0
  %2507 = vmatpush1.bf16.msra.mxu0 %v1918
  %2508 = vmatprep.subr.bf16.mxu0 0
  %2509 = vmatpush1.bf16.msra.mxu0 %v1919
  %2510 = vmatprep.subr.bf16.mxu0 0
  %2511 = vmatpush1.bf16.msra.mxu0 %v1920
  %2512 = vmatprep.subr.bf16.mxu0 0
  %2513 = vmatpush1.bf16.msra.mxu0 %v1921
  %2514 = vmatprep.mubr.bf16.mxu0 %v683
  %2515 = vmatmul.mubr.bf16.gmra.mrb[0].mxu0 %v682
  %v2516 = vpop.f32.mrb[0].mxu0
  %v2517 = vadd.f32 %v626, %v2516
  %v2518 = vpop.f32.mrb[0].mxu0
  %v2519 = vpop.f32.mrb[0].mxu0
  %v2520 = vpop.f32.mrb[0].mxu0
  %2521 = vdwg.mxu0
  %2522 = vmatprep.subr.bf16.mxu0 0
  %2523 = vmatpush1.bf16.msra.mxu0 %v1922
  %2524 = vmatprep.subr.bf16.mxu0 0
  %2525 = vmatpush1.bf16.msra.mxu0 %v1923
  %2526 = vmatprep.subr.bf16.mxu0 0
  %2527 = vmatpush1.bf16.msra.mxu0 %v1924
  %2528 = vmatprep.subr.bf16.mxu0 0
  %2529 = vmatpush1.bf16.msra.mxu0 %v1925
  %2530 = vmatprep.subr.bf16.mxu0 0
  %2531 = vmatpush1.bf16.msra.mxu0 %v1926
  %2532 = vmatprep.subr.bf16.mxu0 0
  %2533 = vmatpush1.bf16.msra.mxu0 %v1927
  %2534 = vmatprep.subr.bf16.mxu0 0
  %2535 = vmatpush1.bf16.msra.mxu0 %v1928
  %2536 = vmatprep.subr.bf16.mxu0 0
  %2537 = vmatpush1.bf16.msra.mxu0 %v1929
  %2538 = vmatprep.subr.bf16.mxu0 0
  %2539 = vmatpush1.bf16.msra.mxu0 %v1930
  %2540 = vmatprep.subr.bf16.mxu0 0
  %2541 = vmatpush1.bf16.msra.mxu0 %v1931
  %2542 = vmatprep.subr.bf16.mxu0 0
  %2543 = vmatpush1.bf16.msra.mxu0 %v1932
  %2544 = vmatprep.subr.bf16.mxu0 0
  %2545 = vmatpush1.bf16.msra.mxu0 %v1933
  %2546 = vmatprep.subr.bf16.mxu0 0
  %2547 = vmatpush1.bf16.msra.mxu0 %v1934
  %2548 = vmatprep.subr.bf16.mxu0 0
  %2549 = vmatpush1.bf16.msra.mxu0 %v1935
  %2550 = vmatprep.subr.bf16.mxu0 0
  %2551 = vmatpush1.bf16.msra.mxu0 %v1936
  %2552 = vmatprep.subr.bf16.mxu0 0
  %2553 = vmatpush1.bf16.msra.mxu0 %v1937
  %2554 = vmatprep.mubr.bf16.mxu0 %v685
  %2555 = vmatmul.mubr.bf16.gmra.mrb[0].mxu0 %v684
  %v2556 = vpop.f32.mrb[0].mxu0
  %v2557 = vadd.f32 %v2517, %v2556
  %v2558 = vpop.f32.mrb[0].mxu0
  %v2559 = vpop.f32.mrb[0].mxu0
  %v2560 = vpop.f32.mrb[0].mxu0
  %2561 = vdwg.mxu0
  %2562 = vmatprep.subr.bf16.mxu0 0
  %2563 = vmatpush1.bf16.msra.mxu0 %v1938
  %2564 = vmatprep.subr.bf16.mxu0 0
  %2565 = vmatpush1.bf16.msra.mxu0 %v1939
  %2566 = vmatprep.subr.bf16.mxu0 0
  %2567 = vmatpush1.bf16.msra.mxu0 %v1940
  %2568 = vmatprep.subr.bf16.mxu0 0
  %2569 = vmatpush1.bf16.msra.mxu0 %v1941
  %2570 = vmatprep.subr.bf16.mxu0 0
  %2571 = vmatpush1.bf16.msra.mxu0 %v1942
  %2572 = vmatprep.subr.bf16.mxu0 0
  %2573 = vmatpush1.bf16.msra.mxu0 %v1943
  %2574 = vmatprep.subr.bf16.mxu0 0
  %2575 = vmatpush1.bf16.msra.mxu0 %v1944
  %2576 = vmatprep.subr.bf16.mxu0 0
  %2577 = vmatpush1.bf16.msra.mxu0 %v1945
  %2578 = vmatprep.subr.bf16.mxu0 0
  %2579 = vmatpush1.bf16.msra.mxu0 %v1946
  %2580 = vmatprep.subr.bf16.mxu0 0
  %2581 = vmatpush1.bf16.msra.mxu0 %v1947
  %2582 = vmatprep.subr.bf16.mxu0 0
  %2583 = vmatpush1.bf16.msra.mxu0 %v1948
  %2584 = vmatprep.subr.bf16.mxu0 0
  %2585 = vmatpush1.bf16.msra.mxu0 %v1949
  %2586 = vmatprep.subr.bf16.mxu0 0
  %2587 = vmatpush1.bf16.msra.mxu0 %v1950
  %2588 = vmatprep.subr.bf16.mxu0 0
  %2589 = vmatpush1.bf16.msra.mxu0 %v1951
  %2590 = vmatprep.subr.bf16.mxu0 0
  %2591 = vmatpush1.bf16.msra.mxu0 %v1952
  %2592 = vmatprep.subr.bf16.mxu0 0
  %2593 = vmatpush1.bf16.msra.mxu0 %v1953
  %2594 = vmatprep.mubr.bf16.mxu0 %v687
  %2595 = vmatmul.mubr.bf16.gmra.mrb[0].mxu0 %v686
  %v2596 = vpop.f32.mrb[0].mxu0
  %v2597 = vadd.f32 %v2557, %v2596
  %v2598 = vpop.f32.mrb[0].mxu0
  %v2599 = vpop.f32.mrb[0].mxu0
  %v2600 = vpop.f32.mrb[0].mxu0
  %2601 = vdwg.mxu0
  %2602 = vmatprep.subr.bf16.mxu0 0
  %2603 = vmatpush1.bf16.msra.mxu0 %v1954
  %2604 = vmatprep.subr.bf16.mxu0 0
  %2605 = vmatpush1.bf16.msra.mxu0 %v1955
  %2606 = vmatprep.subr.bf16.mxu0 0
  %2607 = vmatpush1.bf16.msra.mxu0 %v1956
  %2608 = vmatprep.subr.bf16.mxu0 0
  %2609 = vmatpush1.bf16.msra.mxu0 %v1957
  %2610 = vmatprep.subr.bf16.mxu0 0
  %2611 = vmatpush1.bf16.msra.mxu0 %v1958
  %2612 = vmatprep.subr.bf16.mxu0 0
  %2613 = vmatpush1.bf16.msra.mxu0 %v1959
  %2614 = vmatprep.subr.bf16.mxu0 0
  %2615 = vmatpush1.bf16.msra.mxu0 %v1960
  %2616 = vmatprep.subr.bf16.mxu0 0
  %2617 = vmatpush1.bf16.msra.mxu0 %v1961
  %2618 = vmatprep.subr.bf16.mxu0 0
  %2619 = vmatpush1.bf16.msra.mxu0 %v1962
  %2620 = vmatprep.subr.bf16.mxu0 0
  %2621 = vmatpush1.bf16.msra.mxu0 %v1963
  %2622 = vmatprep.subr.bf16.mxu0 0
  %2623 = vmatpush1.bf16.msra.mxu0 %v1964
  %2624 = vmatprep.subr.bf16.mxu0 0
  %2625 = vmatpush1.bf16.msra.mxu0 %v1965
  %2626 = vmatprep.subr.bf16.mxu0 0
  %2627 = vmatpush1.bf16.msra.mxu0 %v1966
  %2628 = vmatprep.subr.bf16.mxu0 0
  %2629 = vmatpush1.bf16.msra.mxu0 %v1967
  %2630 = vmatprep.subr.bf16.mxu0 0
  %2631 = vmatpush1.bf16.msra.mxu0 %v1968
  %2632 = vmatprep.subr.bf16.mxu0 0
  %2633 = vmatpush1.bf16.msra.mxu0 %v1969
  %2634 = vmatprep.mubr.bf16.mxu0 %v689
  %2635 = vmatmul.mubr.bf16.gmra.mrb[0].mxu0 %v688
  %v2636 = vpop.f32.mrb[0].mxu0
  %v2637 = vadd.f32 %v2597, %v2636
  %v2638 = vpop.f32.mrb[0].mxu0
  %v2639 = vpop.f32.mrb[0].mxu0
  %v2640 = vpop.f32.mrb[0].mxu0
  %2641 = vdwg.mxu0
  %2642 = vmatprep.subr.bf16.mxu0 0
  %2643 = vmatpush1.bf16.msra.mxu0 %v1970
  %2644 = vmatprep.subr.bf16.mxu0 0
  %2645 = vmatpush1.bf16.msra.mxu0 %v1971
  %2646 = vmatprep.subr.bf16.mxu0 0
  %2647 = vmatpush1.bf16.msra.mxu0 %v1972
  %2648 = vmatprep.subr.bf16.mxu0 0
  %2649 = vmatpush1.bf16.msra.mxu0 %v1973
  %2650 = vmatprep.subr.bf16.mxu0 0
  %2651 = vmatpush1.bf16.msra.mxu0 %v1974
  %2652 = vmatprep.subr.bf16.mxu0 0
  %2653 = vmatpush1.bf16.msra.mxu0 %v1975
  %2654 = vmatprep.subr.bf16.mxu0 0
  %2655 = vmatpush1.bf16.msra.mxu0 %v1976
  %2656 = vmatprep.subr.bf16.mxu0 0
  %2657 = vmatpush1.bf16.msra.mxu0 %v1977
  %2658 = vmatprep.subr.bf16.mxu0 0
  %2659 = vmatpush1.bf16.msra.mxu0 %v1978
  %2660 = vmatprep.subr.bf16.mxu0 0
  %2661 = vmatpush1.bf16.msra.mxu0 %v1979
  %2662 = vmatprep.subr.bf16.mxu0 0
  %2663 = vmatpush1.bf16.msra.mxu0 %v1980
  %2664 = vmatprep.subr.bf16.mxu0 0
  %2665 = vmatpush1.bf16.msra.mxu0 %v1981
  %2666 = vmatprep.subr.bf16.mxu0 0
  %2667 = vmatpush1.bf16.msra.mxu0 %v1982
  %2668 = vmatprep.subr.bf16.mxu0 0
  %2669 = vmatpush1.bf16.msra.mxu0 %v1983
  %2670 = vmatprep.subr.bf16.mxu0 0
  %2671 = vmatpush1.bf16.msra.mxu0 %v1984
  %2672 = vmatprep.subr.bf16.mxu0 0
  %2673 = vmatpush1.bf16.msra.mxu0 %v1985
  %2674 = vmatprep.mubr.bf16.mxu0 %v691
  %2675 = vmatmul.mubr.bf16.gmra.mrb[0].mxu0 %v690
  %v2676 = vpop.f32.mrb[0].mxu0
  %v2677 = vadd.f32 %v2637, %v2676
  %v2678 = vpop.f32.mrb[0].mxu0
  %v2679 = vpop.f32.mrb[0].mxu0
  %v2680 = vpop.f32.mrb[0].mxu0
  %2681 = vdwg.mxu0
  %2682 = vmatprep.subr.bf16.mxu0 0
  %2683 = vmatpush1.bf16.msra.mxu0 %v1986
  %2684 = vmatprep.subr.bf16.mxu0 0
  %2685 = vmatpush1.bf16.msra.mxu0 %v1987
  %2686 = vmatprep.subr.bf16.mxu0 0
  %2687 = vmatpush1.bf16.msra.mxu0 %v1988
  %2688 = vmatprep.subr.bf16.mxu0 0
  %2689 = vmatpush1.bf16.msra.mxu0 %v1989
  %2690 = vmatprep.subr.bf16.mxu0 0
  %2691 = vmatpush1.bf16.msra.mxu0 %v1990
  %2692 = vmatprep.subr.bf16.mxu0 0
  %2693 = vmatpush1.bf16.msra.mxu0 %v1991
  %2694 = vmatprep.subr.bf16.mxu0 0
  %2695 = vmatpush1.bf16.msra.mxu0 %v1992
  %2696 = vmatprep.subr.bf16.mxu0 0
  %2697 = vmatpush1.bf16.msra.mxu0 %v1993
  %2698 = vmatprep.subr.bf16.mxu0 0
  %2699 = vmatpush1.bf16.msra.mxu0 %v1994
  %2700 = vmatprep.subr.bf16.mxu0 0
  %2701 = vmatpush1.bf16.msra.mxu0 %v1995
  %2702 = vmatprep.subr.bf16.mxu0 0
  %2703 = vmatpush1.bf16.msra.mxu0 %v1996
  %2704 = vmatprep.subr.bf16.mxu0 0
  %2705 = vmatpush1.bf16.msra.mxu0 %v1997
  %2706 = vmatprep.subr.bf16.mxu0 0
  %2707 = vmatpush1.bf16.msra.mxu0 %v1998
  %2708 = vmatprep.subr.bf16.mxu0 0
  %2709 = vmatpush1.bf16.msra.mxu0 %v1999
  %2710 = vmatprep.subr.bf16.mxu0 0
  %2711 = vmatpush1.bf16.msra.mxu0 %v2000
  %2712 = vmatprep.subr.bf16.mxu0 0
  %2713 = vmatpush1.bf16.msra.mxu0 %v2001
  %2714 = vmatprep.mubr.bf16.mxu0 %v693
  %2715 = vmatmul.mubr.bf16.gmra.mrb[0].mxu0 %v692
  %v2716 = vpop.f32.mrb[0].mxu0
  %v2717 = vadd.f32 %v2677, %v2716
  %v2718 = vpop.f32.mrb[0].mxu0
  %v2719 = vpop.f32.mrb[0].mxu0
  %v2720 = vpop.f32.mrb[0].mxu0
  %2721 = vdwg.mxu0
  %2722 = vmatprep.subr.bf16.mxu0 0
  %2723 = vmatpush1.bf16.msra.mxu0 %v2002
  %2724 = vmatprep.subr.bf16.mxu0 0
  %2725 = vmatpush1.bf16.msra.mxu0 %v2003
  %2726 = vmatprep.subr.bf16.mxu0 0
  %2727 = vmatpush1.bf16.msra.mxu0 %v2004
  %2728 = vmatprep.subr.bf16.mxu0 0
  %2729 = vmatpush1.bf16.msra.mxu0 %v2005
  %2730 = vmatprep.subr.bf16.mxu0 0
  %2731 = vmatpush1.bf16.msra.mxu0 %v2006
  %2732 = vmatprep.subr.bf16.mxu0 0
  %2733 = vmatpush1.bf16.msra.mxu0 %v2007
  %2734 = vmatprep.subr.bf16.mxu0 0
  %2735 = vmatpush1.bf16.msra.mxu0 %v2008
  %2736 = vmatprep.subr.bf16.mxu0 0
  %2737 = vmatpush1.bf16.msra.mxu0 %v2009
  %2738 = vmatprep.subr.bf16.mxu0 0
  %2739 = vmatpush1.bf16.msra.mxu0 %v2010
  %2740 = vmatprep.subr.bf16.mxu0 0
  %2741 = vmatpush1.bf16.msra.mxu0 %v2011
  %2742 = vmatprep.subr.bf16.mxu0 0
  %2743 = vmatpush1.bf16.msra.mxu0 %v2012
  %2744 = vmatprep.subr.bf16.mxu0 0
  %2745 = vmatpush1.bf16.msra.mxu0 %v2013
  %2746 = vmatprep.subr.bf16.mxu0 0
  %2747 = vmatpush1.bf16.msra.mxu0 %v2014
  %2748 = vmatprep.subr.bf16.mxu0 0
  %2749 = vmatpush1.bf16.msra.mxu0 %v2015
  %2750 = vmatprep.subr.bf16.mxu0 0
  %2751 = vmatpush1.bf16.msra.mxu0 %v2016
  %2752 = vmatprep.subr.bf16.mxu0 0
  %2753 = vmatpush1.bf16.msra.mxu0 %v2017
  %2754 = vmatprep.mubr.bf16.mxu0 %v695
  %2755 = vmatmul.mubr.bf16.gmra.mrb[0].mxu0 %v694
  %v2756 = vpop.f32.mrb[0].mxu0
  %v2757 = vadd.f32 %v2717, %v2756
  %v2758 = vpop.f32.mrb[0].mxu0
  %v2759 = vpop.f32.mrb[0].mxu0
  %v2760 = vpop.f32.mrb[0].mxu0
  %2761 = vdwg.mxu0
  %2762 = vmatprep.subr.bf16.mxu0 0
  %2763 = vmatpush1.bf16.msra.mxu0 %v2018
  %2764 = vmatprep.subr.bf16.mxu0 0
  %2765 = vmatpush1.bf16.msra.mxu0 %v2019
  %2766 = vmatprep.subr.bf16.mxu0 0
  %2767 = vmatpush1.bf16.msra.mxu0 %v2020
  %2768 = vmatprep.subr.bf16.mxu0 0
  %2769 = vmatpush1.bf16.msra.mxu0 %v2021
  %2770 = vmatprep.subr.bf16.mxu0 0
  %2771 = vmatpush1.bf16.msra.mxu0 %v2022
  %2772 = vmatprep.subr.bf16.mxu0 0
  %2773 = vmatpush1.bf16.msra.mxu0 %v2023
  %2774 = vmatprep.subr.bf16.mxu0 0
  %2775 = vmatpush1.bf16.msra.mxu0 %v2024
  %2776 = vmatprep.subr.bf16.mxu0 0
  %2777 = vmatpush1.bf16.msra.mxu0 %v2025
  %2778 = vmatprep.subr.bf16.mxu0 0
  %2779 = vmatpush1.bf16.msra.mxu0 %v2026
  %2780 = vmatprep.subr.bf16.mxu0 0
  %2781 = vmatpush1.bf16.msra.mxu0 %v2027
  %2782 = vmatprep.subr.bf16.mxu0 0
  %2783 = vmatpush1.bf16.msra.mxu0 %v2028
  %2784 = vmatprep.subr.bf16.mxu0 0
  %2785 = vmatpush1.bf16.msra.mxu0 %v2029
  %2786 = vmatprep.subr.bf16.mxu0 0
  %2787 = vmatpush1.bf16.msra.mxu0 %v2030
  %2788 = vmatprep.subr.bf16.mxu0 0
  %2789 = vmatpush1.bf16.msra.mxu0 %v2031
  %2790 = vmatprep.subr.bf16.mxu0 0
  %2791 = vmatpush1.bf16.msra.mxu0 %v2032
  %2792 = vmatprep.subr.bf16.mxu0 0
  %2793 = vmatpush1.bf16.msra.mxu0 %v2033
  %2794 = vmatprep.mubr.bf16.mxu0 %v697
  %2795 = vmatmul.mubr.bf16.gmra.mrb[0].mxu0 %v696
  %v2796 = vpop.f32.mrb[0].mxu0
  %v2797 = vadd.f32 %v2757, %v2796
  %v2798 = vpop.f32.mrb[0].mxu0
  %v2799 = vpop.f32.mrb[0].mxu0
  %v2800 = vpop.f32.mrb[0].mxu0
  %2801 = vdwg.mxu0
  %2802 = vmatprep.subr.bf16.mxu0 0
  %2803 = vmatpush1.bf16.msra.mxu0 %v2034
  %2804 = vmatprep.subr.bf16.mxu0 0
  %2805 = vmatpush1.bf16.msra.mxu0 %v2035
  %2806 = vmatprep.subr.bf16.mxu0 0
  %2807 = vmatpush1.bf16.msra.mxu0 %v2036
  %2808 = vmatprep.subr.bf16.mxu0 0
  %2809 = vmatpush1.bf16.msra.mxu0 %v2037
  %2810 = vmatprep.subr.bf16.mxu0 0
  %2811 = vmatpush1.bf16.msra.mxu0 %v2038
  %2812 = vmatprep.subr.bf16.mxu0 0
  %2813 = vmatpush1.bf16.msra.mxu0 %v2039
  %2814 = vmatprep.subr.bf16.mxu0 0
  %2815 = vmatpush1.bf16.msra.mxu0 %v2040
  %2816 = vmatprep.subr.bf16.mxu0 0
  %2817 = vmatpush1.bf16.msra.mxu0 %v2041
  %2818 = vmatprep.subr.bf16.mxu0 0
  %2819 = vmatpush1.bf16.msra.mxu0 %v2042
  %2820 = vmatprep.subr.bf16.mxu0 0
  %2821 = vmatpush1.bf16.msra.mxu0 %v2043
  %2822 = vmatprep.subr.bf16.mxu0 0
  %2823 = vmatpush1.bf16.msra.mxu0 %v2044
  %2824 = vmatprep.subr.bf16.mxu0 0
  %2825 = vmatpush1.bf16.msra.mxu0 %v2045
  %2826 = vmatprep.subr.bf16.mxu0 0
  %2827 = vmatpush1.bf16.msra.mxu0 %v2046
  %2828 = vmatprep.subr.bf16.mxu0 0
  %2829 = vmatpush1.bf16.msra.mxu0 %v2047
  %2830 = vmatprep.subr.bf16.mxu0 0
  %2831 = vmatpush1.bf16.msra.mxu0 %v2048
  %2832 = vmatprep.subr.bf16.mxu0 0
  %2833 = vmatpush1.bf16.msra.mxu0 %v2049
  %2834 = vmatprep.mubr.bf16.mxu0 %v699
  %2835 = vmatmul.mubr.bf16.gmra.mrb[0].mxu0 %v698
  %v2836 = vpop.f32.mrb[0].mxu0
  %v2837 = vadd.f32 %v2797, %v2836
  %v2838 = vpop.f32.mrb[0].mxu0
  %v2839 = vpop.f32.mrb[0].mxu0
  %v2840 = vpop.f32.mrb[0].mxu0
  %2841 = vdwg.mxu0
  %2842 = vmatprep.subr.bf16.mxu0 0
  %2843 = vmatpush1.bf16.msra.mxu0 %v2050
  %2844 = vmatprep.subr.bf16.mxu0 0
  %2845 = vmatpush1.bf16.msra.mxu0 %v2051
  %2846 = vmatprep.subr.bf16.mxu0 0
  %2847 = vmatpush1.bf16.msra.mxu0 %v2052
  %2848 = vmatprep.subr.bf16.mxu0 0
  %2849 = vmatpush1.bf16.msra.mxu0 %v2053
  %2850 = vmatprep.subr.bf16.mxu0 0
  %2851 = vmatpush1.bf16.msra.mxu0 %v2054
  %2852 = vmatprep.subr.bf16.mxu0 0
  %2853 = vmatpush1.bf16.msra.mxu0 %v2055
  %2854 = vmatprep.subr.bf16.mxu0 0
  %2855 = vmatpush1.bf16.msra.mxu0 %v2056
  %2856 = vmatprep.subr.bf16.mxu0 0
  %2857 = vmatpush1.bf16.msra.mxu0 %v2057
  %2858 = vmatprep.subr.bf16.mxu0 0
  %2859 = vmatpush1.bf16.msra.mxu0 %v2058
  %2860 = vmatprep.subr.bf16.mxu0 0
  %2861 = vmatpush1.bf16.msra.mxu0 %v2059
  %2862 = vmatprep.subr.bf16.mxu0 0
  %2863 = vmatpush1.bf16.msra.mxu0 %v2060
  %2864 = vmatprep.subr.bf16.mxu0 0
  %2865 = vmatpush1.bf16.msra.mxu0 %v2061
  %2866 = vmatprep.subr.bf16.mxu0 0
  %2867 = vmatpush1.bf16.msra.mxu0 %v2062
  %2868 = vmatprep.subr.bf16.mxu0 0
  %2869 = vmatpush1.bf16.msra.mxu0 %v2063
  %2870 = vmatprep.subr.bf16.mxu0 0
  %2871 = vmatpush1.bf16.msra.mxu0 %v2064
  %2872 = vmatprep.subr.bf16.mxu0 0
  %2873 = vmatpush1.bf16.msra.mxu0 %v2065
  %2874 = vmatprep.mubr.bf16.mxu0 %v701
  %2875 = vmatmul.mubr.bf16.gmra.mrb[0].mxu0 %v700
  %v2876 = vpop.f32.mrb[0].mxu0
  %v2877 = vadd.f32 %v2837, %v2876
  %v2878 = vpop.f32.mrb[0].mxu0
  %v2879 = vpop.f32.mrb[0].mxu0
  %v2880 = vpop.f32.mrb[0].mxu0
  %2881 = vdwg.mxu0
  %2882 = vmatprep.subr.bf16.mxu0 0
  %2883 = vmatpush1.bf16.msra.mxu0 %v2066
  %2884 = vmatprep.subr.bf16.mxu0 0
  %2885 = vmatpush1.bf16.msra.mxu0 %v2067
  %2886 = vmatprep.subr.bf16.mxu0 0
  %2887 = vmatpush1.bf16.msra.mxu0 %v2068
  %2888 = vmatprep.subr.bf16.mxu0 0
  %2889 = vmatpush1.bf16.msra.mxu0 %v2069
  %2890 = vmatprep.subr.bf16.mxu0 0
  %2891 = vmatpush1.bf16.msra.mxu0 %v2070
  %2892 = vmatprep.subr.bf16.mxu0 0
  %2893 = vmatpush1.bf16.msra.mxu0 %v2071
  %2894 = vmatprep.subr.bf16.mxu0 0
  %2895 = vmatpush1.bf16.msra.mxu0 %v2072
  %2896 = vmatprep.subr.bf16.mxu0 0
  %2897 = vmatpush1.bf16.msra.mxu0 %v2073
  %2898 = vmatprep.subr.bf16.mxu0 0
  %2899 = vmatpush1.bf16.msra.mxu0 %v2074
  %2900 = vmatprep.subr.bf16.mxu0 0
  %2901 = vmatpush1.bf16.msra.mxu0 %v2075
  %2902 = vmatprep.subr.bf16.mxu0 0
  %2903 = vmatpush1.bf16.msra.mxu0 %v2076
  %2904 = vmatprep.subr.bf16.mxu0 0
  %2905 = vmatpush1.bf16.msra.mxu0 %v2077
  %2906 = vmatprep.subr.bf16.mxu0 0
  %2907 = vmatpush1.bf16.msra.mxu0 %v2078
  %2908 = vmatprep.subr.bf16.mxu0 0
  %2909 = vmatpush1.bf16.msra.mxu0 %v2079
  %2910 = vmatprep.subr.bf16.mxu0 0
  %2911 = vmatpush1.bf16.msra.mxu0 %v2080
  %2912 = vmatprep.subr.bf16.mxu0 0
  %2913 = vmatpush1.bf16.msra.mxu0 %v2081
  %2914 = vmatprep.mubr.bf16.mxu0 %v703
  %2915 = vmatmul.mubr.bf16.gmra.mrb[0].mxu0 %v702
  %v2916 = vpop.f32.mrb[0].mxu0
  %v2917 = vadd.f32 %v2877, %v2916
  %v2918 = vpop.f32.mrb[0].mxu0
  %v2919 = vpop.f32.mrb[0].mxu0
  %v2920 = vpop.f32.mrb[0].mxu0
  %2921 = vdwg.mxu0
  %2922 = vmatprep.subr.bf16.mxu0 0
  %2923 = vmatpush1.bf16.msra.mxu0 %v2082
  %2924 = vmatprep.subr.bf16.mxu0 0
  %2925 = vmatpush1.bf16.msra.mxu0 %v2083
  %2926 = vmatprep.subr.bf16.mxu0 0
  %2927 = vmatpush1.bf16.msra.mxu0 %v2084
  %2928 = vmatprep.subr.bf16.mxu0 0
  %2929 = vmatpush1.bf16.msra.mxu0 %v2085
  %2930 = vmatprep.subr.bf16.mxu0 0
  %2931 = vmatpush1.bf16.msra.mxu0 %v2086
  %2932 = vmatprep.subr.bf16.mxu0 0
  %2933 = vmatpush1.bf16.msra.mxu0 %v2087
  %2934 = vmatprep.subr.bf16.mxu0 0
  %2935 = vmatpush1.bf16.msra.mxu0 %v2088
  %2936 = vmatprep.subr.bf16.mxu0 0
  %2937 = vmatpush1.bf16.msra.mxu0 %v2089
  %2938 = vmatprep.subr.bf16.mxu0 0
  %2939 = vmatpush1.bf16.msra.mxu0 %v2090
  %2940 = vmatprep.subr.bf16.mxu0 0
  %2941 = vmatpush1.bf16.msra.mxu0 %v2091
  %2942 = vmatprep.subr.bf16.mxu0 0
  %2943 = vmatpush1.bf16.msra.mxu0 %v2092
  %2944 = vmatprep.subr.bf16.mxu0 0
  %2945 = vmatpush1.bf16.msra.mxu0 %v2093
  %2946 = vmatprep.subr.bf16.mxu0 0
  %2947 = vmatpush1.bf16.msra.mxu0 %v2094
  %2948 = vmatprep.subr.bf16.mxu0 0
  %2949 = vmatpush1.bf16.msra.mxu0 %v2095
  %2950 = vmatprep.subr.bf16.mxu0 0
  %2951 = vmatpush1.bf16.msra.mxu0 %v2096
  %2952 = vmatprep.subr.bf16.mxu0 0
  %2953 = vmatpush1.bf16.msra.mxu0 %v2097
  %2954 = vmatprep.mubr.bf16.mxu0 %v705
  %2955 = vmatmul.mubr.bf16.gmra.mrb[0].mxu0 %v704
  %v2956 = vpop.f32.mrb[0].mxu0
  %v2957 = vadd.f32 %v2917, %v2956
  %v2958 = vpop.f32.mrb[0].mxu0
  %v2959 = vpop.f32.mrb[0].mxu0
  %v2960 = vpop.f32.mrb[0].mxu0
  %2961 = vdwg.mxu0
  %2962 = vmatprep.subr.bf16.mxu0 0
  %2963 = vmatpush1.bf16.msra.mxu0 %v2098
  %2964 = vmatprep.subr.bf16.mxu0 0
  %2965 = vmatpush1.bf16.msra.mxu0 %v2099
  %2966 = vmatprep.subr.bf16.mxu0 0
  %2967 = vmatpush1.bf16.msra.mxu0 %v2100
  %2968 = vmatprep.subr.bf16.mxu0 0
  %2969 = vmatpush1.bf16.msra.mxu0 %v2101
  %2970 = vmatprep.subr.bf16.mxu0 0
  %2971 = vmatpush1.bf16.msra.mxu0 %v2102
  %2972 = vmatprep.subr.bf16.mxu0 0
  %2973 = vmatpush1.bf16.msra.mxu0 %v2103
  %2974 = vmatprep.subr.bf16.mxu0 0
  %2975 = vmatpush1.bf16.msra.mxu0 %v2104
  %2976 = vmatprep.subr.bf16.mxu0 0
  %2977 = vmatpush1.bf16.msra.mxu0 %v2105
  %2978 = vmatprep.subr.bf16.mxu0 0
  %2979 = vmatpush1.bf16.msra.mxu0 %v2106
  %2980 = vmatprep.subr.bf16.mxu0 0
  %2981 = vmatpush1.bf16.msra.mxu0 %v2107
  %2982 = vmatprep.subr.bf16.mxu0 0
  %2983 = vmatpush1.bf16.msra.mxu0 %v2108
  %2984 = vmatprep.subr.bf16.mxu0 0
  %2985 = vmatpush1.bf16.msra.mxu0 %v2109
  %2986 = vmatprep.subr.bf16.mxu0 0
  %2987 = vmatpush1.bf16.msra.mxu0 %v2110
  %2988 = vmatprep.subr.bf16.mxu0 0
  %2989 = vmatpush1.bf16.msra.mxu0 %v2111
  %2990 = vmatprep.subr.bf16.mxu0 0
  %2991 = vmatpush1.bf16.msra.mxu0 %v2112
  %2992 = vmatprep.subr.bf16.mxu0 0
  %2993 = vmatpush1.bf16.msra.mxu0 %v2113
  %2994 = vmatprep.mubr.bf16.mxu0 %v707
  %2995 = vmatmul.mubr.bf16.gmra.mrb[0].mxu0 %v706
  %v2996 = vpop.f32.mrb[0].mxu0
  %v2997 = vadd.f32 %v2957, %v2996
  %v2998 = vpop.f32.mrb[0].mxu0
  %v2999 = vpop.f32.mrb[0].mxu0
  %v3000 = vpop.f32.mrb[0].mxu0
  %3001 = vdwg.mxu0
  %3002 = vmatprep.subr.bf16.mxu0 0
  %3003 = vmatpush1.bf16.msra.mxu0 %v2114
  %3004 = vmatprep.subr.bf16.mxu0 0
  %3005 = vmatpush1.bf16.msra.mxu0 %v2115
  %3006 = vmatprep.subr.bf16.mxu0 0
  %3007 = vmatpush1.bf16.msra.mxu0 %v2116
  %3008 = vmatprep.subr.bf16.mxu0 0
  %3009 = vmatpush1.bf16.msra.mxu0 %v2117
  %3010 = vmatprep.subr.bf16.mxu0 0
  %3011 = vmatpush1.bf16.msra.mxu0 %v2118
  %3012 = vmatprep.subr.bf16.mxu0 0
  %3013 = vmatpush1.bf16.msra.mxu0 %v2119
  %3014 = vmatprep.subr.bf16.mxu0 0
  %3015 = vmatpush1.bf16.msra.mxu0 %v2120
  %3016 = vmatprep.subr.bf16.mxu0 0
  %3017 = vmatpush1.bf16.msra.mxu0 %v2121
  %3018 = vmatprep.subr.bf16.mxu0 0
  %3019 = vmatpush1.bf16.msra.mxu0 %v2122
  %3020 = vmatprep.subr.bf16.mxu0 0
  %3021 = vmatpush1.bf16.msra.mxu0 %v2123
  %3022 = vmatprep.subr.bf16.mxu0 0
  %3023 = vmatpush1.bf16.msra.mxu0 %v2124
  %3024 = vmatprep.subr.bf16.mxu0 0
  %3025 = vmatpush1.bf16.msra.mxu0 %v2125
  %3026 = vmatprep.subr.bf16.mxu0 0
  %3027 = vmatpush1.bf16.msra.mxu0 %v2126
  %3028 = vmatprep.subr.bf16.mxu0 0
  %3029 = vmatpush1.bf16.msra.mxu0 %v2127
  %3030 = vmatprep.subr.bf16.mxu0 0
  %3031 = vmatpush1.bf16.msra.mxu0 %v2128
  %3032 = vmatprep.subr.bf16.mxu0 0
  %3033 = vmatpush1.bf16.msra.mxu0 %v2129
  %3034 = vmatprep.mubr.bf16.mxu0 %v709
  %3035 = vmatmul.mubr.bf16.gmra.mrb[0].mxu0 %v708
  %v3036 = vpop.f32.mrb[0].mxu0
  %v3037 = vadd.f32 %v2997, %v3036
  %v3038 = vpop.f32.mrb[0].mxu0
  %v3039 = vpop.f32.mrb[0].mxu0
  %v3040 = vpop.f32.mrb[0].mxu0
  %3041 = vdwg.mxu0
  %3042 = vmatprep.subr.bf16.mxu0 0
  %3043 = vmatpush1.bf16.msra.mxu0 %v2130
  %3044 = vmatprep.subr.bf16.mxu0 0
  %3045 = vmatpush1.bf16.msra.mxu0 %v2131
  %3046 = vmatprep.subr.bf16.mxu0 0
  %3047 = vmatpush1.bf16.msra.mxu0 %v2132
  %3048 = vmatprep.subr.bf16.mxu0 0
  %3049 = vmatpush1.bf16.msra.mxu0 %v2133
  %3050 = vmatprep.subr.bf16.mxu0 0
  %3051 = vmatpush1.bf16.msra.mxu0 %v2134
  %3052 = vmatprep.subr.bf16.mxu0 0
  %3053 = vmatpush1.bf16.msra.mxu0 %v2135
  %3054 = vmatprep.subr.bf16.mxu0 0
  %3055 = vmatpush1.bf16.msra.mxu0 %v2136
  %3056 = vmatprep.subr.bf16.mxu0 0
  %3057 = vmatpush1.bf16.msra.mxu0 %v2137
  %3058 = vmatprep.subr.bf16.mxu0 0
  %3059 = vmatpush1.bf16.msra.mxu0 %v2138
  %3060 = vmatprep.subr.bf16.mxu0 0
  %3061 = vmatpush1.bf16.msra.mxu0 %v2139
  %3062 = vmatprep.subr.bf16.mxu0 0
  %3063 = vmatpush1.bf16.msra.mxu0 %v2140
  %3064 = vmatprep.subr.bf16.mxu0 0
  %3065 = vmatpush1.bf16.msra.mxu0 %v2141
  %3066 = vmatprep.subr.bf16.mxu0 0
  %3067 = vmatpush1.bf16.msra.mxu0 %v2142
  %3068 = vmatprep.subr.bf16.mxu0 0
  %3069 = vmatpush1.bf16.msra.mxu0 %v2143
  %3070 = vmatprep.subr.bf16.mxu0 0
  %3071 = vmatpush1.bf16.msra.mxu0 %v2144
  %3072 = vmatprep.subr.bf16.mxu0 0
  %3073 = vmatpush1.bf16.msra.mxu0 %v2145
  %3074 = vmatprep.mubr.bf16.mxu0 %v711
  %3075 = vmatmul.mubr.bf16.gmra.mrb[0].mxu0 %v710
  %v3076 = vpop.f32.mrb[0].mxu0
  %v3077 = vadd.f32 %v3037, %v3076
  %v3078 = vpop.f32.mrb[0].mxu0
  %v3079 = vpop.f32.mrb[0].mxu0
  %v3080 = vpop.f32.mrb[0].mxu0
  %3081 = vdwg.mxu0
  %3082 = vmatprep.subr.bf16.mxu0 0
  %3083 = vmatpush1.bf16.msra.mxu0 %v2146
  %3084 = vmatprep.subr.bf16.mxu0 0
  %3085 = vmatpush1.bf16.msra.mxu0 %v2147
  %3086 = vmatprep.subr.bf16.mxu0 0
  %3087 = vmatpush1.bf16.msra.mxu0 %v2148
  %3088 = vmatprep.subr.bf16.mxu0 0
  %3089 = vmatpush1.bf16.msra.mxu0 %v2149
  %3090 = vmatprep.subr.bf16.mxu0 0
  %3091 = vmatpush1.bf16.msra.mxu0 %v2150
  %3092 = vmatprep.subr.bf16.mxu0 0
  %3093 = vmatpush1.bf16.msra.mxu0 %v2151
  %3094 = vmatprep.subr.bf16.mxu0 0
  %3095 = vmatpush1.bf16.msra.mxu0 %v2152
  %3096 = vmatprep.subr.bf16.mxu0 0
  %3097 = vmatpush1.bf16.msra.mxu0 %v2153
  %3098 = vmatprep.subr.bf16.mxu0 0
  %3099 = vmatpush1.bf16.msra.mxu0 %v2154
  %3100 = vmatprep.subr.bf16.mxu0 0
  %3101 = vmatpush1.bf16.msra.mxu0 %v2155
  %3102 = vmatprep.subr.bf16.mxu0 0
  %3103 = vmatpush1.bf16.msra.mxu0 %v2156
  %3104 = vmatprep.subr.bf16.mxu0 0
  %3105 = vmatpush1.bf16.msra.mxu0 %v2157
  %3106 = vmatprep.subr.bf16.mxu0 0
  %3107 = vmatpush1.bf16.msra.mxu0 %v2158
  %3108 = vmatprep.subr.bf16.mxu0 0
  %3109 = vmatpush1.bf16.msra.mxu0 %v2159
  %3110 = vmatprep.subr.bf16.mxu0 0
  %3111 = vmatpush1.bf16.msra.mxu0 %v2160
  %3112 = vmatprep.subr.bf16.mxu0 0
  %3113 = vmatpush1.bf16.msra.mxu0 %v2161
  %3114 = vmatprep.mubr.bf16.mxu0 %v713
  %3115 = vmatmul.mubr.bf16.gmra.mrb[0].mxu0 %v712
  %v3116 = vpop.f32.mrb[0].mxu0
  %v3117 = vadd.f32 %v3077, %v3116
  %v3118 = vpop.f32.mrb[0].mxu0
  %v3119 = vpop.f32.mrb[0].mxu0
  %v3120 = vpop.f32.mrb[0].mxu0
  %3121 = vdwg.mxu0
  %3122 = vmatprep.subr.bf16.mxu0 0
  %3123 = vmatpush1.bf16.msra.mxu0 %v2162
  %3124 = vmatprep.subr.bf16.mxu0 0
  %3125 = vmatpush1.bf16.msra.mxu0 %v2163
  %3126 = vmatprep.subr.bf16.mxu0 0
  %3127 = vmatpush1.bf16.msra.mxu0 %v2164
  %3128 = vmatprep.subr.bf16.mxu0 0
  %3129 = vmatpush1.bf16.msra.mxu0 %v2165
  %3130 = vmatprep.subr.bf16.mxu0 0
  %3131 = vmatpush1.bf16.msra.mxu0 %v2166
  %3132 = vmatprep.subr.bf16.mxu0 0
  %3133 = vmatpush1.bf16.msra.mxu0 %v2167
  %3134 = vmatprep.subr.bf16.mxu0 0
  %3135 = vmatpush1.bf16.msra.mxu0 %v2168
  %3136 = vmatprep.subr.bf16.mxu0 0
  %3137 = vmatpush1.bf16.msra.mxu0 %v2169
  %3138 = vmatprep.subr.bf16.mxu0 0
  %3139 = vmatpush1.bf16.msra.mxu0 %v2170
  %3140 = vmatprep.subr.bf16.mxu0 0
  %3141 = vmatpush1.bf16.msra.mxu0 %v2171
  %3142 = vmatprep.subr.bf16.mxu0 0
  %3143 = vmatpush1.bf16.msra.mxu0 %v2172
  %3144 = vmatprep.subr.bf16.mxu0 0
  %3145 = vmatpush1.bf16.msra.mxu0 %v2173
  %3146 = vmatprep.subr.bf16.mxu0 0
  %3147 = vmatpush1.bf16.msra.mxu0 %v2174
  %3148 = vmatprep.subr.bf16.mxu0 0
  %3149 = vmatpush1.bf16.msra.mxu0 %v2175
  %3150 = vmatprep.subr.bf16.mxu0 0
  %3151 = vmatpush1.bf16.msra.mxu0 %v2176
  %3152 = vmatprep.subr.bf16.mxu0 0
  %3153 = vmatpush1.bf16.msra.mxu0 %v2177
  %3154 = vmatprep.mubr.bf16.mxu0 %v715
  %3155 = vmatmul.mubr.bf16.gmra.mrb[0].mxu0 %v714
  %v3156 = vpop.f32.mrb[0].mxu0
  %v3157 = vadd.f32 %v3117, %v3156
  %v3158 = vpop.f32.mrb[0].mxu0
  %v3159 = vpop.f32.mrb[0].mxu0
  %v3160 = vpop.f32.mrb[0].mxu0
  %3161 = vdwg.mxu0
  %3162 = vmatprep.subr.bf16.mxu0 0
  %3163 = vmatpush1.bf16.msra.mxu0 %v2178
  %3164 = vmatprep.subr.bf16.mxu0 0
  %3165 = vmatpush1.bf16.msra.mxu0 %v2179
  %3166 = vmatprep.subr.bf16.mxu0 0
  %3167 = vmatpush1.bf16.msra.mxu0 %v2180
  %3168 = vmatprep.subr.bf16.mxu0 0
  %3169 = vmatpush1.bf16.msra.mxu0 %v2181
  %3170 = vmatprep.subr.bf16.mxu0 0
  %3171 = vmatpush1.bf16.msra.mxu0 %v2182
  %3172 = vmatprep.subr.bf16.mxu0 0
  %3173 = vmatpush1.bf16.msra.mxu0 %v2183
  %3174 = vmatprep.subr.bf16.mxu0 0
  %3175 = vmatpush1.bf16.msra.mxu0 %v2184
  %3176 = vmatprep.subr.bf16.mxu0 0
  %3177 = vmatpush1.bf16.msra.mxu0 %v2185
  %3178 = vmatprep.subr.bf16.mxu0 0
  %3179 = vmatpush1.bf16.msra.mxu0 %v2186
  %3180 = vmatprep.subr.bf16.mxu0 0
  %3181 = vmatpush1.bf16.msra.mxu0 %v2187
  %3182 = vmatprep.subr.bf16.mxu0 0
  %3183 = vmatpush1.bf16.msra.mxu0 %v2188
  %3184 = vmatprep.subr.bf16.mxu0 0
  %3185 = vmatpush1.bf16.msra.mxu0 %v2189
  %3186 = vmatprep.subr.bf16.mxu0 0
  %3187 = vmatpush1.bf16.msra.mxu0 %v2190
  %3188 = vmatprep.subr.bf16.mxu0 0
  %3189 = vmatpush1.bf16.msra.mxu0 %v2191
  %3190 = vmatprep.subr.bf16.mxu0 0
  %3191 = vmatpush1.bf16.msra.mxu0 %v2192
  %3192 = vmatprep.subr.bf16.mxu0 0
  %3193 = vmatpush1.bf16.msra.mxu0 %v2193
  %3194 = vmatprep.mubr.bf16.mxu0 %v717
  %3195 = vmatmul.mubr.bf16.gmra.mrb[0].mxu0 %v716
  %v3196 = vpop.f32.mrb[0].mxu0
  %v3197 = vadd.f32 %v3157, %v3196
  %v3198 = vpop.f32.mrb[0].mxu0
  %v3199 = vpop.f32.mrb[0].mxu0
  %v3200 = vpop.f32.mrb[0].mxu0
  %3201 = vdwg.mxu0
  %v3202 = vmax.f32 %v3197, 0.0
  %v3203 = vpack.c.bf16 %v3202, %v3202
  %v3204 = vld [vmem:[%s3] sm:$0xf]
  %v3205 = vld [vmem:[%s3 + $0x4] sm:$0xf]
  %v3206 = vld [vmem:[%s3 + $0x8] sm:$0xf]
  %v3207 = vld [vmem:[%s3 + $0xc] sm:$0xf]
  %v3208 = vld [vmem:[%s3 + $0x10] sm:$0xf]
  %v3209 = vld [vmem:[%s3 + $0x14] sm:$0xf]
  %v3210 = vld [vmem:[%s3 + $0x18] sm:$0xf]
  %v3211 = vld [vmem:[%s3 + $0x1c] sm:$0xf]
  %v3212 = vld [vmem:[%s4] sm:$0x1]
  %v3214 = vlaneseq
  %v3215 = vshrl.u32 %v3214, 7
  %v3216 = vsub.s32 0, %v3215
  %v3217 = vrot.slane %v3212, %v3216
  %v3227 = vunpack.c.l.b16 %v3204
  %v3228 = vunpack.c.l.b16 %v3205
  %v3229 = vunpack.c.l.b16 %v3206
  %v3230 = vunpack.c.l.b16 %v3207
  %v3231 = vunpack.c.l.b16 %v3208
  %v3232 = vunpack.c.l.b16 %v3209
  %v3233 = vunpack.c.l.b16 %v3210
  %v3234 = vunpack.c.l.b16 %v3211
  %v3235 = vpack.c.b16 %v3228, %v3227
  %v3236 = vpack.c.b16 %v3230, %v3229
  %v3237 = vpack.c.b16 %v3232, %v3231
  %v3238 = vpack.c.b16 %v3234, %v3233
  %vm3243 = vcmask 523264
  %v3245 = vsel %vm3243, %v3203, 0
  %3247 = vmatprep.subr.bf16.mxu0 0
  %3248 = vmatpush1.bf16.msra.mxu0 %v3235
  %3249 = vmatprep.subr.bf16.mxu0 0
  %3250 = vmatpush1.bf16.msra.mxu0 %v3236
  %3251 = vmatprep.subr.bf16.mxu0 0
  %3252 = vmatpush1.bf16.msra.mxu0 %v3237
  %3253 = vmatprep.subr.bf16.mxu0 0
  %3254 = vmatpush1.bf16.msra.mxu0 %v3238
  %3255 = vmatprep.subr.bf16.mxu0 0
  %3256 = vmatpush1.bf16.msra.mxu0 0
  %3257 = vmatprep.subr.bf16.mxu0 0
  %3258 = vmatpush1.bf16.msra.mxu0 0
  %3259 = vmatprep.subr.bf16.mxu0 0
  %3260 = vmatpush1.bf16.msra.mxu0 0
  %3261 = vmatprep.subr.bf16.mxu0 0
  %3262 = vmatpush1.bf16.msra.mxu0 0
  %3263 = vmatprep.subr.bf16.mxu0 0
  %3264 = vmatpush1.bf16.msra.mxu0 0
  %3265 = vmatprep.subr.bf16.mxu0 0
  %3266 = vmatpush1.bf16.msra.mxu0 0
  %3267 = vmatprep.subr.bf16.mxu0 0
  %3268 = vmatpush1.bf16.msra.mxu0 0
  %3269 = vmatprep.subr.bf16.mxu0 0
  %3270 = vmatpush1.bf16.msra.mxu0 0
  %3271 = vmatprep.subr.bf16.mxu0 0
  %3272 = vmatpush1.bf16.msra.mxu0 0
  %3273 = vmatprep.subr.bf16.mxu0 0
  %3274 = vmatpush1.bf16.msra.mxu0 0
  %3275 = vmatprep.subr.bf16.mxu0 0
  %3276 = vmatpush1.bf16.msra.mxu0 0
  %3277 = vmatprep.subr.bf16.mxu0 0
  %3278 = vmatpush1.bf16.msra.mxu0 0
  %3279 = vmatprep.mubr.bf16.mxu0 0
  %3280 = vmatmul.mubr.bf16.gmra.mrb[0].mxu0 %v3245
  %v3281 = vpop.f32.mrb[0].mxu0
  %v3282 = vadd.f32 %v3217, %v3281
  %v3283 = vpop.f32.mrb[0].mxu0
  %v3284 = vpop.f32.mrb[0].mxu0
  %v3285 = vpop.f32.mrb[0].mxu0
  %3286 = vdwg.mxu0
  %v3287 = vmax.f32 %v3282, 0.0
  %v3288 = vpack.c.bf16 %v3287, %v3287
  %v3289 = vld [vmem:[%s5] sm:$0xf]
  %v3290 = vld [vmem:[%s5 + $0x4] sm:$0xf]
  %v3291 = vld [vmem:[%s5 + $0x8] sm:$0xf]
  %v3292 = vld [vmem:[%s5 + $0xc] sm:$0xf]
  %v3293 = vld [vmem:[%s5 + $0x10] sm:$0xf]
  %v3294 = vld [vmem:[%s5 + $0x14] sm:$0xf]
  %v3295 = vld [vmem:[%s5 + $0x18] sm:$0xf]
  %v3296 = vld [vmem:[%s5 + $0x1c] sm:$0xf]
  %v3297 = vld [vmem:[%s6] sm:$0x1]
  %v3299 = vlaneseq
  %v3300 = vshrl.u32 %v3299, 7
  %v3301 = vsub.s32 0, %v3300
  %v3302 = vrot.slane %v3297, %v3301
  %v3312 = vunpack.c.l.b16 %v3289
  %v3313 = vunpack.c.l.b16 %v3290
  %v3314 = vunpack.c.l.b16 %v3291
  %v3315 = vunpack.c.l.b16 %v3292
  %v3316 = vunpack.c.l.b16 %v3293
  %v3317 = vunpack.c.l.b16 %v3294
  %v3318 = vunpack.c.l.b16 %v3295
  %v3319 = vunpack.c.l.b16 %v3296
  %v3320 = vpack.c.b16 %v3313, %v3312
  %v3321 = vpack.c.b16 %v3315, %v3314
  %v3322 = vpack.c.b16 %v3317, %v3316
  %v3323 = vpack.c.b16 %v3319, %v3318
  %v3329 = vsel %vm3243, %v3288, 0
  %3331 = vmatprep.subr.bf16.mxu0 0
  %3332 = vmatpush1.bf16.msra.mxu0 %v3320
  %3333 = vmatprep.subr.bf16.mxu0 0
  %3334 = vmatpush1.bf16.msra.mxu0 %v3321
  %3335 = vmatprep.subr.bf16.mxu0 0
  %3336 = vmatpush1.bf16.msra.mxu0 %v3322
  %3337 = vmatprep.subr.bf16.mxu0 0
  %3338 = vmatpush1.bf16.msra.mxu0 %v3323
  %3339 = vmatprep.subr.bf16.mxu0 0
  %3340 = vmatpush1.bf16.msra.mxu0 0
  %3341 = vmatprep.subr.bf16.mxu0 0
  %3342 = vmatpush1.bf16.msra.mxu0 0
  %3343 = vmatprep.subr.bf16.mxu0 0
  %3344 = vmatpush1.bf16.msra.mxu0 0
  %3345 = vmatprep.subr.bf16.mxu0 0
  %3346 = vmatpush1.bf16.msra.mxu0 0
  %3347 = vmatprep.subr.bf16.mxu0 0
  %3348 = vmatpush1.bf16.msra.mxu0 0
  %3349 = vmatprep.subr.bf16.mxu0 0
  %3350 = vmatpush1.bf16.msra.mxu0 0
  %3351 = vmatprep.subr.bf16.mxu0 0
  %3352 = vmatpush1.bf16.msra.mxu0 0
  %3353 = vmatprep.subr.bf16.mxu0 0
  %3354 = vmatpush1.bf16.msra.mxu0 0
  %3355 = vmatprep.subr.bf16.mxu0 0
  %3356 = vmatpush1.bf16.msra.mxu0 0
  %3357 = vmatprep.subr.bf16.mxu0 0
  %3358 = vmatpush1.bf16.msra.mxu0 0
  %3359 = vmatprep.subr.bf16.mxu0 0
  %3360 = vmatpush1.bf16.msra.mxu0 0
  %3361 = vmatprep.subr.bf16.mxu0 0
  %3362 = vmatpush1.bf16.msra.mxu0 0
  %3363 = vmatprep.mubr.bf16.mxu0 0
  %3364 = vmatmul.mubr.bf16.gmra.mrb[0].mxu0 %v3329
  %v3365 = vpop.f32.mrb[0].mxu0
  %v3366 = vadd.f32 %v3302, %v3365
  %v3367 = vpop.f32.mrb[0].mxu0
  %v3368 = vpop.f32.mrb[0].mxu0
  %v3369 = vpop.f32.mrb[0].mxu0
  %3370 = vdwg.mxu0
  %v3371 = vtanh.pop %v3366
  %3372 = vst [vmem:[%s7] sm:$0xff] %v3371
  // Predicated region
  $region30: #{supervised_policy_forward.5} parent=0 // pred_check
    _
  $region31: #{supervised_policy_forward.5} parent=0 // pred_check_branch
    %3374 = sbr.rel (0) target = $region33
  $region32: #{supervised_policy_forward.5} parent=0 // pred_region
    _
  $region33: #{supervised_policy_forward.5} parent=0 // pred_fallthru
    _
  // Predicated region
  $region34: #{supervised_policy_forward.5} parent=0 // pred_check
    _
  $region35: #{supervised_policy_forward.5} parent=0 // pred_check_branch
    %3376 = sbr.rel (0) target = $region37
  $region36: #{supervised_policy_forward.5} parent=0 // pred_region
    _
  $region37: #{supervised_policy_forward.5} parent=0 // pred_fallthru
    _

</llo_original>
